<compile_context>
chip_gen: v7x
topology: tpu7x:2x2x1
jax: 0.10.0
libtpu: 0.0.40
codegen_flags: <defaults>
</compile_context>

<pallas_src>
import jax
import jax.numpy as jnp
from jax.experimental import pallas as pl
from jax.experimental.pallas import tpu as pltpu

EMBEDDING_DIM = 100
LATENT_DIM = 100
NUM_CLASSES = 10
IMG_SHAPE = (1, 28, 28)
IMG_SIZE = 1 * 28 * 28        # 784
PAD_OUT = 896                 # 7 * 128, lane-dense padded output width
BN_EPS = 0.8                  # nn.BatchNorm1d(out_feat, 0.8) -> eps = 0.8
LRELU_SLOPE = 0.2

# Packed-vector slab layout (rows of a (16, 1024) f32 array):
#   0: b2[:256]   1: g2[:256]   2: be2[:256]
#   3: b3[:512]   4: g3[:512]   5: be3[:512]
#   6: b4[:1024]  7: g4[:1024]  8: be4[:1024]
#   9: b5[:784] (padded to 896/1024 with zeros)
_VEC_ROWS = 16
_VEC_COLS = 1024


def _generator_kernel(
    labels_ref, noise_ref,
    embf_ref, w1n_ref, w2_ref, w3_ref,
    w4_hbm_ref, w5_hbm_ref,
    vecs_ref,
    out_ref,
    w4_vmem, w5_vmem, dma_sem,
):
    B = out_ref.shape[0]

    # Kick off the two large weight DMAs immediately; they overlap layers 1-3.
    cp_w4 = pltpu.make_async_copy(w4_hbm_ref, w4_vmem, dma_sem.at[0])
    cp_w5 = pltpu.make_async_copy(w5_hbm_ref, w5_vmem, dma_sem.at[1])
    cp_w4.start()
    cp_w5.start()

    def matmul(x_f32, w_bf16):
        # bf16 operands on the MXU, f32 accumulation.
        return jnp.dot(x_f32.astype(jnp.bfloat16), w_bf16,
                       preferred_element_type=jnp.float32)

    def batchnorm(x, g, be):
        # Training-mode BatchNorm1d, single-pass stats: var = E[x^2] - mean^2.
        mu = jnp.mean(x, axis=0, keepdims=True)
        var = jnp.mean(x * x, axis=0, keepdims=True) - mu * mu
        return (x - mu) * jax.lax.rsqrt(var + BN_EPS) * g + be

    def lrelu(x):
        return jnp.where(x > 0, x, LRELU_SLOPE * x)

    # Static slices of the packed vector slab (zero-cost ref views -> loads).
    b2 = vecs_ref[0:1, 0:256]
    g2 = vecs_ref[1:2, 0:256]
    be2 = vecs_ref[2:3, 0:256]
    b3 = vecs_ref[3:4, 0:512]
    g3 = vecs_ref[4:5, 0:512]
    be3 = vecs_ref[5:6, 0:512]
    b4 = vecs_ref[6:7, :]
    g4 = vecs_ref[7:8, :]
    be4 = vecs_ref[8:9, :]
    b5 = vecs_ref[9:10, 0:PAD_OUT]

    # Block 1 (no BN); concat and b1 are folded into the (10,128) table:
    #   h1 = onehot @ (emb_w @ W1_top + b1) + noise @ W1_bottom
    class_ids = jax.lax.broadcasted_iota(jnp.int32, (B, NUM_CLASSES), 1)
    onehot = (labels_ref[...] == class_ids).astype(jnp.bfloat16)          # (B,10)
    h = (jnp.dot(onehot, embf_ref[...], preferred_element_type=jnp.float32)
         + matmul(noise_ref[...], w1n_ref[...]))
    h = lrelu(h)                                                          # (B,128)

    h = lrelu(batchnorm(matmul(h, w2_ref[...]) + b2, g2, be2))            # (B,256)
    h = lrelu(batchnorm(matmul(h, w3_ref[...]) + b3, g3, be3))            # (B,512)

    cp_w4.wait()
    h = lrelu(batchnorm(matmul(h, w4_vmem[...]) + b4, g4, be4))           # (B,1024)

    cp_w5.wait()
    out_ref[...] = jnp.tanh(matmul(h, w5_vmem[...]) + b5)                 # (B,896)


def init_generator_params(key):
    """Deterministic synthetic parameters in the PyTorch module's shapes (f32)."""
    dims = [
        (LATENT_DIM + EMBEDDING_DIM, 128),   # block 1 (no BN)
        (128, 256),                          # block 2 (BN)
        (256, 512),                          # block 3 (BN)
        (512, 1024),                         # block 4 (BN)
        (1024, IMG_SIZE),                    # final Linear
    ]
    keys = jax.random.split(key, 2 * len(dims) + 1)
    params = {}
    params["emb_w"] = jax.random.normal(keys[0], (NUM_CLASSES, EMBEDDING_DIM), jnp.float32)
    for i, (din, dout) in enumerate(dims, start=1):
        kw = keys[2 * i - 1]
        kb = keys[2 * i]
        bound = 1.0 / jnp.sqrt(din)
        params[f"w{i}"] = jax.random.uniform(kw, (din, dout), jnp.float32, -bound, bound)
        params[f"b{i}"] = jax.random.uniform(kb, (1, dout), jnp.float32, -bound, bound)
    for i, dout in [(2, 256), (3, 512), (4, 1024)]:
        params[f"g{i}"] = jnp.ones((1, dout), jnp.float32)
        params[f"be{i}"] = jnp.zeros((1, dout), jnp.float32)
    return params


def prepare_generator_params(params):
    """One-time transform: fold emb+b1 into a table, cast weights to bf16,
    pad W5 to 896 columns, and pack all small vectors into one f32 slab."""
    kp = {}
    w1 = params["w1"]
    # Fold: emb_w (10,100) @ W1_top (100,128) + b1 -> (10,128) table.
    kp["emb_fold"] = (params["emb_w"] @ w1[:EMBEDDING_DIM, :]
                      + params["b1"]).astype(jnp.bfloat16)
    kp["w1n"] = w1[EMBEDDING_DIM:, :].astype(jnp.bfloat16)
    for i in (2, 3, 4):
        kp[f"w{i}"] = params[f"w{i}"].astype(jnp.bfloat16)
    pad = PAD_OUT - IMG_SIZE
    kp["w5"] = jnp.pad(params["w5"], ((0, 0), (0, pad))).astype(jnp.bfloat16)

    # Pack all remaining (1, dout) f32 vectors into a single (16, 1024) slab.
    vecs = jnp.zeros((_VEC_ROWS, _VEC_COLS), jnp.float32)
    vecs = vecs.at[0, :256].set(params["b2"][0])
    vecs = vecs.at[1, :256].set(params["g2"][0])
    vecs = vecs.at[2, :256].set(params["be2"][0])
    vecs = vecs.at[3, :512].set(params["b3"][0])
    vecs = vecs.at[4, :512].set(params["g3"][0])
    vecs = vecs.at[5, :512].set(params["be3"][0])
    vecs = vecs.at[6, :].set(params["b4"][0])
    vecs = vecs.at[7, :].set(params["g4"][0])
    vecs = vecs.at[8, :].set(params["be4"][0])
    vecs = vecs.at[9, :IMG_SIZE].set(params["b5"][0])
    kp["vecs"] = vecs
    return kp


def generator_forward(noise, labels, kparams):
    """noise: (B, latent_dim) f32, labels: (B,) int32 -> (B, 1, 28, 28) f32."""
    B = noise.shape[0]
    labels_col = labels.astype(jnp.int32).reshape(B, 1)

    args = (
        labels_col, noise,
        kparams["emb_fold"], kparams["w1n"], kparams["w2"], kparams["w3"],
        kparams["w4"], kparams["w5"],
        kparams["vecs"],
    )

    vmem = pl.BlockSpec(memory_space=pltpu.MemorySpace.VMEM)
    hbm = pl.BlockSpec(memory_space=pl.ANY)       # w4/w5: manual overlapped DMA
    in_specs = [vmem, vmem, vmem, vmem, vmem, vmem, hbm, hbm, vmem]

    matmul_elems = (NUM_CLASSES * 128 + LATENT_DIM * 128 + 128 * 256
                    + 256 * 512 + 512 * 1024 + 1024 * PAD_OUT)
    cost = pl.CostEstimate(
        flops=2 * B * matmul_elems,
        transcendentals=B * PAD_OUT + (256 + 512 + 1024),
        bytes_accessed=(2 * matmul_elems                      # bf16 weights
                        + _VEC_ROWS * _VEC_COLS * 4           # packed vectors
                        + B * (LATENT_DIM + 1) * 4            # noise + labels
                        + B * PAD_OUT * 4),                   # output
    )

    flat = pl.pallas_call(
        _generator_kernel,
        out_shape=jax.ShapeDtypeStruct((B, PAD_OUT), jnp.float32),
        in_specs=in_specs,
        out_specs=vmem,
        scratch_shapes=[
            pltpu.VMEM((512, 1024), jnp.bfloat16),     # w4 landing buffer
            pltpu.VMEM((1024, PAD_OUT), jnp.bfloat16), # w5 landing buffer
            pltpu.SemaphoreType.DMA((2,)),
        ],
        compiler_params=pltpu.CompilerParams(vmem_limit_bytes=32 * 1024 * 1024),
        cost_estimate=cost,
    )(*args)

    return flat[:, :IMG_SIZE].reshape(B, *IMG_SHAPE)


if __name__ == "__main__":
    key = jax.random.PRNGKey(0)
    k_params, k_noise, k_labels = jax.random.split(key, 3)

    # B multiple of 16 so bf16 activation tiles (16,128) are full (review item).
    B = 16
    params = init_generator_params(k_params)
    kparams = prepare_generator_params(params)
    noise = jax.random.normal(k_noise, (B, LATENT_DIM), jnp.float32)
    labels = jax.random.randint(k_labels, (B,), 0, NUM_CLASSES, jnp.int32)

    img = generator_forward(noise, labels, kparams)
    img = jax.block_until_ready(img)

    assert img.shape == (B, 1, 28, 28), img.shape
    assert img.dtype == jnp.float32
    assert bool(jnp.all(jnp.isfinite(img)))
    assert bool(jnp.all(jnp.abs(img) <= 1.0))  # tanh range

    print("KERNEL_OK")
</pallas_src>

<mosaic_0001>
module attributes {stable_mosaic.version = 11 : i64} {
  func.func @_generator_kernel(%arg0: memref<16x1xi32, #tpu.memory_space<vmem>>, %arg1: memref<16x100xf32, #tpu.memory_space<vmem>>, %arg2: memref<10x128xbf16, #tpu.memory_space<vmem>>, %arg3: memref<100x128xbf16, #tpu.memory_space<vmem>>, %arg4: memref<128x256xbf16, #tpu.memory_space<vmem>>, %arg5: memref<256x512xbf16, #tpu.memory_space<vmem>>, %arg6: memref<512x1024xbf16, #tpu.memory_space<any>>, %arg7: memref<1024x896xbf16, #tpu.memory_space<any>>, %arg8: memref<16x1024xf32, #tpu.memory_space<vmem>>, %arg9: memref<16x896xf32, #tpu.memory_space<vmem>>, %arg10: memref<512x1024xbf16, #tpu.memory_space<vmem>>, %arg11: memref<1024x896xbf16, #tpu.memory_space<vmem>>, %arg12: memref<2x!tpu.dma_semaphore, #tpu.memory_space<semaphore_mem>>) attributes {dimension_semantics = [], scalar_prefetch = 0 : i64, scratch_operands = 3 : i64, tpu.core_type = #tpu.core_type<tc>} {
    %c0_i32 = arith.constant 0 : i32
    %0 = tpu.memref_slice %arg12[%c0_i32] : memref<2x!tpu.dma_semaphore, #tpu.memory_space<semaphore_mem>> -> memref<1x!tpu.dma_semaphore, #tpu.memory_space<semaphore_mem>>
    %1 = tpu.memref_squeeze %0 : memref<1x!tpu.dma_semaphore, #tpu.memory_space<semaphore_mem>> -> memref<!tpu.dma_semaphore, #tpu.memory_space<semaphore_mem>>
    tpu.enqueue_dma source(%arg6 : memref<512x1024xbf16, #tpu.memory_space<any>>) target(%arg10 : memref<512x1024xbf16, #tpu.memory_space<vmem>>) target_semaphore(%1 : memref<!tpu.dma_semaphore, #tpu.memory_space<semaphore_mem>>)
    %c1_i32 = arith.constant 1 : i32
    %2 = tpu.memref_slice %arg12[%c1_i32] : memref<2x!tpu.dma_semaphore, #tpu.memory_space<semaphore_mem>> -> memref<1x!tpu.dma_semaphore, #tpu.memory_space<semaphore_mem>>
    %3 = tpu.memref_squeeze %2 : memref<1x!tpu.dma_semaphore, #tpu.memory_space<semaphore_mem>> -> memref<!tpu.dma_semaphore, #tpu.memory_space<semaphore_mem>>
    tpu.enqueue_dma source(%arg7 : memref<1024x896xbf16, #tpu.memory_space<any>>) target(%arg11 : memref<1024x896xbf16, #tpu.memory_space<vmem>>) target_semaphore(%3 : memref<!tpu.dma_semaphore, #tpu.memory_space<semaphore_mem>>)
    %c0 = arith.constant 0 : index
    %c0_0 = arith.constant 0 : index
    %4 = vector.load %arg8[%c0, %c0_0] : memref<16x1024xf32, #tpu.memory_space<vmem>>, vector<1x256xf32>
    %c1 = arith.constant 1 : index
    %c0_1 = arith.constant 0 : index
    %5 = vector.load %arg8[%c1, %c0_1] : memref<16x1024xf32, #tpu.memory_space<vmem>>, vector<1x256xf32>
    %c2 = arith.constant 2 : index
    %c0_2 = arith.constant 0 : index
    %6 = vector.load %arg8[%c2, %c0_2] : memref<16x1024xf32, #tpu.memory_space<vmem>>, vector<1x256xf32>
    %c3 = arith.constant 3 : index
    %c0_3 = arith.constant 0 : index
    %7 = vector.load %arg8[%c3, %c0_3] : memref<16x1024xf32, #tpu.memory_space<vmem>>, vector<1x512xf32>
    %c4 = arith.constant 4 : index
    %c0_4 = arith.constant 0 : index
    %8 = vector.load %arg8[%c4, %c0_4] : memref<16x1024xf32, #tpu.memory_space<vmem>>, vector<1x512xf32>
    %c5 = arith.constant 5 : index
    %c0_5 = arith.constant 0 : index
    %9 = vector.load %arg8[%c5, %c0_5] : memref<16x1024xf32, #tpu.memory_space<vmem>>, vector<1x512xf32>
    %c6 = arith.constant 6 : index
    %c0_6 = arith.constant 0 : index
    %10 = vector.load %arg8[%c6, %c0_6] : memref<16x1024xf32, #tpu.memory_space<vmem>>, vector<1x1024xf32>
    %c7 = arith.constant 7 : index
    %c0_7 = arith.constant 0 : index
    %11 = vector.load %arg8[%c7, %c0_7] : memref<16x1024xf32, #tpu.memory_space<vmem>>, vector<1x1024xf32>
    %c8 = arith.constant 8 : index
    %c0_8 = arith.constant 0 : index
    %12 = vector.load %arg8[%c8, %c0_8] : memref<16x1024xf32, #tpu.memory_space<vmem>>, vector<1x1024xf32>
    %c9 = arith.constant 9 : index
    %c0_9 = arith.constant 0 : index
    %13 = vector.load %arg8[%c9, %c0_9] : memref<16x1024xf32, #tpu.memory_space<vmem>>, vector<1x896xf32>
    %14 = tpu.iota {dimensions = array<i32: 1>} : vector<16x10xi32>
    %c0_10 = arith.constant 0 : index
    %c0_11 = arith.constant 0 : index
    %15 = vector.load %arg0[%c0_10, %c0_11] : memref<16x1xi32, #tpu.memory_space<vmem>>, vector<16x1xi32>
    %16 = vector.broadcast %15 : vector<16x1xi32> to vector<16x10xi32>
    %17 = arith.cmpi eq, %16, %14 : vector<16x10xi32>
    %18 = arith.extui %17 : vector<16x10xi1> to vector<16x10xi32>
    %19 = arith.sitofp %18 : vector<16x10xi32> to vector<16x10xf32>
    %20 = arith.truncf %19 : vector<16x10xf32> to vector<16x10xbf16>
    %c0_12 = arith.constant 0 : index
    %c0_13 = arith.constant 0 : index
    %21 = vector.load %arg2[%c0_12, %c0_13] : memref<10x128xbf16, #tpu.memory_space<vmem>>, vector<10x128xbf16>
    %cst = arith.constant dense<0.000000e+00> : vector<16x128xf32>
    %22 = tpu.matmul %20, %21, %cst {dimension_numbers = #tpu.dot_dimension_numbers<[1], [0], [0], [1], [0, 0, 1, 1], [], []>} : vector<16x10xbf16>, vector<10x128xbf16>, vector<16x128xf32> -> vector<16x128xf32>
    %c0_14 = arith.constant 0 : index
    %c0_15 = arith.constant 0 : index
    %23 = vector.load %arg1[%c0_14, %c0_15] : memref<16x100xf32, #tpu.memory_space<vmem>>, vector<16x100xf32>
    %c0_16 = arith.constant 0 : index
    %c0_17 = arith.constant 0 : index
    %24 = vector.load %arg3[%c0_16, %c0_17] : memref<100x128xbf16, #tpu.memory_space<vmem>>, vector<100x128xbf16>
    %25 = arith.truncf %23 : vector<16x100xf32> to vector<16x100xbf16>
    %cst_18 = arith.constant dense<0.000000e+00> : vector<16x128xf32>
    %26 = tpu.matmul %25, %24, %cst_18 {dimension_numbers = #tpu.dot_dimension_numbers<[1], [0], [0], [1], [0, 0, 1, 1], [], []>} : vector<16x100xbf16>, vector<100x128xbf16>, vector<16x128xf32> -> vector<16x128xf32>
    %27 = arith.addf %22, %26 : vector<16x128xf32>
    %cst_19 = arith.constant 0.000000e+00 : f32
    %28 = vector.broadcast %cst_19 : f32 to vector<16x128xf32>
    %29 = arith.cmpf ogt, %27, %28 : vector<16x128xf32>
    %cst_20 = arith.constant 2.000000e-01 : f32
    %30 = vector.broadcast %cst_20 : f32 to vector<16x128xf32>
    %31 = arith.mulf %30, %27 : vector<16x128xf32>
    %32 = arith.select %29, %27, %31 : vector<16x128xi1>, vector<16x128xf32>
    %c0_21 = arith.constant 0 : index
    %c0_22 = arith.constant 0 : index
    %33 = vector.load %arg4[%c0_21, %c0_22] : memref<128x256xbf16, #tpu.memory_space<vmem>>, vector<128x256xbf16>
    %34 = arith.truncf %32 : vector<16x128xf32> to vector<16x128xbf16>
    %cst_23 = arith.constant dense<0.000000e+00> : vector<16x256xf32>
    %35 = tpu.matmul %34, %33, %cst_23 {dimension_numbers = #tpu.dot_dimension_numbers<[1], [0], [0], [1], [0, 0, 1, 1], [], []>} : vector<16x128xbf16>, vector<128x256xbf16>, vector<16x256xf32> -> vector<16x256xf32>
    %36 = vector.broadcast %4 : vector<1x256xf32> to vector<16x256xf32>
    %37 = arith.addf %35, %36 : vector<16x256xf32>
    %cst_24 = arith.constant dense<0.000000e+00> : vector<256xf32>
    %38 = vector.multi_reduction <add>, %37, %cst_24 [0] : vector<16x256xf32> to vector<256xf32>
    %39 = vector.shape_cast %38 : vector<256xf32> to vector<1x256xf32>
    %cst_25 = arith.constant 1.600000e+01 : f32
    %40 = vector.broadcast %cst_25 : f32 to vector<1x256xf32>
    %41 = arith.divf %39, %40 : vector<1x256xf32>
    %42 = arith.mulf %37, %37 : vector<16x256xf32>
    %cst_26 = arith.constant dense<0.000000e+00> : vector<256xf32>
    %43 = vector.multi_reduction <add>, %42, %cst_26 [0] : vector<16x256xf32> to vector<256xf32>
    %44 = vector.shape_cast %43 : vector<256xf32> to vector<1x256xf32>
    %cst_27 = arith.constant 1.600000e+01 : f32
    %45 = vector.broadcast %cst_27 : f32 to vector<1x256xf32>
    %46 = arith.divf %44, %45 : vector<1x256xf32>
    %47 = arith.mulf %41, %41 : vector<1x256xf32>
    %48 = arith.subf %46, %47 : vector<1x256xf32>
    %49 = vector.broadcast %41 : vector<1x256xf32> to vector<16x256xf32>
    %50 = arith.subf %37, %49 : vector<16x256xf32>
    %cst_28 = arith.constant 8.000000e-01 : f32
    %51 = vector.broadcast %cst_28 : f32 to vector<1x256xf32>
    %52 = arith.addf %48, %51 : vector<1x256xf32>
    %53 = math.rsqrt %52 : vector<1x256xf32>
    %54 = vector.broadcast %53 : vector<1x256xf32> to vector<16x256xf32>
    %55 = arith.mulf %50, %54 : vector<16x256xf32>
    %56 = vector.broadcast %5 : vector<1x256xf32> to vector<16x256xf32>
    %57 = arith.mulf %55, %56 : vector<16x256xf32>
    %58 = vector.broadcast %6 : vector<1x256xf32> to vector<16x256xf32>
    %59 = arith.addf %57, %58 : vector<16x256xf32>
    %cst_29 = arith.constant 0.000000e+00 : f32
    %60 = vector.broadcast %cst_29 : f32 to vector<16x256xf32>
    %61 = arith.cmpf ogt, %59, %60 : vector<16x256xf32>
    %cst_30 = arith.constant 2.000000e-01 : f32
    %62 = vector.broadcast %cst_30 : f32 to vector<16x256xf32>
    %63 = arith.mulf %62, %59 : vector<16x256xf32>
    %64 = arith.select %61, %59, %63 : vector<16x256xi1>, vector<16x256xf32>
    %c0_31 = arith.constant 0 : index
    %c0_32 = arith.constant 0 : index
    %65 = vector.load %arg5[%c0_31, %c0_32] : memref<256x512xbf16, #tpu.memory_space<vmem>>, vector<256x512xbf16>
    %66 = arith.truncf %64 : vector<16x256xf32> to vector<16x256xbf16>
    %cst_33 = arith.constant dense<0.000000e+00> : vector<16x512xf32>
    %67 = tpu.matmul %66, %65, %cst_33 {dimension_numbers = #tpu.dot_dimension_numbers<[1], [0], [0], [1], [0, 0, 1, 1], [], []>} : vector<16x256xbf16>, vector<256x512xbf16>, vector<16x512xf32> -> vector<16x512xf32>
    %68 = vector.broadcast %7 : vector<1x512xf32> to vector<16x512xf32>
    %69 = arith.addf %67, %68 : vector<16x512xf32>
    %cst_34 = arith.constant dense<0.000000e+00> : vector<512xf32>
    %70 = vector.multi_reduction <add>, %69, %cst_34 [0] : vector<16x512xf32> to vector<512xf32>
    %71 = vector.shape_cast %70 : vector<512xf32> to vector<1x512xf32>
    %cst_35 = arith.constant 1.600000e+01 : f32
    %72 = vector.broadcast %cst_35 : f32 to vector<1x512xf32>
    %73 = arith.divf %71, %72 : vector<1x512xf32>
    %74 = arith.mulf %69, %69 : vector<16x512xf32>
    %cst_36 = arith.constant dense<0.000000e+00> : vector<512xf32>
    %75 = vector.multi_reduction <add>, %74, %cst_36 [0] : vector<16x512xf32> to vector<512xf32>
    %76 = vector.shape_cast %75 : vector<512xf32> to vector<1x512xf32>
    %cst_37 = arith.constant 1.600000e+01 : f32
    %77 = vector.broadcast %cst_37 : f32 to vector<1x512xf32>
    %78 = arith.divf %76, %77 : vector<1x512xf32>
    %79 = arith.mulf %73, %73 : vector<1x512xf32>
    %80 = arith.subf %78, %79 : vector<1x512xf32>
    %81 = vector.broadcast %73 : vector<1x512xf32> to vector<16x512xf32>
    %82 = arith.subf %69, %81 : vector<16x512xf32>
    %cst_38 = arith.constant 8.000000e-01 : f32
    %83 = vector.broadcast %cst_38 : f32 to vector<1x512xf32>
    %84 = arith.addf %80, %83 : vector<1x512xf32>
    %85 = math.rsqrt %84 : vector<1x512xf32>
    %86 = vector.broadcast %85 : vector<1x512xf32> to vector<16x512xf32>
    %87 = arith.mulf %82, %86 : vector<16x512xf32>
    %88 = vector.broadcast %8 : vector<1x512xf32> to vector<16x512xf32>
    %89 = arith.mulf %87, %88 : vector<16x512xf32>
    %90 = vector.broadcast %9 : vector<1x512xf32> to vector<16x512xf32>
    %91 = arith.addf %89, %90 : vector<16x512xf32>
    %cst_39 = arith.constant 0.000000e+00 : f32
    %92 = vector.broadcast %cst_39 : f32 to vector<16x512xf32>
    %93 = arith.cmpf ogt, %91, %92 : vector<16x512xf32>
    %cst_40 = arith.constant 2.000000e-01 : f32
    %94 = vector.broadcast %cst_40 : f32 to vector<16x512xf32>
    %95 = arith.mulf %94, %91 : vector<16x512xf32>
    %96 = arith.select %93, %91, %95 : vector<16x512xi1>, vector<16x512xf32>
    %c0_i32_41 = arith.constant 0 : i32
    %97 = tpu.memref_slice %arg12[%c0_i32_41] : memref<2x!tpu.dma_semaphore, #tpu.memory_space<semaphore_mem>> -> memref<1x!tpu.dma_semaphore, #tpu.memory_space<semaphore_mem>>
    %98 = tpu.memref_squeeze %97 : memref<1x!tpu.dma_semaphore, #tpu.memory_space<semaphore_mem>> -> memref<!tpu.dma_semaphore, #tpu.memory_space<semaphore_mem>>
    tpu.wait_dma2 semaphore(%98 : memref<!tpu.dma_semaphore, #tpu.memory_space<semaphore_mem>>) src(%arg6 : memref<512x1024xbf16, #tpu.memory_space<any>>) dst(%arg10 : memref<512x1024xbf16, #tpu.memory_space<vmem>>)
    %c0_42 = arith.constant 0 : index
    %c0_43 = arith.constant 0 : index
    %99 = vector.load %arg10[%c0_42, %c0_43] : memref<512x1024xbf16, #tpu.memory_space<vmem>>, vector<512x1024xbf16>
    %100 = arith.truncf %96 : vector<16x512xf32> to vector<16x512xbf16>
    %cst_44 = arith.constant dense<0.000000e+00> : vector<16x1024xf32>
    %101 = tpu.matmul %100, %99, %cst_44 {dimension_numbers = #tpu.dot_dimension_numbers<[1], [0], [0], [1], [0, 0, 1, 1], [], []>} : vector<16x512xbf16>, vector<512x1024xbf16>, vector<16x1024xf32> -> vector<16x1024xf32>
    %102 = vector.broadcast %10 : vector<1x1024xf32> to vector<16x1024xf32>
    %103 = arith.addf %101, %102 : vector<16x1024xf32>
    %cst_45 = arith.constant dense<0.000000e+00> : vector<1024xf32>
    %104 = vector.multi_reduction <add>, %103, %cst_45 [0] : vector<16x1024xf32> to vector<1024xf32>
    %105 = vector.shape_cast %104 : vector<1024xf32> to vector<1x1024xf32>
    %cst_46 = arith.constant 1.600000e+01 : f32
    %106 = vector.broadcast %cst_46 : f32 to vector<1x1024xf32>
    %107 = arith.divf %105, %106 : vector<1x1024xf32>
    %108 = arith.mulf %103, %103 : vector<16x1024xf32>
    %cst_47 = arith.constant dense<0.000000e+00> : vector<1024xf32>
    %109 = vector.multi_reduction <add>, %108, %cst_47 [0] : vector<16x1024xf32> to vector<1024xf32>
    %110 = vector.shape_cast %109 : vector<1024xf32> to vector<1x1024xf32>
    %cst_48 = arith.constant 1.600000e+01 : f32
    %111 = vector.broadcast %cst_48 : f32 to vector<1x1024xf32>
    %112 = arith.divf %110, %111 : vector<1x1024xf32>
    %113 = arith.mulf %107, %107 : vector<1x1024xf32>
    %114 = arith.subf %112, %113 : vector<1x1024xf32>
    %115 = vector.broadcast %107 : vector<1x1024xf32> to vector<16x1024xf32>
    %116 = arith.subf %103, %115 : vector<16x1024xf32>
    %cst_49 = arith.constant 8.000000e-01 : f32
    %117 = vector.broadcast %cst_49 : f32 to vector<1x1024xf32>
    %118 = arith.addf %114, %117 : vector<1x1024xf32>
    %119 = math.rsqrt %118 : vector<1x1024xf32>
    %120 = vector.broadcast %119 : vector<1x1024xf32> to vector<16x1024xf32>
    %121 = arith.mulf %116, %120 : vector<16x1024xf32>
    %122 = vector.broadcast %11 : vector<1x1024xf32> to vector<16x1024xf32>
    %123 = arith.mulf %121, %122 : vector<16x1024xf32>
    %124 = vector.broadcast %12 : vector<1x1024xf32> to vector<16x1024xf32>
    %125 = arith.addf %123, %124 : vector<16x1024xf32>
    %cst_50 = arith.constant 0.000000e+00 : f32
    %126 = vector.broadcast %cst_50 : f32 to vector<16x1024xf32>
    %127 = arith.cmpf ogt, %125, %126 : vector<16x1024xf32>
    %cst_51 = arith.constant 2.000000e-01 : f32
    %128 = vector.broadcast %cst_51 : f32 to vector<16x1024xf32>
    %129 = arith.mulf %128, %125 : vector<16x1024xf32>
    %130 = arith.select %127, %125, %129 : vector<16x1024xi1>, vector<16x1024xf32>
    %c1_i32_52 = arith.constant 1 : i32
    %131 = tpu.memref_slice %arg12[%c1_i32_52] : memref<2x!tpu.dma_semaphore, #tpu.memory_space<semaphore_mem>> -> memref<1x!tpu.dma_semaphore, #tpu.memory_space<semaphore_mem>>
    %132 = tpu.memref_squeeze %131 : memref<1x!tpu.dma_semaphore, #tpu.memory_space<semaphore_mem>> -> memref<!tpu.dma_semaphore, #tpu.memory_space<semaphore_mem>>
    tpu.wait_dma2 semaphore(%132 : memref<!tpu.dma_semaphore, #tpu.memory_space<semaphore_mem>>) src(%arg7 : memref<1024x896xbf16, #tpu.memory_space<any>>) dst(%arg11 : memref<1024x896xbf16, #tpu.memory_space<vmem>>)
    %c0_53 = arith.constant 0 : index
    %c0_54 = arith.constant 0 : index
    %133 = vector.load %arg11[%c0_53, %c0_54] : memref<1024x896xbf16, #tpu.memory_space<vmem>>, vector<1024x896xbf16>
    %134 = arith.truncf %130 : vector<16x1024xf32> to vector<16x1024xbf16>
    %cst_55 = arith.constant dense<0.000000e+00> : vector<16x896xf32>
    %135 = tpu.matmul %134, %133, %cst_55 {dimension_numbers = #tpu.dot_dimension_numbers<[1], [0], [0], [1], [0, 0, 1, 1], [], []>} : vector<16x1024xbf16>, vector<1024x896xbf16>, vector<16x896xf32> -> vector<16x896xf32>
    %136 = vector.broadcast %13 : vector<1x896xf32> to vector<16x896xf32>
    %137 = arith.addf %135, %136 : vector<16x896xf32>
    %138 = math.tanh %137 : vector<16x896xf32>
    %c0_56 = arith.constant 0 : index
    %c0_57 = arith.constant 0 : index
    %139 = vector.load %arg9[%c0_56, %c0_57] : memref<16x896xf32, #tpu.memory_space<vmem>>, vector<16x896xf32>
    tpu.vector_store %arg9[%c0_56, %c0_57], %138 {strides = array<i32>} : memref<16x896xf32, #tpu.memory_space<vmem>>, vector<16x896xf32>,
    return
  }
}

</mosaic_0001>

<llo_original>
// kernel: tpu_custom_call.1
$region0: #{tpu_custom_call.1}
  #allocation0 [shape = 'u32[]', space=smem, size = 0x4, offset = 0x4, fixed_abs, tag = 'smem constant byte address 0x4 - core index']
  #allocation1 [shape = 'u32[144,128]{1,0:T(1,128)}', space=vmem, size = 0x12000, scoped, tag = 'internal scratch']
  #allocation2 [shape = 'bf16[512,1024]{1,0:T(16,128)(2,1)}', space=vmem, size = 0x100000, scoped, tag = 'scratch operand']
  #allocation3 [shape = 'bf16[1024,896]{1,0:T(16,128)(2,1)}', space=vmem, size = 0x1c0000, scoped, tag = 'scratch operand']
  #allocation4 [shape = 's32[2]{0}', space=sflag, size = 0x8, scoped, tag = 'scratch operand']
  #allocation17 [shape = 's32[]', space=sflag, size = 0x4, offset = 0, fixed_abs, tag = 'sflag constant byte address 0x0 - dummy sync flag']
  #allocation19 [shape = 's32[]', space=sflag, size = 0x4, offset = 0, fixed_abs, tag = 'sflag constant byte address 0x0 - dummy sync flag']
  %s0 = inlined_call_operand.vmem [shape: s32[16,1], index: 0, kind: input, shape index: {}]
  %s1 = inlined_call_operand.hbm [shape: f32[16,100], index: 1, kind: input, shape index: {}]
  %s2 = inlined_call_operand.hbm [shape: bf16[10,128], index: 2, kind: input, shape index: {}]
  %s3 = inlined_call_operand.hbm [shape: bf16[100,128], index: 3, kind: input, shape index: {}]
  %s4 = inlined_call_operand.hbm [shape: bf16[128,256], index: 4, kind: input, shape index: {}]
  %s5 = inlined_call_operand.hbm [shape: bf16[256,512], index: 5, kind: input, shape index: {}]
  %s6 = inlined_call_operand.hbm [shape: bf16[512,1024], index: 6, kind: input, shape index: {}]
  %s7 = inlined_call_operand.hbm [shape: bf16[1024,896], index: 7, kind: input, shape index: {}]
  %s8 = inlined_call_operand.hbm [shape: f32[16,1024], index: 8, kind: input, shape index: {}]
  %s9 = inlined_call_operand.hbm [shape: f32[16,896], index: 9, kind: output, shape index: {}]
  %s10 = sld [smem:[#allocation0]]
  $region62: #{tpu_custom_call.1} parent=0
    _
  %s12 = ssub.s32 1, %s10
  %s13 = scalar_select 0, %s12, %s10
  $region1: #{tpu_custom_call.1} parent=0
    #allocation5 [shape = 'u8[8192]{0}', space=vmem, size = 0x2000, scoped, tag = 'input window, operand 1, single buffered']
    #allocation6 [shape = 's32[1]{0}', space=sflag, size = 0x4, scoped, tag = 'scoped memory for tpu_custom_call.1']
    #allocation7 [shape = 's32[1]{0}', space=sflag, size = 0x4, scoped, tag = 'scoped memory for tpu_custom_call.1']
    #allocation8 [shape = 'u8[4096]{0}', space=vmem, size = 0x1000, scoped, tag = 'input window, operand 2, single buffered']
    #allocation9 [shape = 's32[1]{0}', space=sflag, size = 0x4, scoped, tag = 'scoped memory for tpu_custom_call.1']
    #allocation10 [shape = 'u8[26624]{0}', space=vmem, size = 0x6800, scoped, tag = 'input window, operand 3, single buffered']
    #allocation11 [shape = 'u8[65536]{0}', space=vmem, size = 0x10000, scoped, tag = 'input window, operand 4, single buffered']
    #allocation12 [shape = 's32[1]{0}', space=sflag, size = 0x4, scoped, tag = 'scoped memory for tpu_custom_call.1']
    #allocation13 [shape = 'u8[262144]{0}', space=vmem, size = 0x40000, scoped, tag = 'input window, operand 5, single buffered']
    #allocation14 [shape = 'u8[65536]{0}', space=vmem, size = 0x10000, scoped, tag = 'input window, operand 8, single buffered']
    #allocation15 [shape = 's32[1]{0}', space=sflag, size = 0x4, scoped, tag = 'scoped memory for tpu_custom_call.1']
    #allocation16 [shape = 'u8[57344]{0}', space=vmem, size = 0xe000, scoped, tag = 'output window, operand 0, single buffered']
    #allocation18 [shape = 'u32[9]{0}', space=smem, size = 0x24, scoped, tag = 'DMA stride descriptor']
    #allocation20 [shape = 'u32[9]{0}', space=smem, size = 0x24, scoped, tag = 'DMA stride descriptor']
    %14 = vsyncpa [#allocation6], 0
    %15 = vsyncpa [#allocation9], 0
    %16 = vsyncpa [#allocation12], 0
    %17 = vsyncpa [#allocation15], 0
    %18 = vsyncpa [#allocation7], 0
    // Predicated region
    $region2: #{tpu_custom_call.1} parent=1 // pred_check
      _
    $region3: #{tpu_custom_call.1} parent=1 // pred_check_branch
      %20 = sbr.rel (0) target = $region5
    $region4: #{tpu_custom_call.1} parent=1 // pred_region
      _
    $region5: #{tpu_custom_call.1} parent=1 // pred_fallthru
      _
    // Predicated region
    $region6: #{tpu_custom_call.1} parent=1 // pred_check
      _
    $region7: #{tpu_custom_call.1} parent=1 // pred_check_branch
      %22 = sbr.rel (0) target = $region9
    $region8: #{tpu_custom_call.1} parent=1 // pred_region
      %s24 = ssub.s32 256, 256
      %25 = vsyncadd [#allocation6], %s24
      %s26 = sshll.u32 [#allocation5], 4
      %s27 = int_to_ptr.vmem [resolvable:$true] %s26
      %32 = dma.hbm_to_vmem [thread:$0]  %s1, 256, %s27, [#allocation6], 128, 128, 8
    $region9: #{tpu_custom_call.1} parent=1 // pred_fallthru
      _
    // Predicated region
    $region10: #{tpu_custom_call.1} parent=1 // pred_check
      _
    $region11: #{tpu_custom_call.1} parent=1 // pred_check_branch
      %34 = sbr.rel (0) target = $region13
    $region12: #{tpu_custom_call.1} parent=1 // pred_region
      %s36 = ssub.s32 128, 128
      %37 = vsyncadd [#allocation9], %s36
      %s38 = sshll.u32 [#allocation8], 4
      %s39 = int_to_ptr.vmem [resolvable:$true] %s38
      %44 = dma.hbm_to_vmem [thread:$0]  %s2, 128, %s39, [#allocation9], 64, 64, 4
    $region13: #{tpu_custom_call.1} parent=1 // pred_fallthru
      _
    // Predicated region
    $region14: #{tpu_custom_call.1} parent=1 // pred_check
      _
    $region15: #{tpu_custom_call.1} parent=1 // pred_check_branch
      %46 = sbr.rel (0) target = $region17
    $region16: #{tpu_custom_call.1} parent=1 // pred_region
      %s48 = ssub.s32 832, 832
      %49 = vsyncadd [#allocation9], %s48
      %s50 = sshll.u32 [#allocation10], 4
      %s51 = int_to_ptr.vmem [resolvable:$true] %s50
      %56 = dma.hbm_to_vmem [thread:$0]  %s3, 832, %s51, [#allocation9], 64, 64, 4
    $region17: #{tpu_custom_call.1} parent=1 // pred_fallthru
      _
    // Predicated region
    $region18: #{tpu_custom_call.1} parent=1 // pred_check
      _
    $region19: #{tpu_custom_call.1} parent=1 // pred_check_branch
      %58 = sbr.rel (0) target = $region21
    $region20: #{tpu_custom_call.1} parent=1 // pred_region
      %s60 = ssub.s32 2048, 2048
      %61 = vsyncadd [#allocation12], %s60
      %s62 = sshll.u32 [#allocation11], 4
      %s63 = int_to_ptr.vmem [resolvable:$true] %s62
      %68 = dma.hbm_to_vmem [thread:$0]  %s4, 2048, %s63, [#allocation12], 128, 128, 8
    $region21: #{tpu_custom_call.1} parent=1 // pred_fallthru
      _
    // Predicated region
    $region22: #{tpu_custom_call.1} parent=1 // pred_check
      _
    $region23: #{tpu_custom_call.1} parent=1 // pred_check_branch
      %70 = sbr.rel (0) target = $region25
    $region24: #{tpu_custom_call.1} parent=1 // pred_region
      %s72 = ssub.s32 8192, 8192
      %73 = vsyncadd [#allocation12], %s72
      %s74 = sshll.u32 [#allocation13], 4
      %s75 = int_to_ptr.vmem [resolvable:$true] %s74
      %80 = dma.hbm_to_vmem [thread:$0]  %s5, 8192, %s75, [#allocation12], 256, 256, 16
    $region25: #{tpu_custom_call.1} parent=1 // pred_fallthru
      _
    // Predicated region
    $region26: #{tpu_custom_call.1} parent=1 // pred_check
      _
    $region27: #{tpu_custom_call.1} parent=1 // pred_check_branch
      %82 = sbr.rel (0) target = $region29
    $region28: #{tpu_custom_call.1} parent=1 // pred_region
      %s84 = ssub.s32 2048, 2048
      %85 = vsyncadd [#allocation15], %s84
      %s86 = sshll.u32 [#allocation14], 4
      %s87 = int_to_ptr.vmem [resolvable:$true] %s86
      %92 = dma.hbm_to_vmem [thread:$0]  %s8, 2048, %s87, [#allocation15], 1024, 1024, 64
    $region29: #{tpu_custom_call.1} parent=1 // pred_fallthru
      _
    // Predicated region
    $region30: #{tpu_custom_call.1} parent=1 // pred_check
      _
    $region31: #{tpu_custom_call.1} parent=1 // pred_check_branch
      %94 = sbr.rel (0) target = $region33
    $region32: #{tpu_custom_call.1} parent=1 // pred_region
      %95 = dma.done [#allocation6], 256
    $region33: #{tpu_custom_call.1} parent=1 // pred_fallthru
      _
    // Predicated region
    $region34: #{tpu_custom_call.1} parent=1 // pred_check
      _
    $region35: #{tpu_custom_call.1} parent=1 // pred_check_branch
      %97 = sbr.rel (0) target = $region37
    $region36: #{tpu_custom_call.1} parent=1 // pred_region
      %98 = dma.done [#allocation9], 128
    $region37: #{tpu_custom_call.1} parent=1 // pred_fallthru
      _
    // Predicated region
    $region38: #{tpu_custom_call.1} parent=1 // pred_check
      _
    $region39: #{tpu_custom_call.1} parent=1 // pred_check_branch
      %100 = sbr.rel (0) target = $region41
    $region40: #{tpu_custom_call.1} parent=1 // pred_region
      %101 = dma.done [#allocation9], 832
    $region41: #{tpu_custom_call.1} parent=1 // pred_fallthru
      _
    // Predicated region
    $region42: #{tpu_custom_call.1} parent=1 // pred_check
      _
    $region43: #{tpu_custom_call.1} parent=1 // pred_check_branch
      %103 = sbr.rel (0) target = $region45
    $region44: #{tpu_custom_call.1} parent=1 // pred_region
      %104 = dma.done [#allocation12], 2048
    $region45: #{tpu_custom_call.1} parent=1 // pred_fallthru
      _
    // Predicated region
    $region46: #{tpu_custom_call.1} parent=1 // pred_check
      _
    $region47: #{tpu_custom_call.1} parent=1 // pred_check_branch
      %106 = sbr.rel (0) target = $region49
    $region48: #{tpu_custom_call.1} parent=1 // pred_region
      %107 = dma.done [#allocation12], 8192
    $region49: #{tpu_custom_call.1} parent=1 // pred_fallthru
      _
    // Predicated region
    $region50: #{tpu_custom_call.1} parent=1 // pred_check
      _
    $region51: #{tpu_custom_call.1} parent=1 // pred_check_branch
      %109 = sbr.rel (0) target = $region53
    $region52: #{tpu_custom_call.1} parent=1 // pred_region
      %110 = dma.done [#allocation15], 2048
    $region53: #{tpu_custom_call.1} parent=1 // pred_fallthru
      _
    %s113 = sshll.u32 1, 14
    %s114 = sxor.u32 4294967295, %s113
    %s116 = sld [smem:[#allocation0]]
    %s117 = sadd.s32 2, %s116
    %s119 = sshll.u32 7, 26
    %s120 = sxor.u32 4294967295, %s119
    %s121 = sand.u32 0, %s120
    %s122 = sshll.u32 %s117, 26
    %s123 = sor.u32 %s121, %s122
    %s124 = sshll.u32 [#allocation2], 4
    %s125 = int_to_ptr.vmem [resolvable:$true] %s124
    %128 = sst [smem:[#allocation18]] 1024
    %s129 = scalar_lea.smem [#allocation18], 1
    %130 = sst [smem:[%s129]] 1024
    %s131 = scalar_lea.smem [#allocation18], 2
    %132 = sst [smem:[%s131]] 8
    %s133 = scalar_lea.smem [#allocation18], 3
    %134 = sst [smem:[%s133]] 64
    %s135 = scalar_lea.smem [#allocation18], 4
    %136 = sst [smem:[%s135]] 128
    %s137 = scalar_lea.smem [#allocation18], 5
    %138 = sst [smem:[%s137]] 2
    %s139 = scalar_lea.smem [#allocation18], 6
    %140 = sst [smem:[%s139]] 512
    %s141 = scalar_lea.smem [#allocation18], 7
    %142 = sst [smem:[%s141]] 64
    %s143 = scalar_lea.smem [#allocation18], 8
    %144 = sst [smem:[%s143]] 4
    %146 = dma.general %s6, 32768, %s125, [#allocation4], [#allocation17], [#allocation18], %s123, 0
    %s147 = scalar_lea.sflag [#allocation4], 1
    %s149 = sshll.u32 1, 14
    %s150 = sxor.u32 4294967295, %s149
    %s152 = sadd.s32 2, %s116
    %s154 = sshll.u32 7, 26
    %s155 = sxor.u32 4294967295, %s154
    %s156 = sand.u32 0, %s155
    %s157 = sshll.u32 %s152, 26
    %s158 = sor.u32 %s156, %s157
    %s159 = sshll.u32 [#allocation3], 4
    %s160 = int_to_ptr.vmem [resolvable:$true] %s159
    %163 = sst [smem:[#allocation20]] 896
    %s164 = scalar_lea.smem [#allocation20], 1
    %165 = sst [smem:[%s164]] 896
    %s166 = scalar_lea.smem [#allocation20], 2
    %167 = sst [smem:[%s166]] 7
    %s168 = scalar_lea.smem [#allocation20], 3
    %169 = sst [smem:[%s168]] 64
    %s170 = scalar_lea.smem [#allocation20], 4
    %171 = sst [smem:[%s170]] 128
    %s172 = scalar_lea.smem [#allocation20], 5
    %173 = sst [smem:[%s172]] 2
    %s174 = scalar_lea.smem [#allocation20], 6
    %175 = sst [smem:[%s174]] 448
    %s176 = scalar_lea.smem [#allocation20], 7
    %177 = sst [smem:[%s176]] 64
    %s178 = scalar_lea.smem [#allocation20], 8
    %179 = sst [smem:[%s178]] 4
    %181 = dma.general %s7, 57344, %s160, %s147, [#allocation19], [#allocation20], %s158, 0
    %v182 = vld [vmem:[#allocation14] ss:$8 sm:$0x3]
    %s183 = scalar_lea.vmem [#allocation14], 1
    %v184 = vld [vmem:[%s183] ss:$8 sm:$0x3]
    %s185 = scalar_lea.vmem [#allocation14], 2
    %v186 = vld [vmem:[%s185] ss:$8 sm:$0x3]
    %s187 = scalar_lea.vmem [#allocation14], 3
    %v188 = vld [vmem:[%s187] ss:$8 sm:$0xf]
    %s189 = scalar_lea.vmem [#allocation14], 4
    %v190 = vld [vmem:[%s189] ss:$8 sm:$0xf]
    %s191 = scalar_lea.vmem [#allocation14], 5
    %v192 = vld [vmem:[%s191] ss:$8 sm:$0xf]
    %s193 = scalar_lea.vmem [#allocation14], 6
    %v194 = vld [vmem:[%s193] ss:$8 sm:$0xf]
    %v195 = vld [vmem:[%s193] ss:$8 sm:$0xf0]
    %v196 = vor.u32 %v194, %v195
    %s197 = scalar_lea.vmem [#allocation14], 7
    %v198 = vld [vmem:[%s197] ss:$8 sm:$0xf]
    %v199 = vld [vmem:[%s197] ss:$8 sm:$0xf0]
    %v200 = vor.u32 %v198, %v199
    %s201 = scalar_lea.vmem [#allocation14], 64
    %v202 = vld [vmem:[%s201] ss:$8 sm:$0xf]
    %v203 = vld [vmem:[%s201] ss:$8 sm:$0xf0]
    %v204 = vor.u32 %v202, %v203
    %s205 = scalar_lea.vmem [#allocation14], 65
    %v206 = vld [vmem:[%s205] ss:$8 sm:$0xf]
    %v207 = vld [vmem:[%s205] ss:$8 sm:$0xf0]
    %v208 = vor.u32 %v206, %v207
    %v209 = vlaneseq
    %v210 = vand.u32 %v209, 127
    %v211 = vld [vmem:[%s0] sm:$0xff]
    %v212 = vld [vmem:[%s0 + $0x8] sm:$0xff]
    %213 = vset.pattern.permute.xlu0 0
    %214 = vperm.xlu0 %213, %v211
    %v215 = vpop.permute.xlu0 %214
    %216 = vset.pattern.permute.xlu0 0
    %217 = vperm.xlu0 %216, %v212
    %v218 = vpop.permute.xlu0 %217
    %vm219 = vcmp.eq.s32.totalorder %v215, %v210
    %vm220 = vcmp.eq.s32.totalorder %v218, %v210
    %v221 = vsel %vm219, 1, 0
    %v222 = vsel %vm220, 1, 0
    %v223 = vcvt.s32.f32 %v221
    %v224 = vcvt.s32.f32 %v222
    %v225 = vpack.c.bf16 %v224, %v223
    %v226 = vld [vmem:[#allocation8] sm:$0xf]
    %v227 = vld [vmem:[#allocation8 + $0x4] sm:$0x1]
    %v228 = vld [vmem:[#allocation5] sm:$0xff]
    %v229 = vld [vmem:[#allocation5 + $0x8] sm:$0xff]
    %v230 = vld [vmem:[#allocation10] sm:$0xf]
    %v231 = vld [vmem:[#allocation10 + $0x4] sm:$0xf]
    %v232 = vld [vmem:[#allocation10 + $0x8] sm:$0xf]
    %v233 = vld [vmem:[#allocation10 + $0xc] sm:$0xf]
    %v234 = vld [vmem:[#allocation10 + $0x10] sm:$0xf]
    %v235 = vld [vmem:[#allocation10 + $0x14] sm:$0xf]
    %v236 = vld [vmem:[#allocation10 + $0x18] sm:$0xf]
    %v237 = vld [vmem:[#allocation10 + $0x1c] sm:$0xf]
    %v238 = vld [vmem:[#allocation10 + $0x20] sm:$0xf]
    %v239 = vld [vmem:[#allocation10 + $0x24] sm:$0xf]
    %v240 = vld [vmem:[#allocation10 + $0x28] sm:$0xf]
    %v241 = vld [vmem:[#allocation10 + $0x2c] sm:$0xf]
    %v242 = vld [vmem:[#allocation10 + $0x30] sm:$0x3]
    %v243 = vpack.c.bf16 %v229, %v228
    %v257 = vunpack.c.l.b16 %v230
    %v258 = vunpack.c.l.b16 %v231
    %v259 = vunpack.c.l.b16 %v232
    %v260 = vunpack.c.l.b16 %v233
    %v261 = vunpack.c.l.b16 %v234
    %v262 = vunpack.c.l.b16 %v235
    %v263 = vunpack.c.l.b16 %v236
    %v264 = vunpack.c.l.b16 %v237
    %v265 = vunpack.c.l.b16 %v238
    %v266 = vunpack.c.l.b16 %v239
    %v267 = vunpack.c.l.b16 %v240
    %v268 = vunpack.c.l.b16 %v241
    %v269 = vunpack.c.l.b16 %v242
    %v270 = vpack.c.b16 %v258, %v257
    %v271 = vpack.c.b16 %v260, %v259
    %v272 = vpack.c.b16 %v262, %v261
    %v273 = vpack.c.b16 %v264, %v263
    %v274 = vpack.c.b16 %v266, %v265
    %v275 = vpack.c.b16 %v268, %v267
    %v276 = vpack.c.b16 %v269, %v269
    %vm283 = vcmask 818176
    %v285 = vsel %vm283, %v243, 0
    %vm287 = vcmask 1041408
    %v289 = vsel %vm287, %v276, 0
    %291 = vmatprep.subr.bf16.mxu0 0
    %292 = vmatpush1.bf16.msra.mxu0 %v270
    %293 = vmatprep.subr.bf16.mxu0 0
    %294 = vmatpush1.bf16.msra.mxu0 %v271
    %295 = vmatprep.subr.bf16.mxu0 0
    %296 = vmatpush1.bf16.msra.mxu0 %v272
    %297 = vmatprep.subr.bf16.mxu0 0
    %298 = vmatpush1.bf16.msra.mxu0 %v273
    %299 = vmatprep.subr.bf16.mxu0 0
    %300 = vmatpush1.bf16.msra.mxu0 %v274
    %301 = vmatprep.subr.bf16.mxu0 0
    %302 = vmatpush1.bf16.msra.mxu0 %v275
    %303 = vmatprep.subr.bf16.mxu0 0
    %304 = vmatpush1.bf16.msra.mxu0 %v289
    %305 = vmatprep.subr.bf16.mxu0 0
    %306 = vmatpush1.bf16.msra.mxu0 0
    %307 = vmatprep.subr.bf16.mxu0 0
    %308 = vmatpush1.bf16.msra.mxu0 0
    %309 = vmatprep.subr.bf16.mxu0 0
    %310 = vmatpush1.bf16.msra.mxu0 0
    %311 = vmatprep.subr.bf16.mxu0 0
    %312 = vmatpush1.bf16.msra.mxu0 0
    %313 = vmatprep.subr.bf16.mxu0 0
    %314 = vmatpush1.bf16.msra.mxu0 0
    %315 = vmatprep.subr.bf16.mxu0 0
    %316 = vmatpush1.bf16.msra.mxu0 0
    %317 = vmatprep.subr.bf16.mxu0 0
    %318 = vmatpush1.bf16.msra.mxu0 0
    %319 = vmatprep.subr.bf16.mxu0 0
    %320 = vmatpush1.bf16.msra.mxu0 0
    %321 = vmatprep.subr.bf16.mxu0 0
    %322 = vmatpush1.bf16.msra.mxu0 0
    %323 = vmatprep.mubr.bf16.mxu0 0
    %324 = vmatmul.mubr.bf16.gmra.mrb[0].mxu0 %v285
    %v325 = vpop.f32.mrb[0].mxu0
    %v326 = vadd.f32 0.0, %v325
    %v327 = vpop.f32.mrb[0].mxu0
    %v328 = vpop.f32.mrb[0].mxu0
    %v329 = vadd.f32 0.0, %v328
    %v330 = vpop.f32.mrb[0].mxu0
    %331 = vdwg.mxu0
    %v334 = vunpack.c.l.b16 %v226
    %v335 = vunpack.c.l.b16 %v227
    %v336 = vpack.c.b16 %v335, %v334
    %vm337 = vcmask 80896
    %v339 = vsel %vm337, %v225, 0
    %vm341 = vcmask 1044480
    %v343 = vsel %vm341, %v336, 0
    %345 = vmatprep.subr.bf16.mxu0 0
    %346 = vmatpush1.bf16.msra.mxu0 %v343
    %347 = vmatprep.subr.bf16.mxu0 0
    %348 = vmatpush1.bf16.msra.mxu0 0
    %349 = vmatprep.subr.bf16.mxu0 0
    %350 = vmatpush1.bf16.msra.mxu0 0
    %351 = vmatprep.subr.bf16.mxu0 0
    %352 = vmatpush1.bf16.msra.mxu0 0
    %353 = vmatprep.subr.bf16.mxu0 0
    %354 = vmatpush1.bf16.msra.mxu0 0
    %355 = vmatprep.subr.bf16.mxu0 0
    %356 = vmatpush1.bf16.msra.mxu0 0
    %357 = vmatprep.subr.bf16.mxu0 0
    %358 = vmatpush1.bf16.msra.mxu0 0
    %359 = vmatprep.subr.bf16.mxu0 0
    %360 = vmatpush1.bf16.msra.mxu0 0
    %361 = vmatprep.subr.bf16.mxu0 0
    %362 = vmatpush1.bf16.msra.mxu0 0
    %363 = vmatprep.subr.bf16.mxu0 0
    %364 = vmatpush1.bf16.msra.mxu0 0
    %365 = vmatprep.subr.bf16.mxu0 0
    %366 = vmatpush1.bf16.msra.mxu0 0
    %367 = vmatprep.subr.bf16.mxu0 0
    %368 = vmatpush1.bf16.msra.mxu0 0
    %369 = vmatprep.subr.bf16.mxu0 0
    %370 = vmatpush1.bf16.msra.mxu0 0
    %371 = vmatprep.subr.bf16.mxu0 0
    %372 = vmatpush1.bf16.msra.mxu0 0
    %373 = vmatprep.subr.bf16.mxu0 0
    %374 = vmatpush1.bf16.msra.mxu0 0
    %375 = vmatprep.subr.bf16.mxu0 0
    %376 = vmatpush1.bf16.msra.mxu0 0
    %377 = vmatprep.mubr.bf16.mxu0 0
    %378 = vmatmul.mubr.bf16.gmra.mrb[0].mxu0 %v339
    %v379 = vpop.f32.mrb[0].mxu0
    %v380 = vadd.f32 %v326, %v379
    %v381 = vpop.f32.mrb[0].mxu0
    %v382 = vpop.f32.mrb[0].mxu0
    %v383 = vadd.f32 %v329, %v382
    %v384 = vpop.f32.mrb[0].mxu0
    %385 = vdwg.mxu0
    %vm386 = vcmp.gt.f32.partialorder %v380, 0.0
    %vm387 = vcmp.gt.f32.partialorder %v383, 0.0
    %v388 = vmul.f32 %v380, 0.2
    %v389 = vmul.f32 %v383, 0.2
    %v390 = vsel %vm386, %v380, %v388
    %v391 = vsel %vm387, %v383, %v389
    %v392 = vld [vmem:[#allocation11] sm:$0xff]
    %v393 = vld [vmem:[#allocation11 + $0x8] sm:$0xff]
    %v394 = vld [vmem:[#allocation11 + $0x10] sm:$0xff]
    %v395 = vld [vmem:[#allocation11 + $0x18] sm:$0xff]
    %v396 = vld [vmem:[#allocation11 + $0x20] sm:$0xff]
    %v397 = vld [vmem:[#allocation11 + $0x28] sm:$0xff]
    %v398 = vld [vmem:[#allocation11 + $0x30] sm:$0xff]
    %v399 = vld [vmem:[#allocation11 + $0x38] sm:$0xff]
    %v400 = vld [vmem:[#allocation11 + $0x40] sm:$0xff]
    %v401 = vld [vmem:[#allocation11 + $0x48] sm:$0xff]
    %v402 = vld [vmem:[#allocation11 + $0x50] sm:$0xff]
    %v403 = vld [vmem:[#allocation11 + $0x58] sm:$0xff]
    %v404 = vld [vmem:[#allocation11 + $0x60] sm:$0xff]
    %v405 = vld [vmem:[#allocation11 + $0x68] sm:$0xff]
    %v406 = vld [vmem:[#allocation11 + $0x70] sm:$0xff]
    %v407 = vld [vmem:[#allocation11 + $0x78] sm:$0xff]
    %v408 = vpack.c.bf16 %v391, %v390
    %v410 = vlaneseq
    %v411 = vshrl.u32 %v410, 7
    %v412 = vsub.s32 0, %v411
    %v413 = vrot.slane %v182, %v412
    %v414 = vlaneseq
    %v415 = vshrl.u32 %v414, 7
    %v416 = vsub.s32 1, %v415
    %v417 = vrot.slane %v182, %v416
    %v436 = vunpack.c.l.b16 %v392
    %v437 = vunpack.c.h.b16 %v392
    %v438 = vunpack.c.l.b16 %v393
    %v439 = vunpack.c.h.b16 %v393
    %v440 = vunpack.c.l.b16 %v394
    %v441 = vunpack.c.h.b16 %v394
    %v442 = vunpack.c.l.b16 %v395
    %v443 = vunpack.c.h.b16 %v395
    %v444 = vunpack.c.l.b16 %v396
    %v445 = vunpack.c.h.b16 %v396
    %v446 = vunpack.c.l.b16 %v397
    %v447 = vunpack.c.h.b16 %v397
    %v448 = vunpack.c.l.b16 %v398
    %v449 = vunpack.c.h.b16 %v398
    %v450 = vunpack.c.l.b16 %v399
    %v451 = vunpack.c.h.b16 %v399
    %v452 = vunpack.c.l.b16 %v400
    %v453 = vunpack.c.h.b16 %v400
    %v454 = vunpack.c.l.b16 %v401
    %v455 = vunpack.c.h.b16 %v401
    %v456 = vunpack.c.l.b16 %v402
    %v457 = vunpack.c.h.b16 %v402
    %v458 = vunpack.c.l.b16 %v403
    %v459 = vunpack.c.h.b16 %v403
    %v460 = vunpack.c.l.b16 %v404
    %v461 = vunpack.c.h.b16 %v404
    %v462 = vunpack.c.l.b16 %v405
    %v463 = vunpack.c.h.b16 %v405
    %v464 = vunpack.c.l.b16 %v406
    %v465 = vunpack.c.h.b16 %v406
    %v466 = vunpack.c.l.b16 %v407
    %v467 = vunpack.c.h.b16 %v407
    %v468 = vpack.c.b16 %v438, %v436
    %v469 = vpack.c.b16 %v439, %v437
    %v470 = vpack.c.b16 %v442, %v440
    %v471 = vpack.c.b16 %v443, %v441
    %v472 = vpack.c.b16 %v446, %v444
    %v473 = vpack.c.b16 %v447, %v445
    %v474 = vpack.c.b16 %v450, %v448
    %v475 = vpack.c.b16 %v451, %v449
    %v476 = vpack.c.b16 %v454, %v452
    %v477 = vpack.c.b16 %v455, %v453
    %v478 = vpack.c.b16 %v458, %v456
    %v479 = vpack.c.b16 %v459, %v457
    %v480 = vpack.c.b16 %v462, %v460
    %v481 = vpack.c.b16 %v463, %v461
    %v482 = vpack.c.b16 %v466, %v464
    %v483 = vpack.c.b16 %v467, %v465
    %500 = vmatprep.subr.bf16.mxu0 %v469
    %501 = vmatpush1.bf16.msra.mxu0 %v468
    %502 = vmatprep.subr.bf16.mxu0 %v471
    %503 = vmatpush1.bf16.msra.mxu0 %v470
    %504 = vmatprep.subr.bf16.mxu0 %v473
    %505 = vmatpush1.bf16.msra.mxu0 %v472
    %506 = vmatprep.subr.bf16.mxu0 %v475
    %507 = vmatpush1.bf16.msra.mxu0 %v474
    %508 = vmatprep.subr.bf16.mxu0 %v477
    %509 = vmatpush1.bf16.msra.mxu0 %v476
    %510 = vmatprep.subr.bf16.mxu0 %v479
    %511 = vmatpush1.bf16.msra.mxu0 %v478
    %512 = vmatprep.subr.bf16.mxu0 %v481
    %513 = vmatpush1.bf16.msra.mxu0 %v480
    %514 = vmatprep.subr.bf16.mxu0 %v483
    %515 = vmatpush1.bf16.msra.mxu0 %v482
    %516 = vmatprep.subr.bf16.mxu0 0
    %517 = vmatpush1.bf16.msra.mxu0 0
    %518 = vmatprep.subr.bf16.mxu0 0
    %519 = vmatpush1.bf16.msra.mxu0 0
    %520 = vmatprep.subr.bf16.mxu0 0
    %521 = vmatpush1.bf16.msra.mxu0 0
    %522 = vmatprep.subr.bf16.mxu0 0
    %523 = vmatpush1.bf16.msra.mxu0 0
    %524 = vmatprep.subr.bf16.mxu0 0
    %525 = vmatpush1.bf16.msra.mxu0 0
    %526 = vmatprep.subr.bf16.mxu0 0
    %527 = vmatpush1.bf16.msra.mxu0 0
    %528 = vmatprep.subr.bf16.mxu0 0
    %529 = vmatpush1.bf16.msra.mxu0 0
    %530 = vmatprep.subr.bf16.mxu0 0
    %531 = vmatpush1.bf16.msra.mxu0 0
    %532 = vmatprep.mubr.bf16.mxu0 0
    %533 = vmatmul.mubr.bf16.gmra.mrb[0].mxu0 %v408
    %v534 = vpop.f32.mrb[0].mxu0
    %v535 = vadd.f32 %v413, %v534
    %v536 = vpop.f32.mrb[0].mxu0
    %v537 = vadd.f32 %v417, %v536
    %v538 = vpop.f32.mrb[0].mxu0
    %v539 = vadd.f32 %v413, %v538
    %v540 = vpop.f32.mrb[0].mxu0
    %v541 = vadd.f32 %v417, %v540
    %542 = vdwg.mxu0
    %v543 = vadd.f32 %v535, %v539
    %v544 = vrot.slane %v543, 4
    %v545 = vadd.f32 %v543, %v544
    %v546 = vrot.slane %v545, 2
    %v547 = vadd.f32 %v545, %v546
    %v548 = vrot.slane %v547, 1
    %v549 = vadd.f32 %v547, %v548
    %v550 = vadd.f32 %v537, %v541
    %v551 = vrot.slane %v550, 4
    %v552 = vadd.f32 %v550, %v551
    %v553 = vrot.slane %v552, 2
    %v554 = vadd.f32 %v552, %v553
    %v555 = vrot.slane %v554, 1
    %v556 = vadd.f32 %v554, %v555
    %v557 = vrcp.pop 16.0
    %v558 = vmul.f32 %v549, %v557
    %v559 = vmul.f32 %v556, %v557
    %v560 = vmul.f32 %v535, %v535
    %v561 = vmul.f32 %v537, %v537
    %v562 = vmul.f32 %v539, %v539
    %v563 = vmul.f32 %v541, %v541
    %v564 = vadd.f32 %v560, %v562
    %v565 = vrot.slane %v564, 4
    %v566 = vadd.f32 %v564, %v565
    %v567 = vrot.slane %v566, 2
    %v568 = vadd.f32 %v566, %v567
    %v569 = vrot.slane %v568, 1
    %v570 = vadd.f32 %v568, %v569
    %v571 = vadd.f32 %v561, %v563
    %v572 = vrot.slane %v571, 4
    %v573 = vadd.f32 %v571, %v572
    %v574 = vrot.slane %v573, 2
    %v575 = vadd.f32 %v573, %v574
    %v576 = vrot.slane %v575, 1
    %v577 = vadd.f32 %v575, %v576
    %v578 = vmul.f32 %v570, %v557
    %v579 = vmul.f32 %v577, %v557
    %v580 = vmul.f32 %v558, %v558
    %v581 = vmul.f32 %v559, %v559
    %v582 = vsub.f32 %v578, %v580
    %v583 = vsub.f32 %v579, %v581
    %v584 = vsub.f32 %v535, %v558
    %v585 = vsub.f32 %v537, %v559
    %v586 = vsub.f32 %v539, %v558
    %v587 = vsub.f32 %v541, %v559
    %v588 = vadd.f32 %v582, 0.8
    %v589 = vadd.f32 %v583, 0.8
    %v590 = vrsqrt.pop %v588
    %v591 = vrsqrt.pop %v589
    %v592 = vmul.f32 %v584, %v590
    %v593 = vmul.f32 %v585, %v591
    %v594 = vmul.f32 %v586, %v590
    %v595 = vmul.f32 %v587, %v591
    %v597 = vlaneseq
    %v598 = vshrl.u32 %v597, 7
    %v599 = vsub.s32 0, %v598
    %v600 = vrot.slane %v184, %v599
    %v601 = vlaneseq
    %v602 = vshrl.u32 %v601, 7
    %v603 = vsub.s32 1, %v602
    %v604 = vrot.slane %v184, %v603
    %v607 = vmul.f32 %v592, %v600
    %v608 = vmul.f32 %v593, %v604
    %v609 = vmul.f32 %v594, %v600
    %v610 = vmul.f32 %v595, %v604
    %v612 = vlaneseq
    %v613 = vshrl.u32 %v612, 7
    %v614 = vsub.s32 0, %v613
    %v615 = vrot.slane %v186, %v614
    %v616 = vlaneseq
    %v617 = vshrl.u32 %v616, 7
    %v618 = vsub.s32 1, %v617
    %v619 = vrot.slane %v186, %v618
    %v622 = vadd.f32 %v607, %v615
    %v623 = vadd.f32 %v608, %v619
    %v624 = vadd.f32 %v609, %v615
    %v625 = vadd.f32 %v610, %v619
    %vm626 = vcmp.gt.f32.partialorder %v622, 0.0
    %vm627 = vcmp.gt.f32.partialorder %v623, 0.0
    %vm628 = vcmp.gt.f32.partialorder %v624, 0.0
    %vm629 = vcmp.gt.f32.partialorder %v625, 0.0
    %v630 = vmul.f32 %v622, 0.2
    %v631 = vmul.f32 %v623, 0.2
    %v632 = vmul.f32 %v624, 0.2
    %v633 = vmul.f32 %v625, 0.2
    %v634 = vsel %vm626, %v622, %v630
    %v635 = vsel %vm627, %v623, %v631
    %v636 = vsel %vm628, %v624, %v632
    %v637 = vsel %vm629, %v625, %v633
    %v638 = vld [vmem:[#allocation13] sm:$0xff]
    %v639 = vld [vmem:[#allocation13 + $0x8] sm:$0xff]
    %v640 = vld [vmem:[#allocation13 + $0x10] sm:$0xff]
    %v641 = vld [vmem:[#allocation13 + $0x18] sm:$0xff]
    %v642 = vld [vmem:[#allocation13 + $0x20] sm:$0xff]
    %v643 = vld [vmem:[#allocation13 + $0x28] sm:$0xff]
    %v644 = vld [vmem:[#allocation13 + $0x30] sm:$0xff]
    %v645 = vld [vmem:[#allocation13 + $0x38] sm:$0xff]
    %v646 = vld [vmem:[#allocation13 + $0x40] sm:$0xff]
    %v647 = vld [vmem:[#allocation13 + $0x48] sm:$0xff]
    %v648 = vld [vmem:[#allocation13 + $0x50] sm:$0xff]
    %v649 = vld [vmem:[#allocation13 + $0x58] sm:$0xff]
    %v650 = vld [vmem:[#allocation13 + $0x60] sm:$0xff]
    %v651 = vld [vmem:[#allocation13 + $0x68] sm:$0xff]
    %v652 = vld [vmem:[#allocation13 + $0x70] sm:$0xff]
    %v653 = vld [vmem:[#allocation13 + $0x78] sm:$0xff]
    %v654 = vld [vmem:[#allocation13 + $0x80] sm:$0xff]
    %v655 = vld [vmem:[#allocation13 + $0x88] sm:$0xff]
    %v656 = vld [vmem:[#allocation13 + $0x90] sm:$0xff]
    %v657 = vld [vmem:[#allocation13 + $0x98] sm:$0xff]
    %v658 = vld [vmem:[#allocation13 + $0xa0] sm:$0xff]
    %v659 = vld [vmem:[#allocation13 + $0xa8] sm:$0xff]
    %v660 = vld [vmem:[#allocation13 + $0xb0] sm:$0xff]
    %v661 = vld [vmem:[#allocation13 + $0xb8] sm:$0xff]
    %v662 = vld [vmem:[#allocation13 + $0xc0] sm:$0xff]
    %v663 = vld [vmem:[#allocation13 + $0xc8] sm:$0xff]
    %v664 = vld [vmem:[#allocation13 + $0xd0] sm:$0xff]
    %v665 = vld [vmem:[#allocation13 + $0xd8] sm:$0xff]
    %v666 = vld [vmem:[#allocation13 + $0xe0] sm:$0xff]
    %v667 = vld [vmem:[#allocation13 + $0xe8] sm:$0xff]
    %v668 = vld [vmem:[#allocation13 + $0xf0] sm:$0xff]
    %v669 = vld [vmem:[#allocation13 + $0xf8] sm:$0xff]
    %v670 = vld [vmem:[#allocation13 + $0x100] sm:$0xff]
    %v671 = vld [vmem:[#allocation13 + $0x108] sm:$0xff]
    %v672 = vld [vmem:[#allocation13 + $0x110] sm:$0xff]
    %v673 = vld [vmem:[#allocation13 + $0x118] sm:$0xff]
    %v674 = vld [vmem:[#allocation13 + $0x120] sm:$0xff]
    %v675 = vld [vmem:[#allocation13 + $0x128] sm:$0xff]
    %v676 = vld [vmem:[#allocation13 + $0x130] sm:$0xff]
    %v677 = vld [vmem:[#allocation13 + $0x138] sm:$0xff]
    %v678 = vld [vmem:[#allocation13 + $0x140] sm:$0xff]
    %v679 = vld [vmem:[#allocation13 + $0x148] sm:$0xff]
    %v680 = vld [vmem:[#allocation13 + $0x150] sm:$0xff]
    %v681 = vld [vmem:[#allocation13 + $0x158] sm:$0xff]
    %v682 = vld [vmem:[#allocation13 + $0x160] sm:$0xff]
    %v683 = vld [vmem:[#allocation13 + $0x168] sm:$0xff]
    %v684 = vld [vmem:[#allocation13 + $0x170] sm:$0xff]
    %v685 = vld [vmem:[#allocation13 + $0x178] sm:$0xff]
    %v686 = vld [vmem:[#allocation13 + $0x180] sm:$0xff]
    %v687 = vld [vmem:[#allocation13 + $0x188] sm:$0xff]
    %v688 = vld [vmem:[#allocation13 + $0x190] sm:$0xff]
    %v689 = vld [vmem:[#allocation13 + $0x198] sm:$0xff]
    %v690 = vld [vmem:[#allocation13 + $0x1a0] sm:$0xff]
    %v691 = vld [vmem:[#allocation13 + $0x1a8] sm:$0xff]
    %v692 = vld [vmem:[#allocation13 + $0x1b0] sm:$0xff]
    %v693 = vld [vmem:[#allocation13 + $0x1b8] sm:$0xff]
    %v694 = vld [vmem:[#allocation13 + $0x1c0] sm:$0xff]
    %v695 = vld [vmem:[#allocation13 + $0x1c8] sm:$0xff]
    %v696 = vld [vmem:[#allocation13 + $0x1d0] sm:$0xff]
    %v697 = vld [vmem:[#allocation13 + $0x1d8] sm:$0xff]
    %v698 = vld [vmem:[#allocation13 + $0x1e0] sm:$0xff]
    %v699 = vld [vmem:[#allocation13 + $0x1e8] sm:$0xff]
    %v700 = vld [vmem:[#allocation13 + $0x1f0] sm:$0xff]
    %v701 = vld [vmem:[#allocation13 + $0x1f8] sm:$0xff]
    %v702 = vpack.c.bf16 %v636, %v634
    %v703 = vpack.c.bf16 %v637, %v635
    %v705 = vlaneseq
    %v706 = vshrl.u32 %v705, 7
    %v707 = vsub.s32 0, %v706
    %v708 = vrot.slane %v188, %v707
    %v709 = vlaneseq
    %v710 = vshrl.u32 %v709, 7
    %v711 = vsub.s32 1, %v710
    %v712 = vrot.slane %v188, %v711
    %v713 = vlaneseq
    %v714 = vshrl.u32 %v713, 7
    %v715 = vsub.s32 2, %v714
    %v716 = vrot.slane %v188, %v715
    %v717 = vlaneseq
    %v718 = vshrl.u32 %v717, 7
    %v719 = vsub.s32 3, %v718
    %v720 = vrot.slane %v188, %v719
    %v789 = vunpack.c.l.b16 %v638
    %v790 = vunpack.c.h.b16 %v638
    %v791 = vunpack.c.l.b16 %v639
    %v792 = vunpack.c.h.b16 %v639
    %v793 = vunpack.c.l.b16 %v640
    %v794 = vunpack.c.h.b16 %v640
    %v795 = vunpack.c.l.b16 %v641
    %v796 = vunpack.c.h.b16 %v641
    %v797 = vunpack.c.l.b16 %v642
    %v798 = vunpack.c.h.b16 %v642
    %v799 = vunpack.c.l.b16 %v643
    %v800 = vunpack.c.h.b16 %v643
    %v801 = vunpack.c.l.b16 %v644
    %v802 = vunpack.c.h.b16 %v644
    %v803 = vunpack.c.l.b16 %v645
    %v804 = vunpack.c.h.b16 %v645
    %v805 = vunpack.c.l.b16 %v646
    %v806 = vunpack.c.h.b16 %v646
    %v807 = vunpack.c.l.b16 %v647
    %v808 = vunpack.c.h.b16 %v647
    %v809 = vunpack.c.l.b16 %v648
    %v810 = vunpack.c.h.b16 %v648
    %v811 = vunpack.c.l.b16 %v649
    %v812 = vunpack.c.h.b16 %v649
    %v813 = vunpack.c.l.b16 %v650
    %v814 = vunpack.c.h.b16 %v650
    %v815 = vunpack.c.l.b16 %v651
    %v816 = vunpack.c.h.b16 %v651
    %v817 = vunpack.c.l.b16 %v652
    %v818 = vunpack.c.h.b16 %v652
    %v819 = vunpack.c.l.b16 %v653
    %v820 = vunpack.c.h.b16 %v653
    %v821 = vunpack.c.l.b16 %v654
    %v822 = vunpack.c.h.b16 %v654
    %v823 = vunpack.c.l.b16 %v655
    %v824 = vunpack.c.h.b16 %v655
    %v825 = vunpack.c.l.b16 %v656
    %v826 = vunpack.c.h.b16 %v656
    %v827 = vunpack.c.l.b16 %v657
    %v828 = vunpack.c.h.b16 %v657
    %v829 = vunpack.c.l.b16 %v658
    %v830 = vunpack.c.h.b16 %v658
    %v831 = vunpack.c.l.b16 %v659
    %v832 = vunpack.c.h.b16 %v659
    %v833 = vunpack.c.l.b16 %v660
    %v834 = vunpack.c.h.b16 %v660
    %v835 = vunpack.c.l.b16 %v661
    %v836 = vunpack.c.h.b16 %v661
    %v837 = vunpack.c.l.b16 %v662
    %v838 = vunpack.c.h.b16 %v662
    %v839 = vunpack.c.l.b16 %v663
    %v840 = vunpack.c.h.b16 %v663
    %v841 = vunpack.c.l.b16 %v664
    %v842 = vunpack.c.h.b16 %v664
    %v843 = vunpack.c.l.b16 %v665
    %v844 = vunpack.c.h.b16 %v665
    %v845 = vunpack.c.l.b16 %v666
    %v846 = vunpack.c.h.b16 %v666
    %v847 = vunpack.c.l.b16 %v667
    %v848 = vunpack.c.h.b16 %v667
    %v849 = vunpack.c.l.b16 %v668
    %v850 = vunpack.c.h.b16 %v668
    %v851 = vunpack.c.l.b16 %v669
    %v852 = vunpack.c.h.b16 %v669
    %v853 = vunpack.c.l.b16 %v670
    %v854 = vunpack.c.h.b16 %v670
    %v855 = vunpack.c.l.b16 %v671
    %v856 = vunpack.c.h.b16 %v671
    %v857 = vunpack.c.l.b16 %v672
    %v858 = vunpack.c.h.b16 %v672
    %v859 = vunpack.c.l.b16 %v673
    %v860 = vunpack.c.h.b16 %v673
    %v861 = vunpack.c.l.b16 %v674
    %v862 = vunpack.c.h.b16 %v674
    %v863 = vunpack.c.l.b16 %v675
    %v864 = vunpack.c.h.b16 %v675
    %v865 = vunpack.c.l.b16 %v676
    %v866 = vunpack.c.h.b16 %v676
    %v867 = vunpack.c.l.b16 %v677
    %v868 = vunpack.c.h.b16 %v677
    %v869 = vunpack.c.l.b16 %v678
    %v870 = vunpack.c.h.b16 %v678
    %v871 = vunpack.c.l.b16 %v679
    %v872 = vunpack.c.h.b16 %v679
    %v873 = vunpack.c.l.b16 %v680
    %v874 = vunpack.c.h.b16 %v680
    %v875 = vunpack.c.l.b16 %v681
    %v876 = vunpack.c.h.b16 %v681
    %v877 = vunpack.c.l.b16 %v682
    %v878 = vunpack.c.h.b16 %v682
    %v879 = vunpack.c.l.b16 %v683
    %v880 = vunpack.c.h.b16 %v683
    %v881 = vunpack.c.l.b16 %v684
    %v882 = vunpack.c.h.b16 %v684
    %v883 = vunpack.c.l.b16 %v685
    %v884 = vunpack.c.h.b16 %v685
    %v885 = vunpack.c.l.b16 %v686
    %v886 = vunpack.c.h.b16 %v686
    %v887 = vunpack.c.l.b16 %v687
    %v888 = vunpack.c.h.b16 %v687
    %v889 = vunpack.c.l.b16 %v688
    %v890 = vunpack.c.h.b16 %v688
    %v891 = vunpack.c.l.b16 %v689
    %v892 = vunpack.c.h.b16 %v689
    %v893 = vunpack.c.l.b16 %v690
    %v894 = vunpack.c.h.b16 %v690
    %v895 = vunpack.c.l.b16 %v691
    %v896 = vunpack.c.h.b16 %v691
    %v897 = vunpack.c.l.b16 %v692
    %v898 = vunpack.c.h.b16 %v692
    %v899 = vunpack.c.l.b16 %v693
    %v900 = vunpack.c.h.b16 %v693
    %v901 = vunpack.c.l.b16 %v694
    %v902 = vunpack.c.h.b16 %v694
    %v903 = vunpack.c.l.b16 %v695
    %v904 = vunpack.c.h.b16 %v695
    %v905 = vunpack.c.l.b16 %v696
    %v906 = vunpack.c.h.b16 %v696
    %v907 = vunpack.c.l.b16 %v697
    %v908 = vunpack.c.h.b16 %v697
    %v909 = vunpack.c.l.b16 %v698
    %v910 = vunpack.c.h.b16 %v698
    %v911 = vunpack.c.l.b16 %v699
    %v912 = vunpack.c.h.b16 %v699
    %v913 = vunpack.c.l.b16 %v700
    %v914 = vunpack.c.h.b16 %v700
    %v915 = vunpack.c.l.b16 %v701
    %v916 = vunpack.c.h.b16 %v701
    %v917 = vpack.c.b16 %v793, %v789
    %v918 = vpack.c.b16 %v794, %v790
    %v919 = vpack.c.b16 %v795, %v791
    %v920 = vpack.c.b16 %v796, %v792
    %v921 = vpack.c.b16 %v801, %v797
    %v922 = vpack.c.b16 %v802, %v798
    %v923 = vpack.c.b16 %v803, %v799
    %v924 = vpack.c.b16 %v804, %v800
    %v925 = vpack.c.b16 %v809, %v805
    %v926 = vpack.c.b16 %v810, %v806
    %v927 = vpack.c.b16 %v811, %v807
    %v928 = vpack.c.b16 %v812, %v808
    %v929 = vpack.c.b16 %v817, %v813
    %v930 = vpack.c.b16 %v818, %v814
    %v931 = vpack.c.b16 %v819, %v815
    %v932 = vpack.c.b16 %v820, %v816
    %v933 = vpack.c.b16 %v825, %v821
    %v934 = vpack.c.b16 %v826, %v822
    %v935 = vpack.c.b16 %v827, %v823
    %v936 = vpack.c.b16 %v828, %v824
    %v937 = vpack.c.b16 %v833, %v829
    %v938 = vpack.c.b16 %v834, %v830
    %v939 = vpack.c.b16 %v835, %v831
    %v940 = vpack.c.b16 %v836, %v832
    %v941 = vpack.c.b16 %v841, %v837
    %v942 = vpack.c.b16 %v842, %v838
    %v943 = vpack.c.b16 %v843, %v839
    %v944 = vpack.c.b16 %v844, %v840
    %v945 = vpack.c.b16 %v849, %v845
    %v946 = vpack.c.b16 %v850, %v846
    %v947 = vpack.c.b16 %v851, %v847
    %v948 = vpack.c.b16 %v852, %v848
    %v949 = vpack.c.b16 %v857, %v853
    %v950 = vpack.c.b16 %v858, %v854
    %v951 = vpack.c.b16 %v859, %v855
    %v952 = vpack.c.b16 %v860, %v856
    %v953 = vpack.c.b16 %v865, %v861
    %v954 = vpack.c.b16 %v866, %v862
    %v955 = vpack.c.b16 %v867, %v863
    %v956 = vpack.c.b16 %v868, %v864
    %v957 = vpack.c.b16 %v873, %v869
    %v958 = vpack.c.b16 %v874, %v870
    %v959 = vpack.c.b16 %v875, %v871
    %v960 = vpack.c.b16 %v876, %v872
    %v961 = vpack.c.b16 %v881, %v877
    %v962 = vpack.c.b16 %v882, %v878
    %v963 = vpack.c.b16 %v883, %v879
    %v964 = vpack.c.b16 %v884, %v880
    %v965 = vpack.c.b16 %v889, %v885
    %v966 = vpack.c.b16 %v890, %v886
    %v967 = vpack.c.b16 %v891, %v887
    %v968 = vpack.c.b16 %v892, %v888
    %v969 = vpack.c.b16 %v897, %v893
    %v970 = vpack.c.b16 %v898, %v894
    %v971 = vpack.c.b16 %v899, %v895
    %v972 = vpack.c.b16 %v900, %v896
    %v973 = vpack.c.b16 %v905, %v901
    %v974 = vpack.c.b16 %v906, %v902
    %v975 = vpack.c.b16 %v907, %v903
    %v976 = vpack.c.b16 %v908, %v904
    %v977 = vpack.c.b16 %v913, %v909
    %v978 = vpack.c.b16 %v914, %v910
    %v979 = vpack.c.b16 %v915, %v911
    %v980 = vpack.c.b16 %v916, %v912
    %1045 = vmatprep.subr.bf16.mxu0 %v918
    %1046 = vmatpush1.bf16.msra.mxu0 %v917
    %1047 = vmatprep.subr.bf16.mxu0 %v922
    %1048 = vmatpush1.bf16.msra.mxu0 %v921
    %1049 = vmatprep.subr.bf16.mxu0 %v926
    %1050 = vmatpush1.bf16.msra.mxu0 %v925
    %1051 = vmatprep.subr.bf16.mxu0 %v930
    %1052 = vmatpush1.bf16.msra.mxu0 %v929
    %1053 = vmatprep.subr.bf16.mxu0 %v934
    %1054 = vmatpush1.bf16.msra.mxu0 %v933
    %1055 = vmatprep.subr.bf16.mxu0 %v938
    %1056 = vmatpush1.bf16.msra.mxu0 %v937
    %1057 = vmatprep.subr.bf16.mxu0 %v942
    %1058 = vmatpush1.bf16.msra.mxu0 %v941
    %1059 = vmatprep.subr.bf16.mxu0 %v946
    %1060 = vmatpush1.bf16.msra.mxu0 %v945
    %1061 = vmatprep.subr.bf16.mxu0 %v950
    %1062 = vmatpush1.bf16.msra.mxu0 %v949
    %1063 = vmatprep.subr.bf16.mxu0 %v954
    %1064 = vmatpush1.bf16.msra.mxu0 %v953
    %1065 = vmatprep.subr.bf16.mxu0 %v958
    %1066 = vmatpush1.bf16.msra.mxu0 %v957
    %1067 = vmatprep.subr.bf16.mxu0 %v962
    %1068 = vmatpush1.bf16.msra.mxu0 %v961
    %1069 = vmatprep.subr.bf16.mxu0 %v966
    %1070 = vmatpush1.bf16.msra.mxu0 %v965
    %1071 = vmatprep.subr.bf16.mxu0 %v970
    %1072 = vmatpush1.bf16.msra.mxu0 %v969
    %1073 = vmatprep.subr.bf16.mxu0 %v974
    %1074 = vmatpush1.bf16.msra.mxu0 %v973
    %1075 = vmatprep.subr.bf16.mxu0 %v978
    %1076 = vmatpush1.bf16.msra.mxu0 %v977
    %1077 = vmatprep.mubr.bf16.mxu0 %v703
    %1078 = vmatmul.mubr.bf16.gmra.mrb[0].mxu0 %v702
    %v1079 = vpop.f32.mrb[0].mxu0
    %v1080 = vadd.f32 %v708, %v1079
    %v1081 = vpop.f32.mrb[0].mxu0
    %v1082 = vadd.f32 %v712, %v1081
    %v1083 = vpop.f32.mrb[0].mxu0
    %v1084 = vadd.f32 %v708, %v1083
    %v1085 = vpop.f32.mrb[0].mxu0
    %v1086 = vadd.f32 %v712, %v1085
    %1087 = vdwg.mxu0
    %1088 = vmatprep.subr.bf16.mxu0 %v920
    %1089 = vmatpush1.bf16.msra.mxu0 %v919
    %1090 = vmatprep.subr.bf16.mxu0 %v924
    %1091 = vmatpush1.bf16.msra.mxu0 %v923
    %1092 = vmatprep.subr.bf16.mxu0 %v928
    %1093 = vmatpush1.bf16.msra.mxu0 %v927
    %1094 = vmatprep.subr.bf16.mxu0 %v932
    %1095 = vmatpush1.bf16.msra.mxu0 %v931
    %1096 = vmatprep.subr.bf16.mxu0 %v936
    %1097 = vmatpush1.bf16.msra.mxu0 %v935
    %1098 = vmatprep.subr.bf16.mxu0 %v940
    %1099 = vmatpush1.bf16.msra.mxu0 %v939
    %1100 = vmatprep.subr.bf16.mxu0 %v944
    %1101 = vmatpush1.bf16.msra.mxu0 %v943
    %1102 = vmatprep.subr.bf16.mxu0 %v948
    %1103 = vmatpush1.bf16.msra.mxu0 %v947
    %1104 = vmatprep.subr.bf16.mxu0 %v952
    %1105 = vmatpush1.bf16.msra.mxu0 %v951
    %1106 = vmatprep.subr.bf16.mxu0 %v956
    %1107 = vmatpush1.bf16.msra.mxu0 %v955
    %1108 = vmatprep.subr.bf16.mxu0 %v960
    %1109 = vmatpush1.bf16.msra.mxu0 %v959
    %1110 = vmatprep.subr.bf16.mxu0 %v964
    %1111 = vmatpush1.bf16.msra.mxu0 %v963
    %1112 = vmatprep.subr.bf16.mxu0 %v968
    %1113 = vmatpush1.bf16.msra.mxu0 %v967
    %1114 = vmatprep.subr.bf16.mxu0 %v972
    %1115 = vmatpush1.bf16.msra.mxu0 %v971
    %1116 = vmatprep.subr.bf16.mxu0 %v976
    %1117 = vmatpush1.bf16.msra.mxu0 %v975
    %1118 = vmatprep.subr.bf16.mxu0 %v980
    %1119 = vmatpush1.bf16.msra.mxu0 %v979
    %1120 = vmatprep.mubr.bf16.mxu0 %v703
    %1121 = vmatmul.mubr.bf16.gmra.mrb[0].mxu0 %v702
    %v1122 = vpop.f32.mrb[0].mxu0
    %v1123 = vadd.f32 %v716, %v1122
    %v1124 = vpop.f32.mrb[0].mxu0
    %v1125 = vadd.f32 %v720, %v1124
    %v1126 = vpop.f32.mrb[0].mxu0
    %v1127 = vadd.f32 %v716, %v1126
    %v1128 = vpop.f32.mrb[0].mxu0
    %v1129 = vadd.f32 %v720, %v1128
    %1130 = vdwg.mxu0
    %v1131 = vadd.f32 %v1080, %v1084
    %v1132 = vrot.slane %v1131, 4
    %v1133 = vadd.f32 %v1131, %v1132
    %v1134 = vrot.slane %v1133, 2
    %v1135 = vadd.f32 %v1133, %v1134
    %v1136 = vrot.slane %v1135, 1
    %v1137 = vadd.f32 %v1135, %v1136
    %v1138 = vadd.f32 %v1082, %v1086
    %v1139 = vrot.slane %v1138, 4
    %v1140 = vadd.f32 %v1138, %v1139
    %v1141 = vrot.slane %v1140, 2
    %v1142 = vadd.f32 %v1140, %v1141
    %v1143 = vrot.slane %v1142, 1
    %v1144 = vadd.f32 %v1142, %v1143
    %v1145 = vadd.f32 %v1123, %v1127
    %v1146 = vrot.slane %v1145, 4
    %v1147 = vadd.f32 %v1145, %v1146
    %v1148 = vrot.slane %v1147, 2
    %v1149 = vadd.f32 %v1147, %v1148
    %v1150 = vrot.slane %v1149, 1
    %v1151 = vadd.f32 %v1149, %v1150
    %v1152 = vadd.f32 %v1125, %v1129
    %v1153 = vrot.slane %v1152, 4
    %v1154 = vadd.f32 %v1152, %v1153
    %v1155 = vrot.slane %v1154, 2
    %v1156 = vadd.f32 %v1154, %v1155
    %v1157 = vrot.slane %v1156, 1
    %v1158 = vadd.f32 %v1156, %v1157
    %v1159 = vmul.f32 %v1137, %v557
    %v1160 = vmul.f32 %v1144, %v557
    %v1161 = vmul.f32 %v1151, %v557
    %v1162 = vmul.f32 %v1158, %v557
    %v1163 = vmul.f32 %v1080, %v1080
    %v1164 = vmul.f32 %v1082, %v1082
    %v1165 = vmul.f32 %v1123, %v1123
    %v1166 = vmul.f32 %v1125, %v1125
    %v1167 = vmul.f32 %v1084, %v1084
    %v1168 = vmul.f32 %v1086, %v1086
    %v1169 = vmul.f32 %v1127, %v1127
    %v1170 = vmul.f32 %v1129, %v1129
    %v1171 = vadd.f32 %v1163, %v1167
    %v1172 = vrot.slane %v1171, 4
    %v1173 = vadd.f32 %v1171, %v1172
    %v1174 = vrot.slane %v1173, 2
    %v1175 = vadd.f32 %v1173, %v1174
    %v1176 = vrot.slane %v1175, 1
    %v1177 = vadd.f32 %v1175, %v1176
    %v1178 = vadd.f32 %v1164, %v1168
    %v1179 = vrot.slane %v1178, 4
    %v1180 = vadd.f32 %v1178, %v1179
    %v1181 = vrot.slane %v1180, 2
    %v1182 = vadd.f32 %v1180, %v1181
    %v1183 = vrot.slane %v1182, 1
    %v1184 = vadd.f32 %v1182, %v1183
    %v1185 = vadd.f32 %v1165, %v1169
    %v1186 = vrot.slane %v1185, 4
    %v1187 = vadd.f32 %v1185, %v1186
    %v1188 = vrot.slane %v1187, 2
    %v1189 = vadd.f32 %v1187, %v1188
    %v1190 = vrot.slane %v1189, 1
    %v1191 = vadd.f32 %v1189, %v1190
    %v1192 = vadd.f32 %v1166, %v1170
    %v1193 = vrot.slane %v1192, 4
    %v1194 = vadd.f32 %v1192, %v1193
    %v1195 = vrot.slane %v1194, 2
    %v1196 = vadd.f32 %v1194, %v1195
    %v1197 = vrot.slane %v1196, 1
    %v1198 = vadd.f32 %v1196, %v1197
    %v1199 = vmul.f32 %v1177, %v557
    %v1200 = vmul.f32 %v1184, %v557
    %v1201 = vmul.f32 %v1191, %v557
    %v1202 = vmul.f32 %v1198, %v557
    %v1203 = vmul.f32 %v1159, %v1159
    %v1204 = vmul.f32 %v1160, %v1160
    %v1205 = vmul.f32 %v1161, %v1161
    %v1206 = vmul.f32 %v1162, %v1162
    %v1207 = vsub.f32 %v1199, %v1203
    %v1208 = vsub.f32 %v1200, %v1204
    %v1209 = vsub.f32 %v1201, %v1205
    %v1210 = vsub.f32 %v1202, %v1206
    %v1211 = vsub.f32 %v1080, %v1159
    %v1212 = vsub.f32 %v1082, %v1160
    %v1213 = vsub.f32 %v1123, %v1161
    %v1214 = vsub.f32 %v1125, %v1162
    %v1215 = vsub.f32 %v1084, %v1159
    %v1216 = vsub.f32 %v1086, %v1160
    %v1217 = vsub.f32 %v1127, %v1161
    %v1218 = vsub.f32 %v1129, %v1162
    %v1219 = vadd.f32 %v1207, 0.8
    %v1220 = vadd.f32 %v1208, 0.8
    %v1221 = vadd.f32 %v1209, 0.8
    %v1222 = vadd.f32 %v1210, 0.8
    %v1223 = vrsqrt.pop %v1219
    %v1224 = vrsqrt.pop %v1220
    %v1225 = vrsqrt.pop %v1221
    %v1226 = vrsqrt.pop %v1222
    %v1227 = vmul.f32 %v1211, %v1223
    %v1228 = vmul.f32 %v1212, %v1224
    %v1229 = vmul.f32 %v1213, %v1225
    %v1230 = vmul.f32 %v1214, %v1226
    %v1231 = vmul.f32 %v1215, %v1223
    %v1232 = vmul.f32 %v1216, %v1224
    %v1233 = vmul.f32 %v1217, %v1225
    %v1234 = vmul.f32 %v1218, %v1226
    %v1236 = vlaneseq
    %v1237 = vshrl.u32 %v1236, 7
    %v1238 = vsub.s32 0, %v1237
    %v1239 = vrot.slane %v190, %v1238
    %v1240 = vlaneseq
    %v1241 = vshrl.u32 %v1240, 7
    %v1242 = vsub.s32 1, %v1241
    %v1243 = vrot.slane %v190, %v1242
    %v1244 = vlaneseq
    %v1245 = vshrl.u32 %v1244, 7
    %v1246 = vsub.s32 2, %v1245
    %v1247 = vrot.slane %v190, %v1246
    %v1248 = vlaneseq
    %v1249 = vshrl.u32 %v1248, 7
    %v1250 = vsub.s32 3, %v1249
    %v1251 = vrot.slane %v190, %v1250
    %v1256 = vmul.f32 %v1227, %v1239
    %v1257 = vmul.f32 %v1228, %v1243
    %v1258 = vmul.f32 %v1229, %v1247
    %v1259 = vmul.f32 %v1230, %v1251
    %v1260 = vmul.f32 %v1231, %v1239
    %v1261 = vmul.f32 %v1232, %v1243
    %v1262 = vmul.f32 %v1233, %v1247
    %v1263 = vmul.f32 %v1234, %v1251
    %v1265 = vlaneseq
    %v1266 = vshrl.u32 %v1265, 7
    %v1267 = vsub.s32 0, %v1266
    %v1268 = vrot.slane %v192, %v1267
    %v1269 = vlaneseq
    %v1270 = vshrl.u32 %v1269, 7
    %v1271 = vsub.s32 1, %v1270
    %v1272 = vrot.slane %v192, %v1271
    %v1273 = vlaneseq
    %v1274 = vshrl.u32 %v1273, 7
    %v1275 = vsub.s32 2, %v1274
    %v1276 = vrot.slane %v192, %v1275
    %v1277 = vlaneseq
    %v1278 = vshrl.u32 %v1277, 7
    %v1279 = vsub.s32 3, %v1278
    %v1280 = vrot.slane %v192, %v1279
    %v1285 = vadd.f32 %v1256, %v1268
    %v1286 = vadd.f32 %v1257, %v1272
    %v1287 = vadd.f32 %v1258, %v1276
    %v1288 = vadd.f32 %v1259, %v1280
    %v1289 = vadd.f32 %v1260, %v1268
    %v1290 = vadd.f32 %v1261, %v1272
    %v1291 = vadd.f32 %v1262, %v1276
    %v1292 = vadd.f32 %v1263, %v1280
    %vm1293 = vcmp.gt.f32.partialorder %v1285, 0.0
    %vm1294 = vcmp.gt.f32.partialorder %v1286, 0.0
    %vm1295 = vcmp.gt.f32.partialorder %v1287, 0.0
    %vm1296 = vcmp.gt.f32.partialorder %v1288, 0.0
    %vm1297 = vcmp.gt.f32.partialorder %v1289, 0.0
    %vm1298 = vcmp.gt.f32.partialorder %v1290, 0.0
    %vm1299 = vcmp.gt.f32.partialorder %v1291, 0.0
    %vm1300 = vcmp.gt.f32.partialorder %v1292, 0.0
    %v1301 = vmul.f32 %v1285, 0.2
    %v1302 = vmul.f32 %v1286, 0.2
    %v1303 = vmul.f32 %v1287, 0.2
    %v1304 = vmul.f32 %v1288, 0.2
    %v1305 = vmul.f32 %v1289, 0.2
    %v1306 = vmul.f32 %v1290, 0.2
    %v1307 = vmul.f32 %v1291, 0.2
    %v1308 = vmul.f32 %v1292, 0.2
    %v1309 = vsel %vm1293, %v1285, %v1301
    %v1310 = vsel %vm1294, %v1286, %v1302
    %v1311 = vsel %vm1295, %v1287, %v1303
    %v1312 = vsel %vm1296, %v1288, %v1304
    %v1313 = vsel %vm1297, %v1289, %v1305
    %v1314 = vsel %vm1298, %v1290, %v1306
    %v1315 = vsel %vm1299, %v1291, %v1307
    %v1316 = vsel %vm1300, %v1292, %v1308
    %s1317 = smul.u32 4, 64
    %s1318 = smul.u32 %s1317, 8
    %s1319 = sshll.u32 %s1318, 4
    %1320 = dma.done [#allocation4], %s1319
    %v1321 = vld [vmem:[#allocation2] sm:$0xff]
    %v1322 = vld [vmem:[#allocation2 + $0x8] sm:$0xff]
    %v1323 = vld [vmem:[#allocation2 + $0x10] sm:$0xff]
    %v1324 = vld [vmem:[#allocation2 + $0x18] sm:$0xff]
    %v1325 = vld [vmem:[#allocation2 + $0x20] sm:$0xff]
    %v1326 = vld [vmem:[#allocation2 + $0x28] sm:$0xff]
    %v1327 = vld [vmem:[#allocation2 + $0x30] sm:$0xff]
    %v1328 = vld [vmem:[#allocation2 + $0x38] sm:$0xff]
    %v1329 = vld [vmem:[#allocation2 + $0x40] sm:$0xff]
    %v1330 = vld [vmem:[#allocation2 + $0x48] sm:$0xff]
    %v1331 = vld [vmem:[#allocation2 + $0x50] sm:$0xff]
    %v1332 = vld [vmem:[#allocation2 + $0x58] sm:$0xff]
    %v1333 = vld [vmem:[#allocation2 + $0x60] sm:$0xff]
    %v1334 = vld [vmem:[#allocation2 + $0x68] sm:$0xff]
    %v1335 = vld [vmem:[#allocation2 + $0x70] sm:$0xff]
    %v1336 = vld [vmem:[#allocation2 + $0x78] sm:$0xff]
    %v1337 = vld [vmem:[#allocation2 + $0x80] sm:$0xff]
    %v1338 = vld [vmem:[#allocation2 + $0x88] sm:$0xff]
    %v1339 = vld [vmem:[#allocation2 + $0x90] sm:$0xff]
    %v1340 = vld [vmem:[#allocation2 + $0x98] sm:$0xff]
    %v1341 = vld [vmem:[#allocation2 + $0xa0] sm:$0xff]
    %v1342 = vld [vmem:[#allocation2 + $0xa8] sm:$0xff]
    %v1343 = vld [vmem:[#allocation2 + $0xb0] sm:$0xff]
    %v1344 = vld [vmem:[#allocation2 + $0xb8] sm:$0xff]
    %v1345 = vld [vmem:[#allocation2 + $0xc0] sm:$0xff]
    %v1346 = vld [vmem:[#allocation2 + $0xc8] sm:$0xff]
    %v1347 = vld [vmem:[#allocation2 + $0xd0] sm:$0xff]
    %v1348 = vld [vmem:[#allocation2 + $0xd8] sm:$0xff]
    %v1349 = vld [vmem:[#allocation2 + $0xe0] sm:$0xff]
    %v1350 = vld [vmem:[#allocation2 + $0xe8] sm:$0xff]
    %v1351 = vld [vmem:[#allocation2 + $0xf0] sm:$0xff]
    %v1352 = vld [vmem:[#allocation2 + $0xf8] sm:$0xff]
    %v1353 = vld [vmem:[#allocation2 + $0x100] sm:$0xff]
    %v1354 = vld [vmem:[#allocation2 + $0x108] sm:$0xff]
    %v1355 = vld [vmem:[#allocation2 + $0x110] sm:$0xff]
    %v1356 = vld [vmem:[#allocation2 + $0x118] sm:$0xff]
    %v1357 = vld [vmem:[#allocation2 + $0x120] sm:$0xff]
    %v1358 = vld [vmem:[#allocation2 + $0x128] sm:$0xff]
    %v1359 = vld [vmem:[#allocation2 + $0x130] sm:$0xff]
    %v1360 = vld [vmem:[#allocation2 + $0x138] sm:$0xff]
    %v1361 = vld [vmem:[#allocation2 + $0x140] sm:$0xff]
    %v1362 = vld [vmem:[#allocation2 + $0x148] sm:$0xff]
    %v1363 = vld [vmem:[#allocation2 + $0x150] sm:$0xff]
    %v1364 = vld [vmem:[#allocation2 + $0x158] sm:$0xff]
    %v1365 = vld [vmem:[#allocation2 + $0x160] sm:$0xff]
    %v1366 = vld [vmem:[#allocation2 + $0x168] sm:$0xff]
    %v1367 = vld [vmem:[#allocation2 + $0x170] sm:$0xff]
    %v1368 = vld [vmem:[#allocation2 + $0x178] sm:$0xff]
    %v1369 = vld [vmem:[#allocation2 + $0x180] sm:$0xff]
    %v1370 = vld [vmem:[#allocation2 + $0x188] sm:$0xff]
    %v1371 = vld [vmem:[#allocation2 + $0x190] sm:$0xff]
    %v1372 = vld [vmem:[#allocation2 + $0x198] sm:$0xff]
    %v1373 = vld [vmem:[#allocation2 + $0x1a0] sm:$0xff]
    %v1374 = vld [vmem:[#allocation2 + $0x1a8] sm:$0xff]
    %v1375 = vld [vmem:[#allocation2 + $0x1b0] sm:$0xff]
    %v1376 = vld [vmem:[#allocation2 + $0x1b8] sm:$0xff]
    %v1377 = vld [vmem:[#allocation2 + $0x1c0] sm:$0xff]
    %v1378 = vld [vmem:[#allocation2 + $0x1c8] sm:$0xff]
    %v1379 = vld [vmem:[#allocation2 + $0x1d0] sm:$0xff]
    %v1380 = vld [vmem:[#allocation2 + $0x1d8] sm:$0xff]
    %v1381 = vld [vmem:[#allocation2 + $0x1e0] sm:$0xff]
    %v1382 = vld [vmem:[#allocation2 + $0x1e8] sm:$0xff]
    %v1383 = vld [vmem:[#allocation2 + $0x1f0] sm:$0xff]
    %v1384 = vld [vmem:[#allocation2 + $0x1f8] sm:$0xff]
    %v1385 = vld [vmem:[#allocation2 + $0x200] sm:$0xff]
    %v1386 = vld [vmem:[#allocation2 + $0x208] sm:$0xff]
    %v1387 = vld [vmem:[#allocation2 + $0x210] sm:$0xff]
    %v1388 = vld [vmem:[#allocation2 + $0x218] sm:$0xff]
    %v1389 = vld [vmem:[#allocation2 + $0x220] sm:$0xff]
    %v1390 = vld [vmem:[#allocation2 + $0x228] sm:$0xff]
    %v1391 = vld [vmem:[#allocation2 + $0x230] sm:$0xff]
    %v1392 = vld [vmem:[#allocation2 + $0x238] sm:$0xff]
    %v1393 = vld [vmem:[#allocation2 + $0x240] sm:$0xff]
    %v1394 = vld [vmem:[#allocation2 + $0x248] sm:$0xff]
    %v1395 = vld [vmem:[#allocation2 + $0x250] sm:$0xff]
    %v1396 = vld [vmem:[#allocation2 + $0x258] sm:$0xff]
    %v1397 = vld [vmem:[#allocation2 + $0x260] sm:$0xff]
    %v1398 = vld [vmem:[#allocation2 + $0x268] sm:$0xff]
    %v1399 = vld [vmem:[#allocation2 + $0x270] sm:$0xff]
    %v1400 = vld [vmem:[#allocation2 + $0x278] sm:$0xff]
    %v1401 = vld [vmem:[#allocation2 + $0x280] sm:$0xff]
    %v1402 = vld [vmem:[#allocation2 + $0x288] sm:$0xff]
    %v1403 = vld [vmem:[#allocation2 + $0x290] sm:$0xff]
    %v1404 = vld [vmem:[#allocation2 + $0x298] sm:$0xff]
    %v1405 = vld [vmem:[#allocation2 + $0x2a0] sm:$0xff]
    %v1406 = vld [vmem:[#allocation2 + $0x2a8] sm:$0xff]
    %v1407 = vld [vmem:[#allocation2 + $0x2b0] sm:$0xff]
    %v1408 = vld [vmem:[#allocation2 + $0x2b8] sm:$0xff]
    %v1409 = vld [vmem:[#allocation2 + $0x2c0] sm:$0xff]
    %v1410 = vld [vmem:[#allocation2 + $0x2c8] sm:$0xff]
    %v1411 = vld [vmem:[#allocation2 + $0x2d0] sm:$0xff]
    %v1412 = vld [vmem:[#allocation2 + $0x2d8] sm:$0xff]
    %v1413 = vld [vmem:[#allocation2 + $0x2e0] sm:$0xff]
    %v1414 = vld [vmem:[#allocation2 + $0x2e8] sm:$0xff]
    %v1415 = vld [vmem:[#allocation2 + $0x2f0] sm:$0xff]
    %v1416 = vld [vmem:[#allocation2 + $0x2f8] sm:$0xff]
    %v1417 = vld [vmem:[#allocation2 + $0x300] sm:$0xff]
    %v1418 = vld [vmem:[#allocation2 + $0x308] sm:$0xff]
    %v1419 = vld [vmem:[#allocation2 + $0x310] sm:$0xff]
    %v1420 = vld [vmem:[#allocation2 + $0x318] sm:$0xff]
    %v1421 = vld [vmem:[#allocation2 + $0x320] sm:$0xff]
    %v1422 = vld [vmem:[#allocation2 + $0x328] sm:$0xff]
    %v1423 = vld [vmem:[#allocation2 + $0x330] sm:$0xff]
    %v1424 = vld [vmem:[#allocation2 + $0x338] sm:$0xff]
    %v1425 = vld [vmem:[#allocation2 + $0x340] sm:$0xff]
    %v1426 = vld [vmem:[#allocation2 + $0x348] sm:$0xff]
    %v1427 = vld [vmem:[#allocation2 + $0x350] sm:$0xff]
    %v1428 = vld [vmem:[#allocation2 + $0x358] sm:$0xff]
    %v1429 = vld [vmem:[#allocation2 + $0x360] sm:$0xff]
    %v1430 = vld [vmem:[#allocation2 + $0x368] sm:$0xff]
    %v1431 = vld [vmem:[#allocation2 + $0x370] sm:$0xff]
    %v1432 = vld [vmem:[#allocation2 + $0x378] sm:$0xff]
    %v1433 = vld [vmem:[#allocation2 + $0x380] sm:$0xff]
    %v1434 = vld [vmem:[#allocation2 + $0x388] sm:$0xff]
    %v1435 = vld [vmem:[#allocation2 + $0x390] sm:$0xff]
    %v1436 = vld [vmem:[#allocation2 + $0x398] sm:$0xff]
    %v1437 = vld [vmem:[#allocation2 + $0x3a0] sm:$0xff]
    %v1438 = vld [vmem:[#allocation2 + $0x3a8] sm:$0xff]
    %v1439 = vld [vmem:[#allocation2 + $0x3b0] sm:$0xff]
    %v1440 = vld [vmem:[#allocation2 + $0x3b8] sm:$0xff]
    %v1441 = vld [vmem:[#allocation2 + $0x3c0] sm:$0xff]
    %v1442 = vld [vmem:[#allocation2 + $0x3c8] sm:$0xff]
    %v1443 = vld [vmem:[#allocation2 + $0x3d0] sm:$0xff]
    %v1444 = vld [vmem:[#allocation2 + $0x3d8] sm:$0xff]
    %v1445 = vld [vmem:[#allocation2 + $0x3e0] sm:$0xff]
    %v1446 = vld [vmem:[#allocation2 + $0x3e8] sm:$0xff]
    %v1447 = vld [vmem:[#allocation2 + $0x3f0] sm:$0xff]
    %v1448 = vld [vmem:[#allocation2 + $0x3f8] sm:$0xff]
    %v1449 = vld [vmem:[#allocation2 + $0x400] sm:$0xff]
    %v1450 = vld [vmem:[#allocation2 + $0x408] sm:$0xff]
    %v1451 = vld [vmem:[#allocation2 + $0x410] sm:$0xff]
    %v1452 = vld [vmem:[#allocation2 + $0x418] sm:$0xff]
    %v1453 = vld [vmem:[#allocation2 + $0x420] sm:$0xff]
    %v1454 = vld [vmem:[#allocation2 + $0x428] sm:$0xff]
    %v1455 = vld [vmem:[#allocation2 + $0x430] sm:$0xff]
    %v1456 = vld [vmem:[#allocation2 + $0x438] sm:$0xff]
    %v1457 = vld [vmem:[#allocation2 + $0x440] sm:$0xff]
    %v1458 = vld [vmem:[#allocation2 + $0x448] sm:$0xff]
    %v1459 = vld [vmem:[#allocation2 + $0x450] sm:$0xff]
    %v1460 = vld [vmem:[#allocation2 + $0x458] sm:$0xff]
    %v1461 = vld [vmem:[#allocation2 + $0x460] sm:$0xff]
    %v1462 = vld [vmem:[#allocation2 + $0x468] sm:$0xff]
    %v1463 = vld [vmem:[#allocation2 + $0x470] sm:$0xff]
    %v1464 = vld [vmem:[#allocation2 + $0x478] sm:$0xff]
    %v1465 = vld [vmem:[#allocation2 + $0x480] sm:$0xff]
    %v1466 = vld [vmem:[#allocation2 + $0x488] sm:$0xff]
    %v1467 = vld [vmem:[#allocation2 + $0x490] sm:$0xff]
    %v1468 = vld [vmem:[#allocation2 + $0x498] sm:$0xff]
    %v1469 = vld [vmem:[#allocation2 + $0x4a0] sm:$0xff]
    %v1470 = vld [vmem:[#allocation2 + $0x4a8] sm:$0xff]
    %v1471 = vld [vmem:[#allocation2 + $0x4b0] sm:$0xff]
    %v1472 = vld [vmem:[#allocation2 + $0x4b8] sm:$0xff]
    %v1473 = vld [vmem:[#allocation2 + $0x4c0] sm:$0xff]
    %v1474 = vld [vmem:[#allocation2 + $0x4c8] sm:$0xff]
    %v1475 = vld [vmem:[#allocation2 + $0x4d0] sm:$0xff]
    %v1476 = vld [vmem:[#allocation2 + $0x4d8] sm:$0xff]
    %v1477 = vld [vmem:[#allocation2 + $0x4e0] sm:$0xff]
    %v1478 = vld [vmem:[#allocation2 + $0x4e8] sm:$0xff]
    %v1479 = vld [vmem:[#allocation2 + $0x4f0] sm:$0xff]
    %v1480 = vld [vmem:[#allocation2 + $0x4f8] sm:$0xff]
    %v1481 = vld [vmem:[#allocation2 + $0x500] sm:$0xff]
    %v1482 = vld [vmem:[#allocation2 + $0x508] sm:$0xff]
    %v1483 = vld [vmem:[#allocation2 + $0x510] sm:$0xff]
    %v1484 = vld [vmem:[#allocation2 + $0x518] sm:$0xff]
    %v1485 = vld [vmem:[#allocation2 + $0x520] sm:$0xff]
    %v1486 = vld [vmem:[#allocation2 + $0x528] sm:$0xff]
    %v1487 = vld [vmem:[#allocation2 + $0x530] sm:$0xff]
    %v1488 = vld [vmem:[#allocation2 + $0x538] sm:$0xff]
    %v1489 = vld [vmem:[#allocation2 + $0x540] sm:$0xff]
    %v1490 = vld [vmem:[#allocation2 + $0x548] sm:$0xff]
    %v1491 = vld [vmem:[#allocation2 + $0x550] sm:$0xff]
    %v1492 = vld [vmem:[#allocation2 + $0x558] sm:$0xff]
    %v1493 = vld [vmem:[#allocation2 + $0x560] sm:$0xff]
    %v1494 = vld [vmem:[#allocation2 + $0x568] sm:$0xff]
    %v1495 = vld [vmem:[#allocation2 + $0x570] sm:$0xff]
    %v1496 = vld [vmem:[#allocation2 + $0x578] sm:$0xff]
    %v1497 = vld [vmem:[#allocation2 + $0x580] sm:$0xff]
    %v1498 = vld [vmem:[#allocation2 + $0x588] sm:$0xff]
    %v1499 = vld [vmem:[#allocation2 + $0x590] sm:$0xff]
    %v1500 = vld [vmem:[#allocation2 + $0x598] sm:$0xff]
    %v1501 = vld [vmem:[#allocation2 + $0x5a0] sm:$0xff]
    %v1502 = vld [vmem:[#allocation2 + $0x5a8] sm:$0xff]
    %v1503 = vld [vmem:[#allocation2 + $0x5b0] sm:$0xff]
    %v1504 = vld [vmem:[#allocation2 + $0x5b8] sm:$0xff]
    %v1505 = vld [vmem:[#allocation2 + $0x5c0] sm:$0xff]
    %v1506 = vld [vmem:[#allocation2 + $0x5c8] sm:$0xff]
    %v1507 = vld [vmem:[#allocation2 + $0x5d0] sm:$0xff]
    %v1508 = vld [vmem:[#allocation2 + $0x5d8] sm:$0xff]
    %v1509 = vld [vmem:[#allocation2 + $0x5e0] sm:$0xff]
    %v1510 = vld [vmem:[#allocation2 + $0x5e8] sm:$0xff]
    %v1511 = vld [vmem:[#allocation2 + $0x5f0] sm:$0xff]
    %v1512 = vld [vmem:[#allocation2 + $0x5f8] sm:$0xff]
    %v1513 = vld [vmem:[#allocation2 + $0x600] sm:$0xff]
    %v1514 = vld [vmem:[#allocation2 + $0x608] sm:$0xff]
    %v1515 = vld [vmem:[#allocation2 + $0x610] sm:$0xff]
    %v1516 = vld [vmem:[#allocation2 + $0x618] sm:$0xff]
    %v1517 = vld [vmem:[#allocation2 + $0x620] sm:$0xff]
    %v1518 = vld [vmem:[#allocation2 + $0x628] sm:$0xff]
    %v1519 = vld [vmem:[#allocation2 + $0x630] sm:$0xff]
    %v1520 = vld [vmem:[#allocation2 + $0x638] sm:$0xff]
    %v1521 = vld [vmem:[#allocation2 + $0x640] sm:$0xff]
    %v1522 = vld [vmem:[#allocation2 + $0x648] sm:$0xff]
    %v1523 = vld [vmem:[#allocation2 + $0x650] sm:$0xff]
    %v1524 = vld [vmem:[#allocation2 + $0x658] sm:$0xff]
    %v1525 = vld [vmem:[#allocation2 + $0x660] sm:$0xff]
    %v1526 = vld [vmem:[#allocation2 + $0x668] sm:$0xff]
    %v1527 = vld [vmem:[#allocation2 + $0x670] sm:$0xff]
    %v1528 = vld [vmem:[#allocation2 + $0x678] sm:$0xff]
    %v1529 = vld [vmem:[#allocation2 + $0x680] sm:$0xff]
    %v1530 = vld [vmem:[#allocation2 + $0x688] sm:$0xff]
    %v1531 = vld [vmem:[#allocation2 + $0x690] sm:$0xff]
    %v1532 = vld [vmem:[#allocation2 + $0x698] sm:$0xff]
    %v1533 = vld [vmem:[#allocation2 + $0x6a0] sm:$0xff]
    %v1534 = vld [vmem:[#allocation2 + $0x6a8] sm:$0xff]
    %v1535 = vld [vmem:[#allocation2 + $0x6b0] sm:$0xff]
    %v1536 = vld [vmem:[#allocation2 + $0x6b8] sm:$0xff]
    %v1537 = vld [vmem:[#allocation2 + $0x6c0] sm:$0xff]
    %v1538 = vld [vmem:[#allocation2 + $0x6c8] sm:$0xff]
    %v1539 = vld [vmem:[#allocation2 + $0x6d0] sm:$0xff]
    %v1540 = vld [vmem:[#allocation2 + $0x6d8] sm:$0xff]
    %v1541 = vld [vmem:[#allocation2 + $0x6e0] sm:$0xff]
    %v1542 = vld [vmem:[#allocation2 + $0x6e8] sm:$0xff]
    %v1543 = vld [vmem:[#allocation2 + $0x6f0] sm:$0xff]
    %v1544 = vld [vmem:[#allocation2 + $0x6f8] sm:$0xff]
    %v1545 = vld [vmem:[#allocation2 + $0x700] sm:$0xff]
    %v1546 = vld [vmem:[#allocation2 + $0x708] sm:$0xff]
    %v1547 = vld [vmem:[#allocation2 + $0x710] sm:$0xff]
    %v1548 = vld [vmem:[#allocation2 + $0x718] sm:$0xff]
    %v1549 = vld [vmem:[#allocation2 + $0x720] sm:$0xff]
    %v1550 = vld [vmem:[#allocation2 + $0x728] sm:$0xff]
    %v1551 = vld [vmem:[#allocation2 + $0x730] sm:$0xff]
    %v1552 = vld [vmem:[#allocation2 + $0x738] sm:$0xff]
    %v1553 = vld [vmem:[#allocation2 + $0x740] sm:$0xff]
    %v1554 = vld [vmem:[#allocation2 + $0x748] sm:$0xff]
    %v1555 = vld [vmem:[#allocation2 + $0x750] sm:$0xff]
    %v1556 = vld [vmem:[#allocation2 + $0x758] sm:$0xff]
    %v1557 = vld [vmem:[#allocation2 + $0x760] sm:$0xff]
    %v1558 = vld [vmem:[#allocation2 + $0x768] sm:$0xff]
    %v1559 = vld [vmem:[#allocation2 + $0x770] sm:$0xff]
    %v1560 = vld [vmem:[#allocation2 + $0x778] sm:$0xff]
    %v1561 = vld [vmem:[#allocation2 + $0x780] sm:$0xff]
    %v1562 = vld [vmem:[#allocation2 + $0x788] sm:$0xff]
    %v1563 = vld [vmem:[#allocation2 + $0x790] sm:$0xff]
    %v1564 = vld [vmem:[#allocation2 + $0x798] sm:$0xff]
    %v1565 = vld [vmem:[#allocation2 + $0x7a0] sm:$0xff]
    %v1566 = vld [vmem:[#allocation2 + $0x7a8] sm:$0xff]
    %v1567 = vld [vmem:[#allocation2 + $0x7b0] sm:$0xff]
    %v1568 = vld [vmem:[#allocation2 + $0x7b8] sm:$0xff]
    %v1569 = vld [vmem:[#allocation2 + $0x7c0] sm:$0xff]
    %v1570 = vld [vmem:[#allocation2 + $0x7c8] sm:$0xff]
    %v1571 = vld [vmem:[#allocation2 + $0x7d0] sm:$0xff]
    %v1572 = vld [vmem:[#allocation2 + $0x7d8] sm:$0xff]
    %v1573 = vld [vmem:[#allocation2 + $0x7e0] sm:$0xff]
    %v1574 = vld [vmem:[#allocation2 + $0x7e8] sm:$0xff]
    %v1575 = vld [vmem:[#allocation2 + $0x7f0] sm:$0xff]
    %v1576 = vld [vmem:[#allocation2 + $0x7f8] sm:$0xff]
    %v1577 = vpack.c.bf16 %v1313, %v1309
    %v1578 = vpack.c.bf16 %v1314, %v1310
    %v1579 = vpack.c.bf16 %v1315, %v1311
    %v1580 = vpack.c.bf16 %v1316, %v1312
    %v1582 = vlaneseq
    %v1583 = vshrl.u32 %v1582, 7
    %v1584 = vsub.s32 0, %v1583
    %v1585 = vrot.slane %v196, %v1584
    %v1586 = vlaneseq
    %v1587 = vshrl.u32 %v1586, 7
    %v1588 = vsub.s32 1, %v1587
    %v1589 = vrot.slane %v196, %v1588
    %v1590 = vlaneseq
    %v1591 = vshrl.u32 %v1590, 7
    %v1592 = vsub.s32 2, %v1591
    %v1593 = vrot.slane %v196, %v1592
    %v1594 = vlaneseq
    %v1595 = vshrl.u32 %v1594, 7
    %v1596 = vsub.s32 3, %v1595
    %v1597 = vrot.slane %v196, %v1596
    %v1598 = vlaneseq
    %v1599 = vshrl.u32 %v1598, 7
    %v1600 = vsub.s32 4, %v1599
    %v1601 = vrot.slane %v196, %v1600
    %v1602 = vlaneseq
    %v1603 = vshrl.u32 %v1602, 7
    %v1604 = vsub.s32 5, %v1603
    %v1605 = vrot.slane %v196, %v1604
    %v1606 = vlaneseq
    %v1607 = vshrl.u32 %v1606, 7
    %v1608 = vsub.s32 6, %v1607
    %v1609 = vrot.slane %v196, %v1608
    %v1610 = vlaneseq
    %v1611 = vshrl.u32 %v1610, 7
    %v1612 = vsub.s32 7, %v1611
    %v1613 = vrot.slane %v196, %v1612
    %1622 = vmatprep.subr.bf16.mxu0 %v1322
    %1623 = vmatpush1.bf16.msra.mxu0 %v1321
    %1624 = vmatprep.subr.bf16.mxu0 %v1330
    %1625 = vmatpush1.bf16.msra.mxu0 %v1329
    %1626 = vmatprep.subr.bf16.mxu0 %v1338
    %1627 = vmatpush1.bf16.msra.mxu0 %v1337
    %1628 = vmatprep.subr.bf16.mxu0 %v1346
    %1629 = vmatpush1.bf16.msra.mxu0 %v1345
    %1630 = vmatprep.subr.bf16.mxu0 %v1354
    %1631 = vmatpush1.bf16.msra.mxu0 %v1353
    %1632 = vmatprep.subr.bf16.mxu0 %v1362
    %1633 = vmatpush1.bf16.msra.mxu0 %v1361
    %1634 = vmatprep.subr.bf16.mxu0 %v1370
    %1635 = vmatpush1.bf16.msra.mxu0 %v1369
    %1636 = vmatprep.subr.bf16.mxu0 %v1378
    %1637 = vmatpush1.bf16.msra.mxu0 %v1377
    %1638 = vmatprep.subr.bf16.mxu0 %v1386
    %1639 = vmatpush1.bf16.msra.mxu0 %v1385
    %1640 = vmatprep.subr.bf16.mxu0 %v1394
    %1641 = vmatpush1.bf16.msra.mxu0 %v1393
    %1642 = vmatprep.subr.bf16.mxu0 %v1402
    %1643 = vmatpush1.bf16.msra.mxu0 %v1401
    %1644 = vmatprep.subr.bf16.mxu0 %v1410
    %1645 = vmatpush1.bf16.msra.mxu0 %v1409
    %1646 = vmatprep.subr.bf16.mxu0 %v1418
    %1647 = vmatpush1.bf16.msra.mxu0 %v1417
    %1648 = vmatprep.subr.bf16.mxu0 %v1426
    %1649 = vmatpush1.bf16.msra.mxu0 %v1425
    %1650 = vmatprep.subr.bf16.mxu0 %v1434
    %1651 = vmatpush1.bf16.msra.mxu0 %v1433
    %1652 = vmatprep.subr.bf16.mxu0 %v1442
    %1653 = vmatpush1.bf16.msra.mxu0 %v1441
    %1654 = vmatprep.mubr.bf16.mxu0 %v1578
    %1655 = vmatmul.mubr.bf16.gmra.mrb[0].mxu0 %v1577
    %v1656 = vpop.f32.mrb[0].mxu0
    %v1657 = vadd.f32 %v1585, %v1656
    %v1658 = vpop.f32.mrb[0].mxu0
    %v1659 = vadd.f32 %v1589, %v1658
    %v1660 = vpop.f32.mrb[0].mxu0
    %v1661 = vadd.f32 %v1585, %v1660
    %v1662 = vpop.f32.mrb[0].mxu0
    %v1663 = vadd.f32 %v1589, %v1662
    %1664 = vdwg.mxu0
    %1665 = vmatprep.subr.bf16.mxu0 %v1450
    %1666 = vmatpush1.bf16.msra.mxu0 %v1449
    %1667 = vmatprep.subr.bf16.mxu0 %v1458
    %1668 = vmatpush1.bf16.msra.mxu0 %v1457
    %1669 = vmatprep.subr.bf16.mxu0 %v1466
    %1670 = vmatpush1.bf16.msra.mxu0 %v1465
    %1671 = vmatprep.subr.bf16.mxu0 %v1474
    %1672 = vmatpush1.bf16.msra.mxu0 %v1473
    %1673 = vmatprep.subr.bf16.mxu0 %v1482
    %1674 = vmatpush1.bf16.msra.mxu0 %v1481
    %1675 = vmatprep.subr.bf16.mxu0 %v1490
    %1676 = vmatpush1.bf16.msra.mxu0 %v1489
    %1677 = vmatprep.subr.bf16.mxu0 %v1498
    %1678 = vmatpush1.bf16.msra.mxu0 %v1497
    %1679 = vmatprep.subr.bf16.mxu0 %v1506
    %1680 = vmatpush1.bf16.msra.mxu0 %v1505
    %1681 = vmatprep.subr.bf16.mxu0 %v1514
    %1682 = vmatpush1.bf16.msra.mxu0 %v1513
    %1683 = vmatprep.subr.bf16.mxu0 %v1522
    %1684 = vmatpush1.bf16.msra.mxu0 %v1521
    %1685 = vmatprep.subr.bf16.mxu0 %v1530
    %1686 = vmatpush1.bf16.msra.mxu0 %v1529
    %1687 = vmatprep.subr.bf16.mxu0 %v1538
    %1688 = vmatpush1.bf16.msra.mxu0 %v1537
    %1689 = vmatprep.subr.bf16.mxu0 %v1546
    %1690 = vmatpush1.bf16.msra.mxu0 %v1545
    %1691 = vmatprep.subr.bf16.mxu0 %v1554
    %1692 = vmatpush1.bf16.msra.mxu0 %v1553
    %1693 = vmatprep.subr.bf16.mxu0 %v1562
    %1694 = vmatpush1.bf16.msra.mxu0 %v1561
    %1695 = vmatprep.subr.bf16.mxu0 %v1570
    %1696 = vmatpush1.bf16.msra.mxu0 %v1569
    %1697 = vmatprep.mubr.bf16.mxu0 %v1580
    %1698 = vmatmul.mubr.bf16.gmra.mrb[0].mxu0 %v1579
    %v1699 = vpop.f32.mrb[0].mxu0
    %v1700 = vadd.f32 %v1657, %v1699
    %v1701 = vpop.f32.mrb[0].mxu0
    %v1702 = vadd.f32 %v1659, %v1701
    %v1703 = vpop.f32.mrb[0].mxu0
    %v1704 = vadd.f32 %v1661, %v1703
    %v1705 = vpop.f32.mrb[0].mxu0
    %v1706 = vadd.f32 %v1663, %v1705
    %1707 = vdwg.mxu0
    %1708 = vmatprep.subr.bf16.mxu0 %v1324
    %1709 = vmatpush1.bf16.msra.mxu0 %v1323
    %1710 = vmatprep.subr.bf16.mxu0 %v1332
    %1711 = vmatpush1.bf16.msra.mxu0 %v1331
    %1712 = vmatprep.subr.bf16.mxu0 %v1340
    %1713 = vmatpush1.bf16.msra.mxu0 %v1339
    %1714 = vmatprep.subr.bf16.mxu0 %v1348
    %1715 = vmatpush1.bf16.msra.mxu0 %v1347
    %1716 = vmatprep.subr.bf16.mxu0 %v1356
    %1717 = vmatpush1.bf16.msra.mxu0 %v1355
    %1718 = vmatprep.subr.bf16.mxu0 %v1364
    %1719 = vmatpush1.bf16.msra.mxu0 %v1363
    %1720 = vmatprep.subr.bf16.mxu0 %v1372
    %1721 = vmatpush1.bf16.msra.mxu0 %v1371
    %1722 = vmatprep.subr.bf16.mxu0 %v1380
    %1723 = vmatpush1.bf16.msra.mxu0 %v1379
    %1724 = vmatprep.subr.bf16.mxu0 %v1388
    %1725 = vmatpush1.bf16.msra.mxu0 %v1387
    %1726 = vmatprep.subr.bf16.mxu0 %v1396
    %1727 = vmatpush1.bf16.msra.mxu0 %v1395
    %1728 = vmatprep.subr.bf16.mxu0 %v1404
    %1729 = vmatpush1.bf16.msra.mxu0 %v1403
    %1730 = vmatprep.subr.bf16.mxu0 %v1412
    %1731 = vmatpush1.bf16.msra.mxu0 %v1411
    %1732 = vmatprep.subr.bf16.mxu0 %v1420
    %1733 = vmatpush1.bf16.msra.mxu0 %v1419
    %1734 = vmatprep.subr.bf16.mxu0 %v1428
    %1735 = vmatpush1.bf16.msra.mxu0 %v1427
    %1736 = vmatprep.subr.bf16.mxu0 %v1436
    %1737 = vmatpush1.bf16.msra.mxu0 %v1435
    %1738 = vmatprep.subr.bf16.mxu0 %v1444
    %1739 = vmatpush1.bf16.msra.mxu0 %v1443
    %1740 = vmatprep.mubr.bf16.mxu0 %v1578
    %1741 = vmatmul.mubr.bf16.gmra.mrb[0].mxu0 %v1577
    %v1742 = vpop.f32.mrb[0].mxu0
    %v1743 = vadd.f32 %v1593, %v1742
    %v1744 = vpop.f32.mrb[0].mxu0
    %v1745 = vadd.f32 %v1597, %v1744
    %v1746 = vpop.f32.mrb[0].mxu0
    %v1747 = vadd.f32 %v1593, %v1746
    %v1748 = vpop.f32.mrb[0].mxu0
    %v1749 = vadd.f32 %v1597, %v1748
    %1750 = vdwg.mxu0
    %1751 = vmatprep.subr.bf16.mxu0 %v1452
    %1752 = vmatpush1.bf16.msra.mxu0 %v1451
    %1753 = vmatprep.subr.bf16.mxu0 %v1460
    %1754 = vmatpush1.bf16.msra.mxu0 %v1459
    %1755 = vmatprep.subr.bf16.mxu0 %v1468
    %1756 = vmatpush1.bf16.msra.mxu0 %v1467
    %1757 = vmatprep.subr.bf16.mxu0 %v1476
    %1758 = vmatpush1.bf16.msra.mxu0 %v1475
    %1759 = vmatprep.subr.bf16.mxu0 %v1484
    %1760 = vmatpush1.bf16.msra.mxu0 %v1483
    %1761 = vmatprep.subr.bf16.mxu0 %v1492
    %1762 = vmatpush1.bf16.msra.mxu0 %v1491
    %1763 = vmatprep.subr.bf16.mxu0 %v1500
    %1764 = vmatpush1.bf16.msra.mxu0 %v1499
    %1765 = vmatprep.subr.bf16.mxu0 %v1508
    %1766 = vmatpush1.bf16.msra.mxu0 %v1507
    %1767 = vmatprep.subr.bf16.mxu0 %v1516
    %1768 = vmatpush1.bf16.msra.mxu0 %v1515
    %1769 = vmatprep.subr.bf16.mxu0 %v1524
    %1770 = vmatpush1.bf16.msra.mxu0 %v1523
    %1771 = vmatprep.subr.bf16.mxu0 %v1532
    %1772 = vmatpush1.bf16.msra.mxu0 %v1531
    %1773 = vmatprep.subr.bf16.mxu0 %v1540
    %1774 = vmatpush1.bf16.msra.mxu0 %v1539
    %1775 = vmatprep.subr.bf16.mxu0 %v1548
    %1776 = vmatpush1.bf16.msra.mxu0 %v1547
    %1777 = vmatprep.subr.bf16.mxu0 %v1556
    %1778 = vmatpush1.bf16.msra.mxu0 %v1555
    %1779 = vmatprep.subr.bf16.mxu0 %v1564
    %1780 = vmatpush1.bf16.msra.mxu0 %v1563
    %1781 = vmatprep.subr.bf16.mxu0 %v1572
    %1782 = vmatpush1.bf16.msra.mxu0 %v1571
    %1783 = vmatprep.mubr.bf16.mxu0 %v1580
    %1784 = vmatmul.mubr.bf16.gmra.mrb[0].mxu0 %v1579
    %v1785 = vpop.f32.mrb[0].mxu0
    %v1786 = vadd.f32 %v1743, %v1785
    %v1787 = vpop.f32.mrb[0].mxu0
    %v1788 = vadd.f32 %v1745, %v1787
    %v1789 = vpop.f32.mrb[0].mxu0
    %v1790 = vadd.f32 %v1747, %v1789
    %v1791 = vpop.f32.mrb[0].mxu0
    %v1792 = vadd.f32 %v1749, %v1791
    %1793 = vdwg.mxu0
    %1794 = vmatprep.subr.bf16.mxu0 %v1326
    %1795 = vmatpush1.bf16.msra.mxu0 %v1325
    %1796 = vmatprep.subr.bf16.mxu0 %v1334
    %1797 = vmatpush1.bf16.msra.mxu0 %v1333
    %1798 = vmatprep.subr.bf16.mxu0 %v1342
    %1799 = vmatpush1.bf16.msra.mxu0 %v1341
    %1800 = vmatprep.subr.bf16.mxu0 %v1350
    %1801 = vmatpush1.bf16.msra.mxu0 %v1349
    %1802 = vmatprep.subr.bf16.mxu0 %v1358
    %1803 = vmatpush1.bf16.msra.mxu0 %v1357
    %1804 = vmatprep.subr.bf16.mxu0 %v1366
    %1805 = vmatpush1.bf16.msra.mxu0 %v1365
    %1806 = vmatprep.subr.bf16.mxu0 %v1374
    %1807 = vmatpush1.bf16.msra.mxu0 %v1373
    %1808 = vmatprep.subr.bf16.mxu0 %v1382
    %1809 = vmatpush1.bf16.msra.mxu0 %v1381
    %1810 = vmatprep.subr.bf16.mxu0 %v1390
    %1811 = vmatpush1.bf16.msra.mxu0 %v1389
    %1812 = vmatprep.subr.bf16.mxu0 %v1398
    %1813 = vmatpush1.bf16.msra.mxu0 %v1397
    %1814 = vmatprep.subr.bf16.mxu0 %v1406
    %1815 = vmatpush1.bf16.msra.mxu0 %v1405
    %1816 = vmatprep.subr.bf16.mxu0 %v1414
    %1817 = vmatpush1.bf16.msra.mxu0 %v1413
    %1818 = vmatprep.subr.bf16.mxu0 %v1422
    %1819 = vmatpush1.bf16.msra.mxu0 %v1421
    %1820 = vmatprep.subr.bf16.mxu0 %v1430
    %1821 = vmatpush1.bf16.msra.mxu0 %v1429
    %1822 = vmatprep.subr.bf16.mxu0 %v1438
    %1823 = vmatpush1.bf16.msra.mxu0 %v1437
    %1824 = vmatprep.subr.bf16.mxu0 %v1446
    %1825 = vmatpush1.bf16.msra.mxu0 %v1445
    %1826 = vmatprep.mubr.bf16.mxu0 %v1578
    %1827 = vmatmul.mubr.bf16.gmra.mrb[0].mxu0 %v1577
    %v1828 = vpop.f32.mrb[0].mxu0
    %v1829 = vadd.f32 %v1601, %v1828
    %v1830 = vpop.f32.mrb[0].mxu0
    %v1831 = vadd.f32 %v1605, %v1830
    %v1832 = vpop.f32.mrb[0].mxu0
    %v1833 = vadd.f32 %v1601, %v1832
    %v1834 = vpop.f32.mrb[0].mxu0
    %v1835 = vadd.f32 %v1605, %v1834
    %1836 = vdwg.mxu0
    %1837 = vmatprep.subr.bf16.mxu0 %v1454
    %1838 = vmatpush1.bf16.msra.mxu0 %v1453
    %1839 = vmatprep.subr.bf16.mxu0 %v1462
    %1840 = vmatpush1.bf16.msra.mxu0 %v1461
    %1841 = vmatprep.subr.bf16.mxu0 %v1470
    %1842 = vmatpush1.bf16.msra.mxu0 %v1469
    %1843 = vmatprep.subr.bf16.mxu0 %v1478
    %1844 = vmatpush1.bf16.msra.mxu0 %v1477
    %1845 = vmatprep.subr.bf16.mxu0 %v1486
    %1846 = vmatpush1.bf16.msra.mxu0 %v1485
    %1847 = vmatprep.subr.bf16.mxu0 %v1494
    %1848 = vmatpush1.bf16.msra.mxu0 %v1493
    %1849 = vmatprep.subr.bf16.mxu0 %v1502
    %1850 = vmatpush1.bf16.msra.mxu0 %v1501
    %1851 = vmatprep.subr.bf16.mxu0 %v1510
    %1852 = vmatpush1.bf16.msra.mxu0 %v1509
    %1853 = vmatprep.subr.bf16.mxu0 %v1518
    %1854 = vmatpush1.bf16.msra.mxu0 %v1517
    %1855 = vmatprep.subr.bf16.mxu0 %v1526
    %1856 = vmatpush1.bf16.msra.mxu0 %v1525
    %1857 = vmatprep.subr.bf16.mxu0 %v1534
    %1858 = vmatpush1.bf16.msra.mxu0 %v1533
    %1859 = vmatprep.subr.bf16.mxu0 %v1542
    %1860 = vmatpush1.bf16.msra.mxu0 %v1541
    %1861 = vmatprep.subr.bf16.mxu0 %v1550
    %1862 = vmatpush1.bf16.msra.mxu0 %v1549
    %1863 = vmatprep.subr.bf16.mxu0 %v1558
    %1864 = vmatpush1.bf16.msra.mxu0 %v1557
    %1865 = vmatprep.subr.bf16.mxu0 %v1566
    %1866 = vmatpush1.bf16.msra.mxu0 %v1565
    %1867 = vmatprep.subr.bf16.mxu0 %v1574
    %1868 = vmatpush1.bf16.msra.mxu0 %v1573
    %1869 = vmatprep.mubr.bf16.mxu0 %v1580
    %1870 = vmatmul.mubr.bf16.gmra.mrb[0].mxu0 %v1579
    %v1871 = vpop.f32.mrb[0].mxu0
    %v1872 = vadd.f32 %v1829, %v1871
    %v1873 = vpop.f32.mrb[0].mxu0
    %v1874 = vadd.f32 %v1831, %v1873
    %v1875 = vpop.f32.mrb[0].mxu0
    %v1876 = vadd.f32 %v1833, %v1875
    %v1877 = vpop.f32.mrb[0].mxu0
    %v1878 = vadd.f32 %v1835, %v1877
    %1879 = vdwg.mxu0
    %1880 = vmatprep.subr.bf16.mxu0 %v1328
    %1881 = vmatpush1.bf16.msra.mxu0 %v1327
    %1882 = vmatprep.subr.bf16.mxu0 %v1336
    %1883 = vmatpush1.bf16.msra.mxu0 %v1335
    %1884 = vmatprep.subr.bf16.mxu0 %v1344
    %1885 = vmatpush1.bf16.msra.mxu0 %v1343
    %1886 = vmatprep.subr.bf16.mxu0 %v1352
    %1887 = vmatpush1.bf16.msra.mxu0 %v1351
    %1888 = vmatprep.subr.bf16.mxu0 %v1360
    %1889 = vmatpush1.bf16.msra.mxu0 %v1359
    %1890 = vmatprep.subr.bf16.mxu0 %v1368
    %1891 = vmatpush1.bf16.msra.mxu0 %v1367
    %1892 = vmatprep.subr.bf16.mxu0 %v1376
    %1893 = vmatpush1.bf16.msra.mxu0 %v1375
    %1894 = vmatprep.subr.bf16.mxu0 %v1384
    %1895 = vmatpush1.bf16.msra.mxu0 %v1383
    %1896 = vmatprep.subr.bf16.mxu0 %v1392
    %1897 = vmatpush1.bf16.msra.mxu0 %v1391
    %1898 = vmatprep.subr.bf16.mxu0 %v1400
    %1899 = vmatpush1.bf16.msra.mxu0 %v1399
    %1900 = vmatprep.subr.bf16.mxu0 %v1408
    %1901 = vmatpush1.bf16.msra.mxu0 %v1407
    %1902 = vmatprep.subr.bf16.mxu0 %v1416
    %1903 = vmatpush1.bf16.msra.mxu0 %v1415
    %1904 = vmatprep.subr.bf16.mxu0 %v1424
    %1905 = vmatpush1.bf16.msra.mxu0 %v1423
    %1906 = vmatprep.subr.bf16.mxu0 %v1432
    %1907 = vmatpush1.bf16.msra.mxu0 %v1431
    %1908 = vmatprep.subr.bf16.mxu0 %v1440
    %1909 = vmatpush1.bf16.msra.mxu0 %v1439
    %1910 = vmatprep.subr.bf16.mxu0 %v1448
    %1911 = vmatpush1.bf16.msra.mxu0 %v1447
    %1912 = vmatprep.mubr.bf16.mxu0 %v1578
    %1913 = vmatmul.mubr.bf16.gmra.mrb[0].mxu0 %v1577
    %v1914 = vpop.f32.mrb[0].mxu0
    %v1915 = vadd.f32 %v1609, %v1914
    %v1916 = vpop.f32.mrb[0].mxu0
    %v1917 = vadd.f32 %v1613, %v1916
    %v1918 = vpop.f32.mrb[0].mxu0
    %v1919 = vadd.f32 %v1609, %v1918
    %v1920 = vpop.f32.mrb[0].mxu0
    %v1921 = vadd.f32 %v1613, %v1920
    %1922 = vdwg.mxu0
    %1923 = vmatprep.subr.bf16.mxu0 %v1456
    %1924 = vmatpush1.bf16.msra.mxu0 %v1455
    %1925 = vmatprep.subr.bf16.mxu0 %v1464
    %1926 = vmatpush1.bf16.msra.mxu0 %v1463
    %1927 = vmatprep.subr.bf16.mxu0 %v1472
    %1928 = vmatpush1.bf16.msra.mxu0 %v1471
    %1929 = vmatprep.subr.bf16.mxu0 %v1480
    %1930 = vmatpush1.bf16.msra.mxu0 %v1479
    %1931 = vmatprep.subr.bf16.mxu0 %v1488
    %1932 = vmatpush1.bf16.msra.mxu0 %v1487
    %1933 = vmatprep.subr.bf16.mxu0 %v1496
    %1934 = vmatpush1.bf16.msra.mxu0 %v1495
    %1935 = vmatprep.subr.bf16.mxu0 %v1504
    %1936 = vmatpush1.bf16.msra.mxu0 %v1503
    %1937 = vmatprep.subr.bf16.mxu0 %v1512
    %1938 = vmatpush1.bf16.msra.mxu0 %v1511
    %1939 = vmatprep.subr.bf16.mxu0 %v1520
    %1940 = vmatpush1.bf16.msra.mxu0 %v1519
    %1941 = vmatprep.subr.bf16.mxu0 %v1528
    %1942 = vmatpush1.bf16.msra.mxu0 %v1527
    %1943 = vmatprep.subr.bf16.mxu0 %v1536
    %1944 = vmatpush1.bf16.msra.mxu0 %v1535
    %1945 = vmatprep.subr.bf16.mxu0 %v1544
    %1946 = vmatpush1.bf16.msra.mxu0 %v1543
    %1947 = vmatprep.subr.bf16.mxu0 %v1552
    %1948 = vmatpush1.bf16.msra.mxu0 %v1551
    %1949 = vmatprep.subr.bf16.mxu0 %v1560
    %1950 = vmatpush1.bf16.msra.mxu0 %v1559
    %1951 = vmatprep.subr.bf16.mxu0 %v1568
    %1952 = vmatpush1.bf16.msra.mxu0 %v1567
    %1953 = vmatprep.subr.bf16.mxu0 %v1576
    %1954 = vmatpush1.bf16.msra.mxu0 %v1575
    %1955 = vmatprep.mubr.bf16.mxu0 %v1580
    %1956 = vmatmul.mubr.bf16.gmra.mrb[0].mxu0 %v1579
    %v1957 = vpop.f32.mrb[0].mxu0
    %v1958 = vadd.f32 %v1915, %v1957
    %v1959 = vpop.f32.mrb[0].mxu0
    %v1960 = vadd.f32 %v1917, %v1959
    %v1961 = vpop.f32.mrb[0].mxu0
    %v1962 = vadd.f32 %v1919, %v1961
    %v1963 = vpop.f32.mrb[0].mxu0
    %v1964 = vadd.f32 %v1921, %v1963
    %1965 = vdwg.mxu0
    %v1966 = vadd.f32 %v1700, %v1704
    %v1967 = vrot.slane %v1966, 4
    %v1968 = vadd.f32 %v1966, %v1967
    %v1969 = vrot.slane %v1968, 2
    %v1970 = vadd.f32 %v1968, %v1969
    %v1971 = vrot.slane %v1970, 1
    %v1972 = vadd.f32 %v1970, %v1971
    %v1973 = vadd.f32 %v1702, %v1706
    %v1974 = vrot.slane %v1973, 4
    %v1975 = vadd.f32 %v1973, %v1974
    %v1976 = vrot.slane %v1975, 2
    %v1977 = vadd.f32 %v1975, %v1976
    %v1978 = vrot.slane %v1977, 1
    %v1979 = vadd.f32 %v1977, %v1978
    %v1980 = vadd.f32 %v1786, %v1790
    %v1981 = vrot.slane %v1980, 4
    %v1982 = vadd.f32 %v1980, %v1981
    %v1983 = vrot.slane %v1982, 2
    %v1984 = vadd.f32 %v1982, %v1983
    %v1985 = vrot.slane %v1984, 1
    %v1986 = vadd.f32 %v1984, %v1985
    %v1987 = vadd.f32 %v1788, %v1792
    %v1988 = vrot.slane %v1987, 4
    %v1989 = vadd.f32 %v1987, %v1988
    %v1990 = vrot.slane %v1989, 2
    %v1991 = vadd.f32 %v1989, %v1990
    %v1992 = vrot.slane %v1991, 1
    %v1993 = vadd.f32 %v1991, %v1992
    %v1994 = vadd.f32 %v1872, %v1876
    %v1995 = vrot.slane %v1994, 4
    %v1996 = vadd.f32 %v1994, %v1995
    %v1997 = vrot.slane %v1996, 2
    %v1998 = vadd.f32 %v1996, %v1997
    %v1999 = vrot.slane %v1998, 1
    %v2000 = vadd.f32 %v1998, %v1999
    %v2001 = vadd.f32 %v1874, %v1878
    %v2002 = vrot.slane %v2001, 4
    %v2003 = vadd.f32 %v2001, %v2002
    %v2004 = vrot.slane %v2003, 2
    %v2005 = vadd.f32 %v2003, %v2004
    %v2006 = vrot.slane %v2005, 1
    %v2007 = vadd.f32 %v2005, %v2006
    %v2008 = vadd.f32 %v1958, %v1962
    %v2009 = vrot.slane %v2008, 4
    %v2010 = vadd.f32 %v2008, %v2009
    %v2011 = vrot.slane %v2010, 2
    %v2012 = vadd.f32 %v2010, %v2011
    %v2013 = vrot.slane %v2012, 1
    %v2014 = vadd.f32 %v2012, %v2013
    %v2015 = vadd.f32 %v1960, %v1964
    %v2016 = vrot.slane %v2015, 4
    %v2017 = vadd.f32 %v2015, %v2016
    %v2018 = vrot.slane %v2017, 2
    %v2019 = vadd.f32 %v2017, %v2018
    %v2020 = vrot.slane %v2019, 1
    %v2021 = vadd.f32 %v2019, %v2020
    %v2022 = vmul.f32 %v1972, %v557
    %v2023 = vmul.f32 %v1979, %v557
    %v2024 = vmul.f32 %v1986, %v557
    %v2025 = vmul.f32 %v1993, %v557
    %v2026 = vmul.f32 %v2000, %v557
    %v2027 = vmul.f32 %v2007, %v557
    %v2028 = vmul.f32 %v2014, %v557
    %v2029 = vmul.f32 %v2021, %v557
    %v2030 = vmul.f32 %v1700, %v1700
    %v2031 = vmul.f32 %v1702, %v1702
    %v2032 = vmul.f32 %v1786, %v1786
    %v2033 = vmul.f32 %v1788, %v1788
    %v2034 = vmul.f32 %v1872, %v1872
    %v2035 = vmul.f32 %v1874, %v1874
    %v2036 = vmul.f32 %v1958, %v1958
    %v2037 = vmul.f32 %v1960, %v1960
    %v2038 = vmul.f32 %v1704, %v1704
    %v2039 = vmul.f32 %v1706, %v1706
    %v2040 = vmul.f32 %v1790, %v1790
    %v2041 = vmul.f32 %v1792, %v1792
    %v2042 = vmul.f32 %v1876, %v1876
    %v2043 = vmul.f32 %v1878, %v1878
    %v2044 = vmul.f32 %v1962, %v1962
    %v2045 = vmul.f32 %v1964, %v1964
    %v2046 = vadd.f32 %v2030, %v2038
    %v2047 = vrot.slane %v2046, 4
    %v2048 = vadd.f32 %v2046, %v2047
    %v2049 = vrot.slane %v2048, 2
    %v2050 = vadd.f32 %v2048, %v2049
    %v2051 = vrot.slane %v2050, 1
    %v2052 = vadd.f32 %v2050, %v2051
    %v2053 = vadd.f32 %v2031, %v2039
    %v2054 = vrot.slane %v2053, 4
    %v2055 = vadd.f32 %v2053, %v2054
    %v2056 = vrot.slane %v2055, 2
    %v2057 = vadd.f32 %v2055, %v2056
    %v2058 = vrot.slane %v2057, 1
    %v2059 = vadd.f32 %v2057, %v2058
    %v2060 = vadd.f32 %v2032, %v2040
    %v2061 = vrot.slane %v2060, 4
    %v2062 = vadd.f32 %v2060, %v2061
    %v2063 = vrot.slane %v2062, 2
    %v2064 = vadd.f32 %v2062, %v2063
    %v2065 = vrot.slane %v2064, 1
    %v2066 = vadd.f32 %v2064, %v2065
    %v2067 = vadd.f32 %v2033, %v2041
    %v2068 = vrot.slane %v2067, 4
    %v2069 = vadd.f32 %v2067, %v2068
    %v2070 = vrot.slane %v2069, 2
    %v2071 = vadd.f32 %v2069, %v2070
    %v2072 = vrot.slane %v2071, 1
    %v2073 = vadd.f32 %v2071, %v2072
    %v2074 = vadd.f32 %v2034, %v2042
    %v2075 = vrot.slane %v2074, 4
    %v2076 = vadd.f32 %v2074, %v2075
    %v2077 = vrot.slane %v2076, 2
    %v2078 = vadd.f32 %v2076, %v2077
    %v2079 = vrot.slane %v2078, 1
    %v2080 = vadd.f32 %v2078, %v2079
    %v2081 = vadd.f32 %v2035, %v2043
    %v2082 = vrot.slane %v2081, 4
    %v2083 = vadd.f32 %v2081, %v2082
    %v2084 = vrot.slane %v2083, 2
    %v2085 = vadd.f32 %v2083, %v2084
    %v2086 = vrot.slane %v2085, 1
    %v2087 = vadd.f32 %v2085, %v2086
    %v2088 = vadd.f32 %v2036, %v2044
    %v2089 = vrot.slane %v2088, 4
    %v2090 = vadd.f32 %v2088, %v2089
    %v2091 = vrot.slane %v2090, 2
    %v2092 = vadd.f32 %v2090, %v2091
    %v2093 = vrot.slane %v2092, 1
    %v2094 = vadd.f32 %v2092, %v2093
    %v2095 = vadd.f32 %v2037, %v2045
    %v2096 = vrot.slane %v2095, 4
    %v2097 = vadd.f32 %v2095, %v2096
    %v2098 = vrot.slane %v2097, 2
    %v2099 = vadd.f32 %v2097, %v2098
    %v2100 = vrot.slane %v2099, 1
    %v2101 = vadd.f32 %v2099, %v2100
    %v2102 = vmul.f32 %v2052, %v557
    %v2103 = vmul.f32 %v2059, %v557
    %v2104 = vmul.f32 %v2066, %v557
    %v2105 = vmul.f32 %v2073, %v557
    %v2106 = vmul.f32 %v2080, %v557
    %v2107 = vmul.f32 %v2087, %v557
    %v2108 = vmul.f32 %v2094, %v557
    %v2109 = vmul.f32 %v2101, %v557
    %v2110 = vmul.f32 %v2022, %v2022
    %v2111 = vmul.f32 %v2023, %v2023
    %v2112 = vmul.f32 %v2024, %v2024
    %v2113 = vmul.f32 %v2025, %v2025
    %v2114 = vmul.f32 %v2026, %v2026
    %v2115 = vmul.f32 %v2027, %v2027
    %v2116 = vmul.f32 %v2028, %v2028
    %v2117 = vmul.f32 %v2029, %v2029
    %v2118 = vsub.f32 %v2102, %v2110
    %v2119 = vsub.f32 %v2103, %v2111
    %v2120 = vsub.f32 %v2104, %v2112
    %v2121 = vsub.f32 %v2105, %v2113
    %v2122 = vsub.f32 %v2106, %v2114
    %v2123 = vsub.f32 %v2107, %v2115
    %v2124 = vsub.f32 %v2108, %v2116
    %v2125 = vsub.f32 %v2109, %v2117
    %v2126 = vsub.f32 %v1700, %v2022
    %v2127 = vsub.f32 %v1702, %v2023
    %v2128 = vsub.f32 %v1786, %v2024
    %v2129 = vsub.f32 %v1788, %v2025
    %v2130 = vsub.f32 %v1872, %v2026
    %v2131 = vsub.f32 %v1874, %v2027
    %v2132 = vsub.f32 %v1958, %v2028
    %v2133 = vsub.f32 %v1960, %v2029
    %v2134 = vsub.f32 %v1704, %v2022
    %v2135 = vsub.f32 %v1706, %v2023
    %v2136 = vsub.f32 %v1790, %v2024
    %v2137 = vsub.f32 %v1792, %v2025
    %v2138 = vsub.f32 %v1876, %v2026
    %v2139 = vsub.f32 %v1878, %v2027
    %v2140 = vsub.f32 %v1962, %v2028
    %v2141 = vsub.f32 %v1964, %v2029
    %v2142 = vadd.f32 %v2118, 0.8
    %v2143 = vadd.f32 %v2119, 0.8
    %v2144 = vadd.f32 %v2120, 0.8
    %v2145 = vadd.f32 %v2121, 0.8
    %v2146 = vadd.f32 %v2122, 0.8
    %v2147 = vadd.f32 %v2123, 0.8
    %v2148 = vadd.f32 %v2124, 0.8
    %v2149 = vadd.f32 %v2125, 0.8
    %v2150 = vrsqrt.pop %v2142
    %v2151 = vrsqrt.pop %v2143
    %v2152 = vrsqrt.pop %v2144
    %v2153 = vrsqrt.pop %v2145
    %v2154 = vrsqrt.pop %v2146
    %v2155 = vrsqrt.pop %v2147
    %v2156 = vrsqrt.pop %v2148
    %v2157 = vrsqrt.pop %v2149
    %v2158 = vmul.f32 %v2126, %v2150
    %v2159 = vmul.f32 %v2127, %v2151
    %v2160 = vmul.f32 %v2128, %v2152
    %v2161 = vmul.f32 %v2129, %v2153
    %v2162 = vmul.f32 %v2130, %v2154
    %v2163 = vmul.f32 %v2131, %v2155
    %v2164 = vmul.f32 %v2132, %v2156
    %v2165 = vmul.f32 %v2133, %v2157
    %v2166 = vmul.f32 %v2134, %v2150
    %v2167 = vmul.f32 %v2135, %v2151
    %v2168 = vmul.f32 %v2136, %v2152
    %v2169 = vmul.f32 %v2137, %v2153
    %v2170 = vmul.f32 %v2138, %v2154
    %v2171 = vmul.f32 %v2139, %v2155
    %v2172 = vmul.f32 %v2140, %v2156
    %v2173 = vmul.f32 %v2141, %v2157
    %v2175 = vlaneseq
    %v2176 = vshrl.u32 %v2175, 7
    %v2177 = vsub.s32 0, %v2176
    %v2178 = vrot.slane %v200, %v2177
    %v2179 = vlaneseq
    %v2180 = vshrl.u32 %v2179, 7
    %v2181 = vsub.s32 1, %v2180
    %v2182 = vrot.slane %v200, %v2181
    %v2183 = vlaneseq
    %v2184 = vshrl.u32 %v2183, 7
    %v2185 = vsub.s32 2, %v2184
    %v2186 = vrot.slane %v200, %v2185
    %v2187 = vlaneseq
    %v2188 = vshrl.u32 %v2187, 7
    %v2189 = vsub.s32 3, %v2188
    %v2190 = vrot.slane %v200, %v2189
    %v2191 = vlaneseq
    %v2192 = vshrl.u32 %v2191, 7
    %v2193 = vsub.s32 4, %v2192
    %v2194 = vrot.slane %v200, %v2193
    %v2195 = vlaneseq
    %v2196 = vshrl.u32 %v2195, 7
    %v2197 = vsub.s32 5, %v2196
    %v2198 = vrot.slane %v200, %v2197
    %v2199 = vlaneseq
    %v2200 = vshrl.u32 %v2199, 7
    %v2201 = vsub.s32 6, %v2200
    %v2202 = vrot.slane %v200, %v2201
    %v2203 = vlaneseq
    %v2204 = vshrl.u32 %v2203, 7
    %v2205 = vsub.s32 7, %v2204
    %v2206 = vrot.slane %v200, %v2205
    %v2215 = vmul.f32 %v2158, %v2178
    %v2216 = vmul.f32 %v2159, %v2182
    %v2217 = vmul.f32 %v2160, %v2186
    %v2218 = vmul.f32 %v2161, %v2190
    %v2219 = vmul.f32 %v2162, %v2194
    %v2220 = vmul.f32 %v2163, %v2198
    %v2221 = vmul.f32 %v2164, %v2202
    %v2222 = vmul.f32 %v2165, %v2206
    %v2223 = vmul.f32 %v2166, %v2178
    %v2224 = vmul.f32 %v2167, %v2182
    %v2225 = vmul.f32 %v2168, %v2186
    %v2226 = vmul.f32 %v2169, %v2190
    %v2227 = vmul.f32 %v2170, %v2194
    %v2228 = vmul.f32 %v2171, %v2198
    %v2229 = vmul.f32 %v2172, %v2202
    %v2230 = vmul.f32 %v2173, %v2206
    %v2232 = vlaneseq
    %v2233 = vshrl.u32 %v2232, 7
    %v2234 = vsub.s32 0, %v2233
    %v2235 = vrot.slane %v204, %v2234
    %v2236 = vlaneseq
    %v2237 = vshrl.u32 %v2236, 7
    %v2238 = vsub.s32 1, %v2237
    %v2239 = vrot.slane %v204, %v2238
    %v2240 = vlaneseq
    %v2241 = vshrl.u32 %v2240, 7
    %v2242 = vsub.s32 2, %v2241
    %v2243 = vrot.slane %v204, %v2242
    %v2244 = vlaneseq
    %v2245 = vshrl.u32 %v2244, 7
    %v2246 = vsub.s32 3, %v2245
    %v2247 = vrot.slane %v204, %v2246
    %v2248 = vlaneseq
    %v2249 = vshrl.u32 %v2248, 7
    %v2250 = vsub.s32 4, %v2249
    %v2251 = vrot.slane %v204, %v2250
    %v2252 = vlaneseq
    %v2253 = vshrl.u32 %v2252, 7
    %v2254 = vsub.s32 5, %v2253
    %v2255 = vrot.slane %v204, %v2254
    %v2256 = vlaneseq
    %v2257 = vshrl.u32 %v2256, 7
    %v2258 = vsub.s32 6, %v2257
    %v2259 = vrot.slane %v204, %v2258
    %v2260 = vlaneseq
    %v2261 = vshrl.u32 %v2260, 7
    %v2262 = vsub.s32 7, %v2261
    %v2263 = vrot.slane %v204, %v2262
    %v2272 = vadd.f32 %v2215, %v2235
    %v2273 = vadd.f32 %v2216, %v2239
    %v2274 = vadd.f32 %v2217, %v2243
    %v2275 = vadd.f32 %v2218, %v2247
    %v2276 = vadd.f32 %v2219, %v2251
    %v2277 = vadd.f32 %v2220, %v2255
    %v2278 = vadd.f32 %v2221, %v2259
    %v2279 = vadd.f32 %v2222, %v2263
    %v2280 = vadd.f32 %v2223, %v2235
    %v2281 = vadd.f32 %v2224, %v2239
    %v2282 = vadd.f32 %v2225, %v2243
    %v2283 = vadd.f32 %v2226, %v2247
    %v2284 = vadd.f32 %v2227, %v2251
    %v2285 = vadd.f32 %v2228, %v2255
    %v2286 = vadd.f32 %v2229, %v2259
    %v2287 = vadd.f32 %v2230, %v2263
    %vm2288 = vcmp.gt.f32.partialorder %v2272, 0.0
    %vm2289 = vcmp.gt.f32.partialorder %v2273, 0.0
    %vm2290 = vcmp.gt.f32.partialorder %v2274, 0.0
    %vm2291 = vcmp.gt.f32.partialorder %v2275, 0.0
    %vm2292 = vcmp.gt.f32.partialorder %v2276, 0.0
    %vm2293 = vcmp.gt.f32.partialorder %v2277, 0.0
    %vm2294 = vcmp.gt.f32.partialorder %v2278, 0.0
    %vm2295 = vcmp.gt.f32.partialorder %v2279, 0.0
    %vm2296 = vcmp.gt.f32.partialorder %v2280, 0.0
    %vm2297 = vcmp.gt.f32.partialorder %v2281, 0.0
    %vm2298 = vcmp.gt.f32.partialorder %v2282, 0.0
    %vm2299 = vcmp.gt.f32.partialorder %v2283, 0.0
    %vm2300 = vcmp.gt.f32.partialorder %v2284, 0.0
    %vm2301 = vcmp.gt.f32.partialorder %v2285, 0.0
    %vm2302 = vcmp.gt.f32.partialorder %v2286, 0.0
    %vm2303 = vcmp.gt.f32.partialorder %v2287, 0.0
    %v2304 = vmul.f32 %v2272, 0.2
    %v2305 = vmul.f32 %v2273, 0.2
    %v2306 = vmul.f32 %v2274, 0.2
    %v2307 = vmul.f32 %v2275, 0.2
    %v2308 = vmul.f32 %v2276, 0.2
    %v2309 = vmul.f32 %v2277, 0.2
    %v2310 = vmul.f32 %v2278, 0.2
    %v2311 = vmul.f32 %v2279, 0.2
    %v2312 = vmul.f32 %v2280, 0.2
    %v2313 = vmul.f32 %v2281, 0.2
    %v2314 = vmul.f32 %v2282, 0.2
    %v2315 = vmul.f32 %v2283, 0.2
    %v2316 = vmul.f32 %v2284, 0.2
    %v2317 = vmul.f32 %v2285, 0.2
    %v2318 = vmul.f32 %v2286, 0.2
    %v2319 = vmul.f32 %v2287, 0.2
    %v2320 = vsel %vm2288, %v2272, %v2304
    %v2321 = vsel %vm2289, %v2273, %v2305
    %v2322 = vsel %vm2290, %v2274, %v2306
    %v2323 = vsel %vm2291, %v2275, %v2307
    %v2324 = vsel %vm2292, %v2276, %v2308
    %v2325 = vsel %vm2293, %v2277, %v2309
    %v2326 = vsel %vm2294, %v2278, %v2310
    %v2327 = vsel %vm2295, %v2279, %v2311
    %v2328 = vsel %vm2296, %v2280, %v2312
    %v2329 = vsel %vm2297, %v2281, %v2313
    %v2330 = vsel %vm2298, %v2282, %v2314
    %v2331 = vsel %vm2299, %v2283, %v2315
    %v2332 = vsel %vm2300, %v2284, %v2316
    %v2333 = vsel %vm2301, %v2285, %v2317
    %v2334 = vsel %vm2302, %v2286, %v2318
    %v2335 = vsel %vm2303, %v2287, %v2319
    %s2336 = smul.u32 4, 128
    %s2337 = smul.u32 %s2336, 7
    %s2338 = sshll.u32 %s2337, 4
    %2339 = dma.done %s147, %s2338
    %v2340 = vld [vmem:[#allocation3] sm:$0xff]
    %v2341 = vld [vmem:[#allocation3 + $0x8] sm:$0xff]
    %v2342 = vld [vmem:[#allocation3 + $0x10] sm:$0xff]
    %v2343 = vld [vmem:[#allocation3 + $0x18] sm:$0xff]
    %v2344 = vld [vmem:[#allocation3 + $0x20] sm:$0xff]
    %v2345 = vld [vmem:[#allocation3 + $0x28] sm:$0xff]
    %v2346 = vld [vmem:[#allocation3 + $0x30] sm:$0xff]
    %v2347 = vld [vmem:[#allocation3 + $0x38] sm:$0xff]
    %v2348 = vld [vmem:[#allocation3 + $0x40] sm:$0xff]
    %v2349 = vld [vmem:[#allocation3 + $0x48] sm:$0xff]
    %v2350 = vld [vmem:[#allocation3 + $0x50] sm:$0xff]
    %v2351 = vld [vmem:[#allocation3 + $0x58] sm:$0xff]
    %v2352 = vld [vmem:[#allocation3 + $0x60] sm:$0xff]
    %v2353 = vld [vmem:[#allocation3 + $0x68] sm:$0xff]
    %v2354 = vld [vmem:[#allocation3 + $0x70] sm:$0xff]
    %v2355 = vld [vmem:[#allocation3 + $0x78] sm:$0xff]
    %v2356 = vld [vmem:[#allocation3 + $0x80] sm:$0xff]
    %v2357 = vld [vmem:[#allocation3 + $0x88] sm:$0xff]
    %v2358 = vld [vmem:[#allocation3 + $0x90] sm:$0xff]
    %v2359 = vld [vmem:[#allocation3 + $0x98] sm:$0xff]
    %v2360 = vld [vmem:[#allocation3 + $0xa0] sm:$0xff]
    %v2361 = vld [vmem:[#allocation3 + $0xa8] sm:$0xff]
    %v2362 = vld [vmem:[#allocation3 + $0xb0] sm:$0xff]
    %v2363 = vld [vmem:[#allocation3 + $0xb8] sm:$0xff]
    %v2364 = vld [vmem:[#allocation3 + $0xc0] sm:$0xff]
    %v2365 = vld [vmem:[#allocation3 + $0xc8] sm:$0xff]
    %v2366 = vld [vmem:[#allocation3 + $0xd0] sm:$0xff]
    %v2367 = vld [vmem:[#allocation3 + $0xd8] sm:$0xff]
    %v2368 = vld [vmem:[#allocation3 + $0xe0] sm:$0xff]
    %v2369 = vld [vmem:[#allocation3 + $0xe8] sm:$0xff]
    %v2370 = vld [vmem:[#allocation3 + $0xf0] sm:$0xff]
    %v2371 = vld [vmem:[#allocation3 + $0xf8] sm:$0xff]
    %v2372 = vld [vmem:[#allocation3 + $0x100] sm:$0xff]
    %v2373 = vld [vmem:[#allocation3 + $0x108] sm:$0xff]
    %v2374 = vld [vmem:[#allocation3 + $0x110] sm:$0xff]
    %v2375 = vld [vmem:[#allocation3 + $0x118] sm:$0xff]
    %v2376 = vld [vmem:[#allocation3 + $0x120] sm:$0xff]
    %v2377 = vld [vmem:[#allocation3 + $0x128] sm:$0xff]
    %v2378 = vld [vmem:[#allocation3 + $0x130] sm:$0xff]
    %v2379 = vld [vmem:[#allocation3 + $0x138] sm:$0xff]
    %v2380 = vld [vmem:[#allocation3 + $0x140] sm:$0xff]
    %v2381 = vld [vmem:[#allocation3 + $0x148] sm:$0xff]
    %v2382 = vld [vmem:[#allocation3 + $0x150] sm:$0xff]
    %v2383 = vld [vmem:[#allocation3 + $0x158] sm:$0xff]
    %v2384 = vld [vmem:[#allocation3 + $0x160] sm:$0xff]
    %v2385 = vld [vmem:[#allocation3 + $0x168] sm:$0xff]
    %v2386 = vld [vmem:[#allocation3 + $0x170] sm:$0xff]
    %v2387 = vld [vmem:[#allocation3 + $0x178] sm:$0xff]
    %v2388 = vld [vmem:[#allocation3 + $0x180] sm:$0xff]
    %v2389 = vld [vmem:[#allocation3 + $0x188] sm:$0xff]
    %v2390 = vld [vmem:[#allocation3 + $0x190] sm:$0xff]
    %v2391 = vld [vmem:[#allocation3 + $0x198] sm:$0xff]
    %v2392 = vld [vmem:[#allocation3 + $0x1a0] sm:$0xff]
    %v2393 = vld [vmem:[#allocation3 + $0x1a8] sm:$0xff]
    %v2394 = vld [vmem:[#allocation3 + $0x1b0] sm:$0xff]
    %v2395 = vld [vmem:[#allocation3 + $0x1b8] sm:$0xff]
    %v2396 = vld [vmem:[#allocation3 + $0x1c0] sm:$0xff]
    %v2397 = vld [vmem:[#allocation3 + $0x1c8] sm:$0xff]
    %v2398 = vld [vmem:[#allocation3 + $0x1d0] sm:$0xff]
    %v2399 = vld [vmem:[#allocation3 + $0x1d8] sm:$0xff]
    %v2400 = vld [vmem:[#allocation3 + $0x1e0] sm:$0xff]
    %v2401 = vld [vmem:[#allocation3 + $0x1e8] sm:$0xff]
    %v2402 = vld [vmem:[#allocation3 + $0x1f0] sm:$0xff]
    %v2403 = vld [vmem:[#allocation3 + $0x1f8] sm:$0xff]
    %v2404 = vld [vmem:[#allocation3 + $0x200] sm:$0xff]
    %v2405 = vld [vmem:[#allocation3 + $0x208] sm:$0xff]
    %v2406 = vld [vmem:[#allocation3 + $0x210] sm:$0xff]
    %v2407 = vld [vmem:[#allocation3 + $0x218] sm:$0xff]
    %v2408 = vld [vmem:[#allocation3 + $0x220] sm:$0xff]
    %v2409 = vld [vmem:[#allocation3 + $0x228] sm:$0xff]
    %v2410 = vld [vmem:[#allocation3 + $0x230] sm:$0xff]
    %v2411 = vld [vmem:[#allocation3 + $0x238] sm:$0xff]
    %v2412 = vld [vmem:[#allocation3 + $0x240] sm:$0xff]
    %v2413 = vld [vmem:[#allocation3 + $0x248] sm:$0xff]
    %v2414 = vld [vmem:[#allocation3 + $0x250] sm:$0xff]
    %v2415 = vld [vmem:[#allocation3 + $0x258] sm:$0xff]
    %v2416 = vld [vmem:[#allocation3 + $0x260] sm:$0xff]
    %v2417 = vld [vmem:[#allocation3 + $0x268] sm:$0xff]
    %v2418 = vld [vmem:[#allocation3 + $0x270] sm:$0xff]
    %v2419 = vld [vmem:[#allocation3 + $0x278] sm:$0xff]
    %v2420 = vld [vmem:[#allocation3 + $0x280] sm:$0xff]
    %v2421 = vld [vmem:[#allocation3 + $0x288] sm:$0xff]
    %v2422 = vld [vmem:[#allocation3 + $0x290] sm:$0xff]
    %v2423 = vld [vmem:[#allocation3 + $0x298] sm:$0xff]
    %v2424 = vld [vmem:[#allocation3 + $0x2a0] sm:$0xff]
    %v2425 = vld [vmem:[#allocation3 + $0x2a8] sm:$0xff]
    %v2426 = vld [vmem:[#allocation3 + $0x2b0] sm:$0xff]
    %v2427 = vld [vmem:[#allocation3 + $0x2b8] sm:$0xff]
    %v2428 = vld [vmem:[#allocation3 + $0x2c0] sm:$0xff]
    %v2429 = vld [vmem:[#allocation3 + $0x2c8] sm:$0xff]
    %v2430 = vld [vmem:[#allocation3 + $0x2d0] sm:$0xff]
    %v2431 = vld [vmem:[#allocation3 + $0x2d8] sm:$0xff]
    %v2432 = vld [vmem:[#allocation3 + $0x2e0] sm:$0xff]
    %v2433 = vld [vmem:[#allocation3 + $0x2e8] sm:$0xff]
    %v2434 = vld [vmem:[#allocation3 + $0x2f0] sm:$0xff]
    %v2435 = vld [vmem:[#allocation3 + $0x2f8] sm:$0xff]
    %v2436 = vld [vmem:[#allocation3 + $0x300] sm:$0xff]
    %v2437 = vld [vmem:[#allocation3 + $0x308] sm:$0xff]
    %v2438 = vld [vmem:[#allocation3 + $0x310] sm:$0xff]
    %v2439 = vld [vmem:[#allocation3 + $0x318] sm:$0xff]
    %v2440 = vld [vmem:[#allocation3 + $0x320] sm:$0xff]
    %v2441 = vld [vmem:[#allocation3 + $0x328] sm:$0xff]
    %v2442 = vld [vmem:[#allocation3 + $0x330] sm:$0xff]
    %v2443 = vld [vmem:[#allocation3 + $0x338] sm:$0xff]
    %v2444 = vld [vmem:[#allocation3 + $0x340] sm:$0xff]
    %v2445 = vld [vmem:[#allocation3 + $0x348] sm:$0xff]
    %v2446 = vld [vmem:[#allocation3 + $0x350] sm:$0xff]
    %v2447 = vld [vmem:[#allocation3 + $0x358] sm:$0xff]
    %v2448 = vld [vmem:[#allocation3 + $0x360] sm:$0xff]
    %v2449 = vld [vmem:[#allocation3 + $0x368] sm:$0xff]
    %v2450 = vld [vmem:[#allocation3 + $0x370] sm:$0xff]
    %v2451 = vld [vmem:[#allocation3 + $0x378] sm:$0xff]
    %v2452 = vld [vmem:[#allocation3 + $0x380] sm:$0xff]
    %v2453 = vld [vmem:[#allocation3 + $0x388] sm:$0xff]
    %v2454 = vld [vmem:[#allocation3 + $0x390] sm:$0xff]
    %v2455 = vld [vmem:[#allocation3 + $0x398] sm:$0xff]
    %v2456 = vld [vmem:[#allocation3 + $0x3a0] sm:$0xff]
    %v2457 = vld [vmem:[#allocation3 + $0x3a8] sm:$0xff]
    %v2458 = vld [vmem:[#allocation3 + $0x3b0] sm:$0xff]
    %v2459 = vld [vmem:[#allocation3 + $0x3b8] sm:$0xff]
    %v2460 = vld [vmem:[#allocation3 + $0x3c0] sm:$0xff]
    %v2461 = vld [vmem:[#allocation3 + $0x3c8] sm:$0xff]
    %v2462 = vld [vmem:[#allocation3 + $0x3d0] sm:$0xff]
    %v2463 = vld [vmem:[#allocation3 + $0x3d8] sm:$0xff]
    %v2464 = vld [vmem:[#allocation3 + $0x3e0] sm:$0xff]
    %v2465 = vld [vmem:[#allocation3 + $0x3e8] sm:$0xff]
    %v2466 = vld [vmem:[#allocation3 + $0x3f0] sm:$0xff]
    %v2467 = vld [vmem:[#allocation3 + $0x3f8] sm:$0xff]
    %v2468 = vld [vmem:[#allocation3 + $0x400] sm:$0xff]
    %v2469 = vld [vmem:[#allocation3 + $0x408] sm:$0xff]
    %v2470 = vld [vmem:[#allocation3 + $0x410] sm:$0xff]
    %v2471 = vld [vmem:[#allocation3 + $0x418] sm:$0xff]
    %v2472 = vld [vmem:[#allocation3 + $0x420] sm:$0xff]
    %v2473 = vld [vmem:[#allocation3 + $0x428] sm:$0xff]
    %v2474 = vld [vmem:[#allocation3 + $0x430] sm:$0xff]
    %v2475 = vld [vmem:[#allocation3 + $0x438] sm:$0xff]
    %v2476 = vld [vmem:[#allocation3 + $0x440] sm:$0xff]
    %v2477 = vld [vmem:[#allocation3 + $0x448] sm:$0xff]
    %v2478 = vld [vmem:[#allocation3 + $0x450] sm:$0xff]
    %v2479 = vld [vmem:[#allocation3 + $0x458] sm:$0xff]
    %v2480 = vld [vmem:[#allocation3 + $0x460] sm:$0xff]
    %v2481 = vld [vmem:[#allocation3 + $0x468] sm:$0xff]
    %v2482 = vld [vmem:[#allocation3 + $0x470] sm:$0xff]
    %v2483 = vld [vmem:[#allocation3 + $0x478] sm:$0xff]
    %v2484 = vld [vmem:[#allocation3 + $0x480] sm:$0xff]
    %v2485 = vld [vmem:[#allocation3 + $0x488] sm:$0xff]
    %v2486 = vld [vmem:[#allocation3 + $0x490] sm:$0xff]
    %v2487 = vld [vmem:[#allocation3 + $0x498] sm:$0xff]
    %v2488 = vld [vmem:[#allocation3 + $0x4a0] sm:$0xff]
    %v2489 = vld [vmem:[#allocation3 + $0x4a8] sm:$0xff]
    %v2490 = vld [vmem:[#allocation3 + $0x4b0] sm:$0xff]
    %v2491 = vld [vmem:[#allocation3 + $0x4b8] sm:$0xff]
    %v2492 = vld [vmem:[#allocation3 + $0x4c0] sm:$0xff]
    %v2493 = vld [vmem:[#allocation3 + $0x4c8] sm:$0xff]
    %v2494 = vld [vmem:[#allocation3 + $0x4d0] sm:$0xff]
    %v2495 = vld [vmem:[#allocation3 + $0x4d8] sm:$0xff]
    %v2496 = vld [vmem:[#allocation3 + $0x4e0] sm:$0xff]
    %v2497 = vld [vmem:[#allocation3 + $0x4e8] sm:$0xff]
    %v2498 = vld [vmem:[#allocation3 + $0x4f0] sm:$0xff]
    %v2499 = vld [vmem:[#allocation3 + $0x4f8] sm:$0xff]
    %v2500 = vld [vmem:[#allocation3 + $0x500] sm:$0xff]
    %v2501 = vld [vmem:[#allocation3 + $0x508] sm:$0xff]
    %v2502 = vld [vmem:[#allocation3 + $0x510] sm:$0xff]
    %v2503 = vld [vmem:[#allocation3 + $0x518] sm:$0xff]
    %v2504 = vld [vmem:[#allocation3 + $0x520] sm:$0xff]
    %v2505 = vld [vmem:[#allocation3 + $0x528] sm:$0xff]
    %v2506 = vld [vmem:[#allocation3 + $0x530] sm:$0xff]
    %v2507 = vld [vmem:[#allocation3 + $0x538] sm:$0xff]
    %v2508 = vld [vmem:[#allocation3 + $0x540] sm:$0xff]
    %v2509 = vld [vmem:[#allocation3 + $0x548] sm:$0xff]
    %v2510 = vld [vmem:[#allocation3 + $0x550] sm:$0xff]
    %v2511 = vld [vmem:[#allocation3 + $0x558] sm:$0xff]
    %v2512 = vld [vmem:[#allocation3 + $0x560] sm:$0xff]
    %v2513 = vld [vmem:[#allocation3 + $0x568] sm:$0xff]
    %v2514 = vld [vmem:[#allocation3 + $0x570] sm:$0xff]
    %v2515 = vld [vmem:[#allocation3 + $0x578] sm:$0xff]
    %v2516 = vld [vmem:[#allocation3 + $0x580] sm:$0xff]
    %v2517 = vld [vmem:[#allocation3 + $0x588] sm:$0xff]
    %v2518 = vld [vmem:[#allocation3 + $0x590] sm:$0xff]
    %v2519 = vld [vmem:[#allocation3 + $0x598] sm:$0xff]
    %v2520 = vld [vmem:[#allocation3 + $0x5a0] sm:$0xff]
    %v2521 = vld [vmem:[#allocation3 + $0x5a8] sm:$0xff]
    %v2522 = vld [vmem:[#allocation3 + $0x5b0] sm:$0xff]
    %v2523 = vld [vmem:[#allocation3 + $0x5b8] sm:$0xff]
    %v2524 = vld [vmem:[#allocation3 + $0x5c0] sm:$0xff]
    %v2525 = vld [vmem:[#allocation3 + $0x5c8] sm:$0xff]
    %v2526 = vld [vmem:[#allocation3 + $0x5d0] sm:$0xff]
    %v2527 = vld [vmem:[#allocation3 + $0x5d8] sm:$0xff]
    %v2528 = vld [vmem:[#allocation3 + $0x5e0] sm:$0xff]
    %v2529 = vld [vmem:[#allocation3 + $0x5e8] sm:$0xff]
    %v2530 = vld [vmem:[#allocation3 + $0x5f0] sm:$0xff]
    %v2531 = vld [vmem:[#allocation3 + $0x5f8] sm:$0xff]
    %v2532 = vld [vmem:[#allocation3 + $0x600] sm:$0xff]
    %v2533 = vld [vmem:[#allocation3 + $0x608] sm:$0xff]
    %v2534 = vld [vmem:[#allocation3 + $0x610] sm:$0xff]
    %v2535 = vld [vmem:[#allocation3 + $0x618] sm:$0xff]
    %v2536 = vld [vmem:[#allocation3 + $0x620] sm:$0xff]
    %v2537 = vld [vmem:[#allocation3 + $0x628] sm:$0xff]
    %v2538 = vld [vmem:[#allocation3 + $0x630] sm:$0xff]
    %v2539 = vld [vmem:[#allocation3 + $0x638] sm:$0xff]
    %v2540 = vld [vmem:[#allocation3 + $0x640] sm:$0xff]
    %v2541 = vld [vmem:[#allocation3 + $0x648] sm:$0xff]
    %v2542 = vld [vmem:[#allocation3 + $0x650] sm:$0xff]
    %v2543 = vld [vmem:[#allocation3 + $0x658] sm:$0xff]
    %v2544 = vld [vmem:[#allocation3 + $0x660] sm:$0xff]
    %v2545 = vld [vmem:[#allocation3 + $0x668] sm:$0xff]
    %v2546 = vld [vmem:[#allocation3 + $0x670] sm:$0xff]
    %v2547 = vld [vmem:[#allocation3 + $0x678] sm:$0xff]
    %v2548 = vld [vmem:[#allocation3 + $0x680] sm:$0xff]
    %v2549 = vld [vmem:[#allocation3 + $0x688] sm:$0xff]
    %v2550 = vld [vmem:[#allocation3 + $0x690] sm:$0xff]
    %v2551 = vld [vmem:[#allocation3 + $0x698] sm:$0xff]
    %v2552 = vld [vmem:[#allocation3 + $0x6a0] sm:$0xff]
    %v2553 = vld [vmem:[#allocation3 + $0x6a8] sm:$0xff]
    %v2554 = vld [vmem:[#allocation3 + $0x6b0] sm:$0xff]
    %v2555 = vld [vmem:[#allocation3 + $0x6b8] sm:$0xff]
    %v2556 = vld [vmem:[#allocation3 + $0x6c0] sm:$0xff]
    %v2557 = vld [vmem:[#allocation3 + $0x6c8] sm:$0xff]
    %v2558 = vld [vmem:[#allocation3 + $0x6d0] sm:$0xff]
    %v2559 = vld [vmem:[#allocation3 + $0x6d8] sm:$0xff]
    %v2560 = vld [vmem:[#allocation3 + $0x6e0] sm:$0xff]
    %v2561 = vld [vmem:[#allocation3 + $0x6e8] sm:$0xff]
    %v2562 = vld [vmem:[#allocation3 + $0x6f0] sm:$0xff]
    %v2563 = vld [vmem:[#allocation3 + $0x6f8] sm:$0xff]
    %v2564 = vld [vmem:[#allocation3 + $0x700] sm:$0xff]
    %v2565 = vld [vmem:[#allocation3 + $0x708] sm:$0xff]
    %v2566 = vld [vmem:[#allocation3 + $0x710] sm:$0xff]
    %v2567 = vld [vmem:[#allocation3 + $0x718] sm:$0xff]
    %v2568 = vld [vmem:[#allocation3 + $0x720] sm:$0xff]
    %v2569 = vld [vmem:[#allocation3 + $0x728] sm:$0xff]
    %v2570 = vld [vmem:[#allocation3 + $0x730] sm:$0xff]
    %v2571 = vld [vmem:[#allocation3 + $0x738] sm:$0xff]
    %v2572 = vld [vmem:[#allocation3 + $0x740] sm:$0xff]
    %v2573 = vld [vmem:[#allocation3 + $0x748] sm:$0xff]
    %v2574 = vld [vmem:[#allocation3 + $0x750] sm:$0xff]
    %v2575 = vld [vmem:[#allocation3 + $0x758] sm:$0xff]
    %v2576 = vld [vmem:[#allocation3 + $0x760] sm:$0xff]
    %v2577 = vld [vmem:[#allocation3 + $0x768] sm:$0xff]
    %v2578 = vld [vmem:[#allocation3 + $0x770] sm:$0xff]
    %v2579 = vld [vmem:[#allocation3 + $0x778] sm:$0xff]
    %v2580 = vld [vmem:[#allocation3 + $0x780] sm:$0xff]
    %v2581 = vld [vmem:[#allocation3 + $0x788] sm:$0xff]
    %v2582 = vld [vmem:[#allocation3 + $0x790] sm:$0xff]
    %v2583 = vld [vmem:[#allocation3 + $0x798] sm:$0xff]
    %v2584 = vld [vmem:[#allocation3 + $0x7a0] sm:$0xff]
    %v2585 = vld [vmem:[#allocation3 + $0x7a8] sm:$0xff]
    %v2586 = vld [vmem:[#allocation3 + $0x7b0] sm:$0xff]
    %v2587 = vld [vmem:[#allocation3 + $0x7b8] sm:$0xff]
    %v2588 = vld [vmem:[#allocation3 + $0x7c0] sm:$0xff]
    %v2589 = vld [vmem:[#allocation3 + $0x7c8] sm:$0xff]
    %v2590 = vld [vmem:[#allocation3 + $0x7d0] sm:$0xff]
    %v2591 = vld [vmem:[#allocation3 + $0x7d8] sm:$0xff]
    %v2592 = vld [vmem:[#allocation3 + $0x7e0] sm:$0xff]
    %v2593 = vld [vmem:[#allocation3 + $0x7e8] sm:$0xff]
    %v2594 = vld [vmem:[#allocation3 + $0x7f0] sm:$0xff]
    %v2595 = vld [vmem:[#allocation3 + $0x7f8] sm:$0xff]
    %v2596 = vld [vmem:[#allocation3 + $0x800] sm:$0xff]
    %v2597 = vld [vmem:[#allocation3 + $0x808] sm:$0xff]
    %v2598 = vld [vmem:[#allocation3 + $0x810] sm:$0xff]
    %v2599 = vld [vmem:[#allocation3 + $0x818] sm:$0xff]
    %v2600 = vld [vmem:[#allocation3 + $0x820] sm:$0xff]
    %v2601 = vld [vmem:[#allocation3 + $0x828] sm:$0xff]
    %v2602 = vld [vmem:[#allocation3 + $0x830] sm:$0xff]
    %v2603 = vld [vmem:[#allocation3 + $0x838] sm:$0xff]
    %v2604 = vld [vmem:[#allocation3 + $0x840] sm:$0xff]
    %v2605 = vld [vmem:[#allocation3 + $0x848] sm:$0xff]
    %v2606 = vld [vmem:[#allocation3 + $0x850] sm:$0xff]
    %v2607 = vld [vmem:[#allocation3 + $0x858] sm:$0xff]
    %v2608 = vld [vmem:[#allocation3 + $0x860] sm:$0xff]
    %v2609 = vld [vmem:[#allocation3 + $0x868] sm:$0xff]
    %v2610 = vld [vmem:[#allocation3 + $0x870] sm:$0xff]
    %v2611 = vld [vmem:[#allocation3 + $0x878] sm:$0xff]
    %v2612 = vld [vmem:[#allocation3 + $0x880] sm:$0xff]
    %v2613 = vld [vmem:[#allocation3 + $0x888] sm:$0xff]
    %v2614 = vld [vmem:[#allocation3 + $0x890] sm:$0xff]
    %v2615 = vld [vmem:[#allocation3 + $0x898] sm:$0xff]
    %v2616 = vld [vmem:[#allocation3 + $0x8a0] sm:$0xff]
    %v2617 = vld [vmem:[#allocation3 + $0x8a8] sm:$0xff]
    %v2618 = vld [vmem:[#allocation3 + $0x8b0] sm:$0xff]
    %v2619 = vld [vmem:[#allocation3 + $0x8b8] sm:$0xff]
    %v2620 = vld [vmem:[#allocation3 + $0x8c0] sm:$0xff]
    %v2621 = vld [vmem:[#allocation3 + $0x8c8] sm:$0xff]
    %v2622 = vld [vmem:[#allocation3 + $0x8d0] sm:$0xff]
    %v2623 = vld [vmem:[#allocation3 + $0x8d8] sm:$0xff]
    %v2624 = vld [vmem:[#allocation3 + $0x8e0] sm:$0xff]
    %v2625 = vld [vmem:[#allocation3 + $0x8e8] sm:$0xff]
    %v2626 = vld [vmem:[#allocation3 + $0x8f0] sm:$0xff]
    %v2627 = vld [vmem:[#allocation3 + $0x8f8] sm:$0xff]
    %v2628 = vld [vmem:[#allocation3 + $0x900] sm:$0xff]
    %v2629 = vld [vmem:[#allocation3 + $0x908] sm:$0xff]
    %v2630 = vld [vmem:[#allocation3 + $0x910] sm:$0xff]
    %v2631 = vld [vmem:[#allocation3 + $0x918] sm:$0xff]
    %v2632 = vld [vmem:[#allocation3 + $0x920] sm:$0xff]
    %v2633 = vld [vmem:[#allocation3 + $0x928] sm:$0xff]
    %v2634 = vld [vmem:[#allocation3 + $0x930] sm:$0xff]
    %v2635 = vld [vmem:[#allocation3 + $0x938] sm:$0xff]
    %v2636 = vld [vmem:[#allocation3 + $0x940] sm:$0xff]
    %v2637 = vld [vmem:[#allocation3 + $0x948] sm:$0xff]
    %v2638 = vld [vmem:[#allocation3 + $0x950] sm:$0xff]
    %v2639 = vld [vmem:[#allocation3 + $0x958] sm:$0xff]
    %v2640 = vld [vmem:[#allocation3 + $0x960] sm:$0xff]
    %v2641 = vld [vmem:[#allocation3 + $0x968] sm:$0xff]
    %v2642 = vld [vmem:[#allocation3 + $0x970] sm:$0xff]
    %v2643 = vld [vmem:[#allocation3 + $0x978] sm:$0xff]
    %v2644 = vld [vmem:[#allocation3 + $0x980] sm:$0xff]
    %v2645 = vld [vmem:[#allocation3 + $0x988] sm:$0xff]
    %v2646 = vld [vmem:[#allocation3 + $0x990] sm:$0xff]
    %v2647 = vld [vmem:[#allocation3 + $0x998] sm:$0xff]
    %v2648 = vld [vmem:[#allocation3 + $0x9a0] sm:$0xff]
    %v2649 = vld [vmem:[#allocation3 + $0x9a8] sm:$0xff]
    %v2650 = vld [vmem:[#allocation3 + $0x9b0] sm:$0xff]
    %v2651 = vld [vmem:[#allocation3 + $0x9b8] sm:$0xff]
    %v2652 = vld [vmem:[#allocation3 + $0x9c0] sm:$0xff]
    %v2653 = vld [vmem:[#allocation3 + $0x9c8] sm:$0xff]
    %v2654 = vld [vmem:[#allocation3 + $0x9d0] sm:$0xff]
    %v2655 = vld [vmem:[#allocation3 + $0x9d8] sm:$0xff]
    %v2656 = vld [vmem:[#allocation3 + $0x9e0] sm:$0xff]
    %v2657 = vld [vmem:[#allocation3 + $0x9e8] sm:$0xff]
    %v2658 = vld [vmem:[#allocation3 + $0x9f0] sm:$0xff]
    %v2659 = vld [vmem:[#allocation3 + $0x9f8] sm:$0xff]
    %v2660 = vld [vmem:[#allocation3 + $0xa00] sm:$0xff]
    %v2661 = vld [vmem:[#allocation3 + $0xa08] sm:$0xff]
    %v2662 = vld [vmem:[#allocation3 + $0xa10] sm:$0xff]
    %v2663 = vld [vmem:[#allocation3 + $0xa18] sm:$0xff]
    %v2664 = vld [vmem:[#allocation3 + $0xa20] sm:$0xff]
    %v2665 = vld [vmem:[#allocation3 + $0xa28] sm:$0xff]
    %v2666 = vld [vmem:[#allocation3 + $0xa30] sm:$0xff]
    %v2667 = vld [vmem:[#allocation3 + $0xa38] sm:$0xff]
    %v2668 = vld [vmem:[#allocation3 + $0xa40] sm:$0xff]
    %v2669 = vld [vmem:[#allocation3 + $0xa48] sm:$0xff]
    %v2670 = vld [vmem:[#allocation3 + $0xa50] sm:$0xff]
    %v2671 = vld [vmem:[#allocation3 + $0xa58] sm:$0xff]
    %v2672 = vld [vmem:[#allocation3 + $0xa60] sm:$0xff]
    %v2673 = vld [vmem:[#allocation3 + $0xa68] sm:$0xff]
    %v2674 = vld [vmem:[#allocation3 + $0xa70] sm:$0xff]
    %v2675 = vld [vmem:[#allocation3 + $0xa78] sm:$0xff]
    %v2676 = vld [vmem:[#allocation3 + $0xa80] sm:$0xff]
    %v2677 = vld [vmem:[#allocation3 + $0xa88] sm:$0xff]
    %v2678 = vld [vmem:[#allocation3 + $0xa90] sm:$0xff]
    %v2679 = vld [vmem:[#allocation3 + $0xa98] sm:$0xff]
    %v2680 = vld [vmem:[#allocation3 + $0xaa0] sm:$0xff]
    %v2681 = vld [vmem:[#allocation3 + $0xaa8] sm:$0xff]
    %v2682 = vld [vmem:[#allocation3 + $0xab0] sm:$0xff]
    %v2683 = vld [vmem:[#allocation3 + $0xab8] sm:$0xff]
    %v2684 = vld [vmem:[#allocation3 + $0xac0] sm:$0xff]
    %v2685 = vld [vmem:[#allocation3 + $0xac8] sm:$0xff]
    %v2686 = vld [vmem:[#allocation3 + $0xad0] sm:$0xff]
    %v2687 = vld [vmem:[#allocation3 + $0xad8] sm:$0xff]
    %v2688 = vld [vmem:[#allocation3 + $0xae0] sm:$0xff]
    %v2689 = vld [vmem:[#allocation3 + $0xae8] sm:$0xff]
    %v2690 = vld [vmem:[#allocation3 + $0xaf0] sm:$0xff]
    %v2691 = vld [vmem:[#allocation3 + $0xaf8] sm:$0xff]
    %v2692 = vld [vmem:[#allocation3 + $0xb00] sm:$0xff]
    %v2693 = vld [vmem:[#allocation3 + $0xb08] sm:$0xff]
    %v2694 = vld [vmem:[#allocation3 + $0xb10] sm:$0xff]
    %v2695 = vld [vmem:[#allocation3 + $0xb18] sm:$0xff]
    %v2696 = vld [vmem:[#allocation3 + $0xb20] sm:$0xff]
    %v2697 = vld [vmem:[#allocation3 + $0xb28] sm:$0xff]
    %v2698 = vld [vmem:[#allocation3 + $0xb30] sm:$0xff]
    %v2699 = vld [vmem:[#allocation3 + $0xb38] sm:$0xff]
    %v2700 = vld [vmem:[#allocation3 + $0xb40] sm:$0xff]
    %v2701 = vld [vmem:[#allocation3 + $0xb48] sm:$0xff]
    %v2702 = vld [vmem:[#allocation3 + $0xb50] sm:$0xff]
    %v2703 = vld [vmem:[#allocation3 + $0xb58] sm:$0xff]
    %v2704 = vld [vmem:[#allocation3 + $0xb60] sm:$0xff]
    %v2705 = vld [vmem:[#allocation3 + $0xb68] sm:$0xff]
    %v2706 = vld [vmem:[#allocation3 + $0xb70] sm:$0xff]
    %v2707 = vld [vmem:[#allocation3 + $0xb78] sm:$0xff]
    %v2708 = vld [vmem:[#allocation3 + $0xb80] sm:$0xff]
    %v2709 = vld [vmem:[#allocation3 + $0xb88] sm:$0xff]
    %v2710 = vld [vmem:[#allocation3 + $0xb90] sm:$0xff]
    %v2711 = vld [vmem:[#allocation3 + $0xb98] sm:$0xff]
    %v2712 = vld [vmem:[#allocation3 + $0xba0] sm:$0xff]
    %v2713 = vld [vmem:[#allocation3 + $0xba8] sm:$0xff]
    %v2714 = vld [vmem:[#allocation3 + $0xbb0] sm:$0xff]
    %v2715 = vld [vmem:[#allocation3 + $0xbb8] sm:$0xff]
    %v2716 = vld [vmem:[#allocation3 + $0xbc0] sm:$0xff]
    %v2717 = vld [vmem:[#allocation3 + $0xbc8] sm:$0xff]
    %v2718 = vld [vmem:[#allocation3 + $0xbd0] sm:$0xff]
    %v2719 = vld [vmem:[#allocation3 + $0xbd8] sm:$0xff]
    %v2720 = vld [vmem:[#allocation3 + $0xbe0] sm:$0xff]
    %v2721 = vld [vmem:[#allocation3 + $0xbe8] sm:$0xff]
    %v2722 = vld [vmem:[#allocation3 + $0xbf0] sm:$0xff]
    %v2723 = vld [vmem:[#allocation3 + $0xbf8] sm:$0xff]
    %v2724 = vld [vmem:[#allocation3 + $0xc00] sm:$0xff]
    %v2725 = vld [vmem:[#allocation3 + $0xc08] sm:$0xff]
    %v2726 = vld [vmem:[#allocation3 + $0xc10] sm:$0xff]
    %v2727 = vld [vmem:[#allocation3 + $0xc18] sm:$0xff]
    %v2728 = vld [vmem:[#allocation3 + $0xc20] sm:$0xff]
    %v2729 = vld [vmem:[#allocation3 + $0xc28] sm:$0xff]
    %v2730 = vld [vmem:[#allocation3 + $0xc30] sm:$0xff]
    %v2731 = vld [vmem:[#allocation3 + $0xc38] sm:$0xff]
    %v2732 = vld [vmem:[#allocation3 + $0xc40] sm:$0xff]
    %v2733 = vld [vmem:[#allocation3 + $0xc48] sm:$0xff]
    %v2734 = vld [vmem:[#allocation3 + $0xc50] sm:$0xff]
    %v2735 = vld [vmem:[#allocation3 + $0xc58] sm:$0xff]
    %v2736 = vld [vmem:[#allocation3 + $0xc60] sm:$0xff]
    %v2737 = vld [vmem:[#allocation3 + $0xc68] sm:$0xff]
    %v2738 = vld [vmem:[#allocation3 + $0xc70] sm:$0xff]
    %v2739 = vld [vmem:[#allocation3 + $0xc78] sm:$0xff]
    %v2740 = vld [vmem:[#allocation3 + $0xc80] sm:$0xff]
    %v2741 = vld [vmem:[#allocation3 + $0xc88] sm:$0xff]
    %v2742 = vld [vmem:[#allocation3 + $0xc90] sm:$0xff]
    %v2743 = vld [vmem:[#allocation3 + $0xc98] sm:$0xff]
    %v2744 = vld [vmem:[#allocation3 + $0xca0] sm:$0xff]
    %v2745 = vld [vmem:[#allocation3 + $0xca8] sm:$0xff]
    %v2746 = vld [vmem:[#allocation3 + $0xcb0] sm:$0xff]
    %v2747 = vld [vmem:[#allocation3 + $0xcb8] sm:$0xff]
    %v2748 = vld [vmem:[#allocation3 + $0xcc0] sm:$0xff]
    %v2749 = vld [vmem:[#allocation3 + $0xcc8] sm:$0xff]
    %v2750 = vld [vmem:[#allocation3 + $0xcd0] sm:$0xff]
    %v2751 = vld [vmem:[#allocation3 + $0xcd8] sm:$0xff]
    %v2752 = vld [vmem:[#allocation3 + $0xce0] sm:$0xff]
    %v2753 = vld [vmem:[#allocation3 + $0xce8] sm:$0xff]
    %v2754 = vld [vmem:[#allocation3 + $0xcf0] sm:$0xff]
    %v2755 = vld [vmem:[#allocation3 + $0xcf8] sm:$0xff]
    %v2756 = vld [vmem:[#allocation3 + $0xd00] sm:$0xff]
    %v2757 = vld [vmem:[#allocation3 + $0xd08] sm:$0xff]
    %v2758 = vld [vmem:[#allocation3 + $0xd10] sm:$0xff]
    %v2759 = vld [vmem:[#allocation3 + $0xd18] sm:$0xff]
    %v2760 = vld [vmem:[#allocation3 + $0xd20] sm:$0xff]
    %v2761 = vld [vmem:[#allocation3 + $0xd28] sm:$0xff]
    %v2762 = vld [vmem:[#allocation3 + $0xd30] sm:$0xff]
    %v2763 = vld [vmem:[#allocation3 + $0xd38] sm:$0xff]
    %v2764 = vld [vmem:[#allocation3 + $0xd40] sm:$0xff]
    %v2765 = vld [vmem:[#allocation3 + $0xd48] sm:$0xff]
    %v2766 = vld [vmem:[#allocation3 + $0xd50] sm:$0xff]
    %v2767 = vld [vmem:[#allocation3 + $0xd58] sm:$0xff]
    %v2768 = vld [vmem:[#allocation3 + $0xd60] sm:$0xff]
    %v2769 = vld [vmem:[#allocation3 + $0xd68] sm:$0xff]
    %v2770 = vld [vmem:[#allocation3 + $0xd70] sm:$0xff]
    %v2771 = vld [vmem:[#allocation3 + $0xd78] sm:$0xff]
    %v2772 = vld [vmem:[#allocation3 + $0xd80] sm:$0xff]
    %v2773 = vld [vmem:[#allocation3 + $0xd88] sm:$0xff]
    %v2774 = vld [vmem:[#allocation3 + $0xd90] sm:$0xff]
    %v2775 = vld [vmem:[#allocation3 + $0xd98] sm:$0xff]
    %v2776 = vld [vmem:[#allocation3 + $0xda0] sm:$0xff]
    %v2777 = vld [vmem:[#allocation3 + $0xda8] sm:$0xff]
    %v2778 = vld [vmem:[#allocation3 + $0xdb0] sm:$0xff]
    %v2779 = vld [vmem:[#allocation3 + $0xdb8] sm:$0xff]
    %v2780 = vld [vmem:[#allocation3 + $0xdc0] sm:$0xff]
    %v2781 = vld [vmem:[#allocation3 + $0xdc8] sm:$0xff]
    %v2782 = vld [vmem:[#allocation3 + $0xdd0] sm:$0xff]
    %v2783 = vld [vmem:[#allocation3 + $0xdd8] sm:$0xff]
    %v2784 = vld [vmem:[#allocation3 + $0xde0] sm:$0xff]
    %v2785 = vld [vmem:[#allocation3 + $0xde8] sm:$0xff]
    %v2786 = vld [vmem:[#allocation3 + $0xdf0] sm:$0xff]
    %v2787 = vld [vmem:[#allocation3 + $0xdf8] sm:$0xff]
    %v2788 = vpack.c.bf16 %v2328, %v2320
    %v2789 = vpack.c.bf16 %v2329, %v2321
    %v2790 = vpack.c.bf16 %v2330, %v2322
    %v2791 = vpack.c.bf16 %v2331, %v2323
    %v2792 = vpack.c.bf16 %v2332, %v2324
    %v2793 = vpack.c.bf16 %v2333, %v2325
    %v2794 = vpack.c.bf16 %v2334, %v2326
    %v2795 = vpack.c.bf16 %v2335, %v2327
    %v2797 = vlaneseq
    %v2798 = vshrl.u32 %v2797, 7
    %v2799 = vsub.s32 0, %v2798
    %v2800 = vrot.slane %v208, %v2799
    %v2801 = vlaneseq
    %v2802 = vshrl.u32 %v2801, 7
    %v2803 = vsub.s32 1, %v2802
    %v2804 = vrot.slane %v208, %v2803
    %v2805 = vlaneseq
    %v2806 = vshrl.u32 %v2805, 7
    %v2807 = vsub.s32 2, %v2806
    %v2808 = vrot.slane %v208, %v2807
    %v2809 = vlaneseq
    %v2810 = vshrl.u32 %v2809, 7
    %v2811 = vsub.s32 3, %v2810
    %v2812 = vrot.slane %v208, %v2811
    %v2813 = vlaneseq
    %v2814 = vshrl.u32 %v2813, 7
    %v2815 = vsub.s32 4, %v2814
    %v2816 = vrot.slane %v208, %v2815
    %v2817 = vlaneseq
    %v2818 = vshrl.u32 %v2817, 7
    %v2819 = vsub.s32 5, %v2818
    %v2820 = vrot.slane %v208, %v2819
    %v2821 = vlaneseq
    %v2822 = vshrl.u32 %v2821, 7
    %v2823 = vsub.s32 6, %v2822
    %v2824 = vrot.slane %v208, %v2823
    %2832 = vmatprep.subr.bf16.mxu0 %v2341
    %2833 = vmatpush1.bf16.msra.mxu0 %v2340
    %2834 = vmatprep.subr.bf16.mxu0 %v2348
    %2835 = vmatpush1.bf16.msra.mxu0 %v2347
    %2836 = vmatprep.subr.bf16.mxu0 %v2355
    %2837 = vmatpush1.bf16.msra.mxu0 %v2354
    %2838 = vmatprep.subr.bf16.mxu0 %v2362
    %2839 = vmatpush1.bf16.msra.mxu0 %v2361
    %2840 = vmatprep.subr.bf16.mxu0 %v2369
    %2841 = vmatpush1.bf16.msra.mxu0 %v2368
    %2842 = vmatprep.subr.bf16.mxu0 %v2376
    %2843 = vmatpush1.bf16.msra.mxu0 %v2375
    %2844 = vmatprep.subr.bf16.mxu0 %v2383
    %2845 = vmatpush1.bf16.msra.mxu0 %v2382
    %2846 = vmatprep.subr.bf16.mxu0 %v2390
    %2847 = vmatpush1.bf16.msra.mxu0 %v2389
    %2848 = vmatprep.subr.bf16.mxu0 %v2397
    %2849 = vmatpush1.bf16.msra.mxu0 %v2396
    %2850 = vmatprep.subr.bf16.mxu0 %v2404
    %2851 = vmatpush1.bf16.msra.mxu0 %v2403
    %2852 = vmatprep.subr.bf16.mxu0 %v2411
    %2853 = vmatpush1.bf16.msra.mxu0 %v2410
    %2854 = vmatprep.subr.bf16.mxu0 %v2418
    %2855 = vmatpush1.bf16.msra.mxu0 %v2417
    %2856 = vmatprep.subr.bf16.mxu0 %v2425
    %2857 = vmatpush1.bf16.msra.mxu0 %v2424
    %2858 = vmatprep.subr.bf16.mxu0 %v2432
    %2859 = vmatpush1.bf16.msra.mxu0 %v2431
    %2860 = vmatprep.subr.bf16.mxu0 %v2439
    %2861 = vmatpush1.bf16.msra.mxu0 %v2438
    %2862 = vmatprep.subr.bf16.mxu0 %v2446
    %2863 = vmatpush1.bf16.msra.mxu0 %v2445
    %2864 = vmatprep.mubr.bf16.mxu0 %v2789
    %2865 = vmatmul.mubr.bf16.gmra.mrb[0].mxu0 %v2788
    %v2866 = vpop.f32.mrb[0].mxu0
    %v2867 = vadd.f32 %v2800, %v2866
    %v2868 = vpop.f32.mrb[0].mxu0
    %v2869 = vadd.f32 %v2804, %v2868
    %v2870 = vpop.f32.mrb[0].mxu0
    %v2871 = vadd.f32 %v2800, %v2870
    %v2872 = vpop.f32.mrb[0].mxu0
    %v2873 = vadd.f32 %v2804, %v2872
    %2874 = vdwg.mxu0
    %2875 = vmatprep.subr.bf16.mxu0 %v2453
    %2876 = vmatpush1.bf16.msra.mxu0 %v2452
    %2877 = vmatprep.subr.bf16.mxu0 %v2460
    %2878 = vmatpush1.bf16.msra.mxu0 %v2459
    %2879 = vmatprep.subr.bf16.mxu0 %v2467
    %2880 = vmatpush1.bf16.msra.mxu0 %v2466
    %2881 = vmatprep.subr.bf16.mxu0 %v2474
    %2882 = vmatpush1.bf16.msra.mxu0 %v2473
    %2883 = vmatprep.subr.bf16.mxu0 %v2481
    %2884 = vmatpush1.bf16.msra.mxu0 %v2480
    %2885 = vmatprep.subr.bf16.mxu0 %v2488
    %2886 = vmatpush1.bf16.msra.mxu0 %v2487
    %2887 = vmatprep.subr.bf16.mxu0 %v2495
    %2888 = vmatpush1.bf16.msra.mxu0 %v2494
    %2889 = vmatprep.subr.bf16.mxu0 %v2502
    %2890 = vmatpush1.bf16.msra.mxu0 %v2501
    %2891 = vmatprep.subr.bf16.mxu0 %v2509
    %2892 = vmatpush1.bf16.msra.mxu0 %v2508
    %2893 = vmatprep.subr.bf16.mxu0 %v2516
    %2894 = vmatpush1.bf16.msra.mxu0 %v2515
    %2895 = vmatprep.subr.bf16.mxu0 %v2523
    %2896 = vmatpush1.bf16.msra.mxu0 %v2522
    %2897 = vmatprep.subr.bf16.mxu0 %v2530
    %2898 = vmatpush1.bf16.msra.mxu0 %v2529
    %2899 = vmatprep.subr.bf16.mxu0 %v2537
    %2900 = vmatpush1.bf16.msra.mxu0 %v2536
    %2901 = vmatprep.subr.bf16.mxu0 %v2544
    %2902 = vmatpush1.bf16.msra.mxu0 %v2543
    %2903 = vmatprep.subr.bf16.mxu0 %v2551
    %2904 = vmatpush1.bf16.msra.mxu0 %v2550
    %2905 = vmatprep.subr.bf16.mxu0 %v2558
    %2906 = vmatpush1.bf16.msra.mxu0 %v2557
    %2907 = vmatprep.mubr.bf16.mxu0 %v2791
    %2908 = vmatmul.mubr.bf16.gmra.mrb[0].mxu0 %v2790
    %v2909 = vpop.f32.mrb[0].mxu0
    %v2910 = vadd.f32 %v2867, %v2909
    %v2911 = vpop.f32.mrb[0].mxu0
    %v2912 = vadd.f32 %v2869, %v2911
    %v2913 = vpop.f32.mrb[0].mxu0
    %v2914 = vadd.f32 %v2871, %v2913
    %v2915 = vpop.f32.mrb[0].mxu0
    %v2916 = vadd.f32 %v2873, %v2915
    %2917 = vdwg.mxu0
    %2918 = vmatprep.subr.bf16.mxu0 %v2565
    %2919 = vmatpush1.bf16.msra.mxu0 %v2564
    %2920 = vmatprep.subr.bf16.mxu0 %v2572
    %2921 = vmatpush1.bf16.msra.mxu0 %v2571
    %2922 = vmatprep.subr.bf16.mxu0 %v2579
    %2923 = vmatpush1.bf16.msra.mxu0 %v2578
    %2924 = vmatprep.subr.bf16.mxu0 %v2586
    %2925 = vmatpush1.bf16.msra.mxu0 %v2585
    %2926 = vmatprep.subr.bf16.mxu0 %v2593
    %2927 = vmatpush1.bf16.msra.mxu0 %v2592
    %2928 = vmatprep.subr.bf16.mxu0 %v2600
    %2929 = vmatpush1.bf16.msra.mxu0 %v2599
    %2930 = vmatprep.subr.bf16.mxu0 %v2607
    %2931 = vmatpush1.bf16.msra.mxu0 %v2606
    %2932 = vmatprep.subr.bf16.mxu0 %v2614
    %2933 = vmatpush1.bf16.msra.mxu0 %v2613
    %2934 = vmatprep.subr.bf16.mxu0 %v2621
    %2935 = vmatpush1.bf16.msra.mxu0 %v2620
    %2936 = vmatprep.subr.bf16.mxu0 %v2628
    %2937 = vmatpush1.bf16.msra.mxu0 %v2627
    %2938 = vmatprep.subr.bf16.mxu0 %v2635
    %2939 = vmatpush1.bf16.msra.mxu0 %v2634
    %2940 = vmatprep.subr.bf16.mxu0 %v2642
    %2941 = vmatpush1.bf16.msra.mxu0 %v2641
    %2942 = vmatprep.subr.bf16.mxu0 %v2649
    %2943 = vmatpush1.bf16.msra.mxu0 %v2648
    %2944 = vmatprep.subr.bf16.mxu0 %v2656
    %2945 = vmatpush1.bf16.msra.mxu0 %v2655
    %2946 = vmatprep.subr.bf16.mxu0 %v2663
    %2947 = vmatpush1.bf16.msra.mxu0 %v2662
    %2948 = vmatprep.subr.bf16.mxu0 %v2670
    %2949 = vmatpush1.bf16.msra.mxu0 %v2669
    %2950 = vmatprep.mubr.bf16.mxu0 %v2793
    %2951 = vmatmul.mubr.bf16.gmra.mrb[0].mxu0 %v2792
    %v2952 = vpop.f32.mrb[0].mxu0
    %v2953 = vadd.f32 %v2910, %v2952
    %v2954 = vpop.f32.mrb[0].mxu0
    %v2955 = vadd.f32 %v2912, %v2954
    %v2956 = vpop.f32.mrb[0].mxu0
    %v2957 = vadd.f32 %v2914, %v2956
    %v2958 = vpop.f32.mrb[0].mxu0
    %v2959 = vadd.f32 %v2916, %v2958
    %2960 = vdwg.mxu0
    %2961 = vmatprep.subr.bf16.mxu0 %v2677
    %2962 = vmatpush1.bf16.msra.mxu0 %v2676
    %2963 = vmatprep.subr.bf16.mxu0 %v2684
    %2964 = vmatpush1.bf16.msra.mxu0 %v2683
    %2965 = vmatprep.subr.bf16.mxu0 %v2691
    %2966 = vmatpush1.bf16.msra.mxu0 %v2690
    %2967 = vmatprep.subr.bf16.mxu0 %v2698
    %2968 = vmatpush1.bf16.msra.mxu0 %v2697
    %2969 = vmatprep.subr.bf16.mxu0 %v2705
    %2970 = vmatpush1.bf16.msra.mxu0 %v2704
    %2971 = vmatprep.subr.bf16.mxu0 %v2712
    %2972 = vmatpush1.bf16.msra.mxu0 %v2711
    %2973 = vmatprep.subr.bf16.mxu0 %v2719
    %2974 = vmatpush1.bf16.msra.mxu0 %v2718
    %2975 = vmatprep.subr.bf16.mxu0 %v2726
    %2976 = vmatpush1.bf16.msra.mxu0 %v2725
    %2977 = vmatprep.subr.bf16.mxu0 %v2733
    %2978 = vmatpush1.bf16.msra.mxu0 %v2732
    %2979 = vmatprep.subr.bf16.mxu0 %v2740
    %2980 = vmatpush1.bf16.msra.mxu0 %v2739
    %2981 = vmatprep.subr.bf16.mxu0 %v2747
    %2982 = vmatpush1.bf16.msra.mxu0 %v2746
    %2983 = vmatprep.subr.bf16.mxu0 %v2754
    %2984 = vmatpush1.bf16.msra.mxu0 %v2753
    %2985 = vmatprep.subr.bf16.mxu0 %v2761
    %2986 = vmatpush1.bf16.msra.mxu0 %v2760
    %2987 = vmatprep.subr.bf16.mxu0 %v2768
    %2988 = vmatpush1.bf16.msra.mxu0 %v2767
    %2989 = vmatprep.subr.bf16.mxu0 %v2775
    %2990 = vmatpush1.bf16.msra.mxu0 %v2774
    %2991 = vmatprep.subr.bf16.mxu0 %v2782
    %2992 = vmatpush1.bf16.msra.mxu0 %v2781
    %2993 = vmatprep.mubr.bf16.mxu0 %v2795
    %2994 = vmatmul.mubr.bf16.gmra.mrb[0].mxu0 %v2794
    %v2995 = vpop.f32.mrb[0].mxu0
    %v2996 = vadd.f32 %v2953, %v2995
    %v2997 = vpop.f32.mrb[0].mxu0
    %v2998 = vadd.f32 %v2955, %v2997
    %v2999 = vpop.f32.mrb[0].mxu0
    %v3000 = vadd.f32 %v2957, %v2999
    %v3001 = vpop.f32.mrb[0].mxu0
    %v3002 = vadd.f32 %v2959, %v3001
    %3003 = vdwg.mxu0
    %3004 = vmatprep.subr.bf16.mxu0 %v2343
    %3005 = vmatpush1.bf16.msra.mxu0 %v2342
    %3006 = vmatprep.subr.bf16.mxu0 %v2350
    %3007 = vmatpush1.bf16.msra.mxu0 %v2349
    %3008 = vmatprep.subr.bf16.mxu0 %v2357
    %3009 = vmatpush1.bf16.msra.mxu0 %v2356
    %3010 = vmatprep.subr.bf16.mxu0 %v2364
    %3011 = vmatpush1.bf16.msra.mxu0 %v2363
    %3012 = vmatprep.subr.bf16.mxu0 %v2371
    %3013 = vmatpush1.bf16.msra.mxu0 %v2370
    %3014 = vmatprep.subr.bf16.mxu0 %v2378
    %3015 = vmatpush1.bf16.msra.mxu0 %v2377
    %3016 = vmatprep.subr.bf16.mxu0 %v2385
    %3017 = vmatpush1.bf16.msra.mxu0 %v2384
    %3018 = vmatprep.subr.bf16.mxu0 %v2392
    %3019 = vmatpush1.bf16.msra.mxu0 %v2391
    %3020 = vmatprep.subr.bf16.mxu0 %v2399
    %3021 = vmatpush1.bf16.msra.mxu0 %v2398
    %3022 = vmatprep.subr.bf16.mxu0 %v2406
    %3023 = vmatpush1.bf16.msra.mxu0 %v2405
    %3024 = vmatprep.subr.bf16.mxu0 %v2413
    %3025 = vmatpush1.bf16.msra.mxu0 %v2412
    %3026 = vmatprep.subr.bf16.mxu0 %v2420
    %3027 = vmatpush1.bf16.msra.mxu0 %v2419
    %3028 = vmatprep.subr.bf16.mxu0 %v2427
    %3029 = vmatpush1.bf16.msra.mxu0 %v2426
    %3030 = vmatprep.subr.bf16.mxu0 %v2434
    %3031 = vmatpush1.bf16.msra.mxu0 %v2433
    %3032 = vmatprep.subr.bf16.mxu0 %v2441
    %3033 = vmatpush1.bf16.msra.mxu0 %v2440
    %3034 = vmatprep.subr.bf16.mxu0 %v2448
    %3035 = vmatpush1.bf16.msra.mxu0 %v2447
    %3036 = vmatprep.mubr.bf16.mxu0 %v2789
    %3037 = vmatmul.mubr.bf16.gmra.mrb[0].mxu0 %v2788
    %v3038 = vpop.f32.mrb[0].mxu0
    %v3039 = vadd.f32 %v2808, %v3038
    %v3040 = vpop.f32.mrb[0].mxu0
    %v3041 = vadd.f32 %v2812, %v3040
    %v3042 = vpop.f32.mrb[0].mxu0
    %v3043 = vadd.f32 %v2808, %v3042
    %v3044 = vpop.f32.mrb[0].mxu0
    %v3045 = vadd.f32 %v2812, %v3044
    %3046 = vdwg.mxu0
    %3047 = vmatprep.subr.bf16.mxu0 %v2455
    %3048 = vmatpush1.bf16.msra.mxu0 %v2454
    %3049 = vmatprep.subr.bf16.mxu0 %v2462
    %3050 = vmatpush1.bf16.msra.mxu0 %v2461
    %3051 = vmatprep.subr.bf16.mxu0 %v2469
    %3052 = vmatpush1.bf16.msra.mxu0 %v2468
    %3053 = vmatprep.subr.bf16.mxu0 %v2476
    %3054 = vmatpush1.bf16.msra.mxu0 %v2475
    %3055 = vmatprep.subr.bf16.mxu0 %v2483
    %3056 = vmatpush1.bf16.msra.mxu0 %v2482
    %3057 = vmatprep.subr.bf16.mxu0 %v2490
    %3058 = vmatpush1.bf16.msra.mxu0 %v2489
    %3059 = vmatprep.subr.bf16.mxu0 %v2497
    %3060 = vmatpush1.bf16.msra.mxu0 %v2496
    %3061 = vmatprep.subr.bf16.mxu0 %v2504
    %3062 = vmatpush1.bf16.msra.mxu0 %v2503
    %3063 = vmatprep.subr.bf16.mxu0 %v2511
    %3064 = vmatpush1.bf16.msra.mxu0 %v2510
    %3065 = vmatprep.subr.bf16.mxu0 %v2518
    %3066 = vmatpush1.bf16.msra.mxu0 %v2517
    %3067 = vmatprep.subr.bf16.mxu0 %v2525
    %3068 = vmatpush1.bf16.msra.mxu0 %v2524
    %3069 = vmatprep.subr.bf16.mxu0 %v2532
    %3070 = vmatpush1.bf16.msra.mxu0 %v2531
    %3071 = vmatprep.subr.bf16.mxu0 %v2539
    %3072 = vmatpush1.bf16.msra.mxu0 %v2538
    %3073 = vmatprep.subr.bf16.mxu0 %v2546
    %3074 = vmatpush1.bf16.msra.mxu0 %v2545
    %3075 = vmatprep.subr.bf16.mxu0 %v2553
    %3076 = vmatpush1.bf16.msra.mxu0 %v2552
    %3077 = vmatprep.subr.bf16.mxu0 %v2560
    %3078 = vmatpush1.bf16.msra.mxu0 %v2559
    %3079 = vmatprep.mubr.bf16.mxu0 %v2791
    %3080 = vmatmul.mubr.bf16.gmra.mrb[0].mxu0 %v2790
    %v3081 = vpop.f32.mrb[0].mxu0
    %v3082 = vadd.f32 %v3039, %v3081
    %v3083 = vpop.f32.mrb[0].mxu0
    %v3084 = vadd.f32 %v3041, %v3083
    %v3085 = vpop.f32.mrb[0].mxu0
    %v3086 = vadd.f32 %v3043, %v3085
    %v3087 = vpop.f32.mrb[0].mxu0
    %v3088 = vadd.f32 %v3045, %v3087
    %3089 = vdwg.mxu0
    %3090 = vmatprep.subr.bf16.mxu0 %v2567
    %3091 = vmatpush1.bf16.msra.mxu0 %v2566
    %3092 = vmatprep.subr.bf16.mxu0 %v2574
    %3093 = vmatpush1.bf16.msra.mxu0 %v2573
    %3094 = vmatprep.subr.bf16.mxu0 %v2581
    %3095 = vmatpush1.bf16.msra.mxu0 %v2580
    %3096 = vmatprep.subr.bf16.mxu0 %v2588
    %3097 = vmatpush1.bf16.msra.mxu0 %v2587
    %3098 = vmatprep.subr.bf16.mxu0 %v2595
    %3099 = vmatpush1.bf16.msra.mxu0 %v2594
    %3100 = vmatprep.subr.bf16.mxu0 %v2602
    %3101 = vmatpush1.bf16.msra.mxu0 %v2601
    %3102 = vmatprep.subr.bf16.mxu0 %v2609
    %3103 = vmatpush1.bf16.msra.mxu0 %v2608
    %3104 = vmatprep.subr.bf16.mxu0 %v2616
    %3105 = vmatpush1.bf16.msra.mxu0 %v2615
    %3106 = vmatprep.subr.bf16.mxu0 %v2623
    %3107 = vmatpush1.bf16.msra.mxu0 %v2622
    %3108 = vmatprep.subr.bf16.mxu0 %v2630
    %3109 = vmatpush1.bf16.msra.mxu0 %v2629
    %3110 = vmatprep.subr.bf16.mxu0 %v2637
    %3111 = vmatpush1.bf16.msra.mxu0 %v2636
    %3112 = vmatprep.subr.bf16.mxu0 %v2644
    %3113 = vmatpush1.bf16.msra.mxu0 %v2643
    %3114 = vmatprep.subr.bf16.mxu0 %v2651
    %3115 = vmatpush1.bf16.msra.mxu0 %v2650
    %3116 = vmatprep.subr.bf16.mxu0 %v2658
    %3117 = vmatpush1.bf16.msra.mxu0 %v2657
    %3118 = vmatprep.subr.bf16.mxu0 %v2665
    %3119 = vmatpush1.bf16.msra.mxu0 %v2664
    %3120 = vmatprep.subr.bf16.mxu0 %v2672
    %3121 = vmatpush1.bf16.msra.mxu0 %v2671
    %3122 = vmatprep.mubr.bf16.mxu0 %v2793
    %3123 = vmatmul.mubr.bf16.gmra.mrb[0].mxu0 %v2792
    %v3124 = vpop.f32.mrb[0].mxu0
    %v3125 = vadd.f32 %v3082, %v3124
    %v3126 = vpop.f32.mrb[0].mxu0
    %v3127 = vadd.f32 %v3084, %v3126
    %v3128 = vpop.f32.mrb[0].mxu0
    %v3129 = vadd.f32 %v3086, %v3128
    %v3130 = vpop.f32.mrb[0].mxu0
    %v3131 = vadd.f32 %v3088, %v3130
    %3132 = vdwg.mxu0
    %3133 = vmatprep.subr.bf16.mxu0 %v2679
    %3134 = vmatpush1.bf16.msra.mxu0 %v2678
    %3135 = vmatprep.subr.bf16.mxu0 %v2686
    %3136 = vmatpush1.bf16.msra.mxu0 %v2685
    %3137 = vmatprep.subr.bf16.mxu0 %v2693
    %3138 = vmatpush1.bf16.msra.mxu0 %v2692
    %3139 = vmatprep.subr.bf16.mxu0 %v2700
    %3140 = vmatpush1.bf16.msra.mxu0 %v2699
    %3141 = vmatprep.subr.bf16.mxu0 %v2707
    %3142 = vmatpush1.bf16.msra.mxu0 %v2706
    %3143 = vmatprep.subr.bf16.mxu0 %v2714
    %3144 = vmatpush1.bf16.msra.mxu0 %v2713
    %3145 = vmatprep.subr.bf16.mxu0 %v2721
    %3146 = vmatpush1.bf16.msra.mxu0 %v2720
    %3147 = vmatprep.subr.bf16.mxu0 %v2728
    %3148 = vmatpush1.bf16.msra.mxu0 %v2727
    %3149 = vmatprep.subr.bf16.mxu0 %v2735
    %3150 = vmatpush1.bf16.msra.mxu0 %v2734
    %3151 = vmatprep.subr.bf16.mxu0 %v2742
    %3152 = vmatpush1.bf16.msra.mxu0 %v2741
    %3153 = vmatprep.subr.bf16.mxu0 %v2749
    %3154 = vmatpush1.bf16.msra.mxu0 %v2748
    %3155 = vmatprep.subr.bf16.mxu0 %v2756
    %3156 = vmatpush1.bf16.msra.mxu0 %v2755
    %3157 = vmatprep.subr.bf16.mxu0 %v2763
    %3158 = vmatpush1.bf16.msra.mxu0 %v2762
    %3159 = vmatprep.subr.bf16.mxu0 %v2770
    %3160 = vmatpush1.bf16.msra.mxu0 %v2769
    %3161 = vmatprep.subr.bf16.mxu0 %v2777
    %3162 = vmatpush1.bf16.msra.mxu0 %v2776
    %3163 = vmatprep.subr.bf16.mxu0 %v2784
    %3164 = vmatpush1.bf16.msra.mxu0 %v2783
    %3165 = vmatprep.mubr.bf16.mxu0 %v2795
    %3166 = vmatmul.mubr.bf16.gmra.mrb[0].mxu0 %v2794
    %v3167 = vpop.f32.mrb[0].mxu0
    %v3168 = vadd.f32 %v3125, %v3167
    %v3169 = vpop.f32.mrb[0].mxu0
    %v3170 = vadd.f32 %v3127, %v3169
    %v3171 = vpop.f32.mrb[0].mxu0
    %v3172 = vadd.f32 %v3129, %v3171
    %v3173 = vpop.f32.mrb[0].mxu0
    %v3174 = vadd.f32 %v3131, %v3173
    %3175 = vdwg.mxu0
    %3176 = vmatprep.subr.bf16.mxu0 %v2345
    %3177 = vmatpush1.bf16.msra.mxu0 %v2344
    %3178 = vmatprep.subr.bf16.mxu0 %v2352
    %3179 = vmatpush1.bf16.msra.mxu0 %v2351
    %3180 = vmatprep.subr.bf16.mxu0 %v2359
    %3181 = vmatpush1.bf16.msra.mxu0 %v2358
    %3182 = vmatprep.subr.bf16.mxu0 %v2366
    %3183 = vmatpush1.bf16.msra.mxu0 %v2365
    %3184 = vmatprep.subr.bf16.mxu0 %v2373
    %3185 = vmatpush1.bf16.msra.mxu0 %v2372
    %3186 = vmatprep.subr.bf16.mxu0 %v2380
    %3187 = vmatpush1.bf16.msra.mxu0 %v2379
    %3188 = vmatprep.subr.bf16.mxu0 %v2387
    %3189 = vmatpush1.bf16.msra.mxu0 %v2386
    %3190 = vmatprep.subr.bf16.mxu0 %v2394
    %3191 = vmatpush1.bf16.msra.mxu0 %v2393
    %3192 = vmatprep.subr.bf16.mxu0 %v2401
    %3193 = vmatpush1.bf16.msra.mxu0 %v2400
    %3194 = vmatprep.subr.bf16.mxu0 %v2408
    %3195 = vmatpush1.bf16.msra.mxu0 %v2407
    %3196 = vmatprep.subr.bf16.mxu0 %v2415
    %3197 = vmatpush1.bf16.msra.mxu0 %v2414
    %3198 = vmatprep.subr.bf16.mxu0 %v2422
    %3199 = vmatpush1.bf16.msra.mxu0 %v2421
    %3200 = vmatprep.subr.bf16.mxu0 %v2429
    %3201 = vmatpush1.bf16.msra.mxu0 %v2428
    %3202 = vmatprep.subr.bf16.mxu0 %v2436
    %3203 = vmatpush1.bf16.msra.mxu0 %v2435
    %3204 = vmatprep.subr.bf16.mxu0 %v2443
    %3205 = vmatpush1.bf16.msra.mxu0 %v2442
    %3206 = vmatprep.subr.bf16.mxu0 %v2450
    %3207 = vmatpush1.bf16.msra.mxu0 %v2449
    %3208 = vmatprep.mubr.bf16.mxu0 %v2789
    %3209 = vmatmul.mubr.bf16.gmra.mrb[0].mxu0 %v2788
    %v3210 = vpop.f32.mrb[0].mxu0
    %v3211 = vadd.f32 %v2816, %v3210
    %v3212 = vpop.f32.mrb[0].mxu0
    %v3213 = vadd.f32 %v2820, %v3212
    %v3214 = vpop.f32.mrb[0].mxu0
    %v3215 = vadd.f32 %v2816, %v3214
    %v3216 = vpop.f32.mrb[0].mxu0
    %v3217 = vadd.f32 %v2820, %v3216
    %3218 = vdwg.mxu0
    %3219 = vmatprep.subr.bf16.mxu0 %v2457
    %3220 = vmatpush1.bf16.msra.mxu0 %v2456
    %3221 = vmatprep.subr.bf16.mxu0 %v2464
    %3222 = vmatpush1.bf16.msra.mxu0 %v2463
    %3223 = vmatprep.subr.bf16.mxu0 %v2471
    %3224 = vmatpush1.bf16.msra.mxu0 %v2470
    %3225 = vmatprep.subr.bf16.mxu0 %v2478
    %3226 = vmatpush1.bf16.msra.mxu0 %v2477
    %3227 = vmatprep.subr.bf16.mxu0 %v2485
    %3228 = vmatpush1.bf16.msra.mxu0 %v2484
    %3229 = vmatprep.subr.bf16.mxu0 %v2492
    %3230 = vmatpush1.bf16.msra.mxu0 %v2491
    %3231 = vmatprep.subr.bf16.mxu0 %v2499
    %3232 = vmatpush1.bf16.msra.mxu0 %v2498
    %3233 = vmatprep.subr.bf16.mxu0 %v2506
    %3234 = vmatpush1.bf16.msra.mxu0 %v2505
    %3235 = vmatprep.subr.bf16.mxu0 %v2513
    %3236 = vmatpush1.bf16.msra.mxu0 %v2512
    %3237 = vmatprep.subr.bf16.mxu0 %v2520
    %3238 = vmatpush1.bf16.msra.mxu0 %v2519
    %3239 = vmatprep.subr.bf16.mxu0 %v2527
    %3240 = vmatpush1.bf16.msra.mxu0 %v2526
    %3241 = vmatprep.subr.bf16.mxu0 %v2534
    %3242 = vmatpush1.bf16.msra.mxu0 %v2533
    %3243 = vmatprep.subr.bf16.mxu0 %v2541
    %3244 = vmatpush1.bf16.msra.mxu0 %v2540
    %3245 = vmatprep.subr.bf16.mxu0 %v2548
    %3246 = vmatpush1.bf16.msra.mxu0 %v2547
    %3247 = vmatprep.subr.bf16.mxu0 %v2555
    %3248 = vmatpush1.bf16.msra.mxu0 %v2554
    %3249 = vmatprep.subr.bf16.mxu0 %v2562
    %3250 = vmatpush1.bf16.msra.mxu0 %v2561
    %3251 = vmatprep.mubr.bf16.mxu0 %v2791
    %3252 = vmatmul.mubr.bf16.gmra.mrb[0].mxu0 %v2790
    %v3253 = vpop.f32.mrb[0].mxu0
    %v3254 = vadd.f32 %v3211, %v3253
    %v3255 = vpop.f32.mrb[0].mxu0
    %v3256 = vadd.f32 %v3213, %v3255
    %v3257 = vpop.f32.mrb[0].mxu0
    %v3258 = vadd.f32 %v3215, %v3257
    %v3259 = vpop.f32.mrb[0].mxu0
    %v3260 = vadd.f32 %v3217, %v3259
    %3261 = vdwg.mxu0
    %3262 = vmatprep.subr.bf16.mxu0 %v2569
    %3263 = vmatpush1.bf16.msra.mxu0 %v2568
    %3264 = vmatprep.subr.bf16.mxu0 %v2576
    %3265 = vmatpush1.bf16.msra.mxu0 %v2575
    %3266 = vmatprep.subr.bf16.mxu0 %v2583
    %3267 = vmatpush1.bf16.msra.mxu0 %v2582
    %3268 = vmatprep.subr.bf16.mxu0 %v2590
    %3269 = vmatpush1.bf16.msra.mxu0 %v2589
    %3270 = vmatprep.subr.bf16.mxu0 %v2597
    %3271 = vmatpush1.bf16.msra.mxu0 %v2596
    %3272 = vmatprep.subr.bf16.mxu0 %v2604
    %3273 = vmatpush1.bf16.msra.mxu0 %v2603
    %3274 = vmatprep.subr.bf16.mxu0 %v2611
    %3275 = vmatpush1.bf16.msra.mxu0 %v2610
    %3276 = vmatprep.subr.bf16.mxu0 %v2618
    %3277 = vmatpush1.bf16.msra.mxu0 %v2617
    %3278 = vmatprep.subr.bf16.mxu0 %v2625
    %3279 = vmatpush1.bf16.msra.mxu0 %v2624
    %3280 = vmatprep.subr.bf16.mxu0 %v2632
    %3281 = vmatpush1.bf16.msra.mxu0 %v2631
    %3282 = vmatprep.subr.bf16.mxu0 %v2639
    %3283 = vmatpush1.bf16.msra.mxu0 %v2638
    %3284 = vmatprep.subr.bf16.mxu0 %v2646
    %3285 = vmatpush1.bf16.msra.mxu0 %v2645
    %3286 = vmatprep.subr.bf16.mxu0 %v2653
    %3287 = vmatpush1.bf16.msra.mxu0 %v2652
    %3288 = vmatprep.subr.bf16.mxu0 %v2660
    %3289 = vmatpush1.bf16.msra.mxu0 %v2659
    %3290 = vmatprep.subr.bf16.mxu0 %v2667
    %3291 = vmatpush1.bf16.msra.mxu0 %v2666
    %3292 = vmatprep.subr.bf16.mxu0 %v2674
    %3293 = vmatpush1.bf16.msra.mxu0 %v2673
    %3294 = vmatprep.mubr.bf16.mxu0 %v2793
    %3295 = vmatmul.mubr.bf16.gmra.mrb[0].mxu0 %v2792
    %v3296 = vpop.f32.mrb[0].mxu0
    %v3297 = vadd.f32 %v3254, %v3296
    %v3298 = vpop.f32.mrb[0].mxu0
    %v3299 = vadd.f32 %v3256, %v3298
    %v3300 = vpop.f32.mrb[0].mxu0
    %v3301 = vadd.f32 %v3258, %v3300
    %v3302 = vpop.f32.mrb[0].mxu0
    %v3303 = vadd.f32 %v3260, %v3302
    %3304 = vdwg.mxu0
    %3305 = vmatprep.subr.bf16.mxu0 %v2681
    %3306 = vmatpush1.bf16.msra.mxu0 %v2680
    %3307 = vmatprep.subr.bf16.mxu0 %v2688
    %3308 = vmatpush1.bf16.msra.mxu0 %v2687
    %3309 = vmatprep.subr.bf16.mxu0 %v2695
    %3310 = vmatpush1.bf16.msra.mxu0 %v2694
    %3311 = vmatprep.subr.bf16.mxu0 %v2702
    %3312 = vmatpush1.bf16.msra.mxu0 %v2701
    %3313 = vmatprep.subr.bf16.mxu0 %v2709
    %3314 = vmatpush1.bf16.msra.mxu0 %v2708
    %3315 = vmatprep.subr.bf16.mxu0 %v2716
    %3316 = vmatpush1.bf16.msra.mxu0 %v2715
    %3317 = vmatprep.subr.bf16.mxu0 %v2723
    %3318 = vmatpush1.bf16.msra.mxu0 %v2722
    %3319 = vmatprep.subr.bf16.mxu0 %v2730
    %3320 = vmatpush1.bf16.msra.mxu0 %v2729
    %3321 = vmatprep.subr.bf16.mxu0 %v2737
    %3322 = vmatpush1.bf16.msra.mxu0 %v2736
    %3323 = vmatprep.subr.bf16.mxu0 %v2744
    %3324 = vmatpush1.bf16.msra.mxu0 %v2743
    %3325 = vmatprep.subr.bf16.mxu0 %v2751
    %3326 = vmatpush1.bf16.msra.mxu0 %v2750
    %3327 = vmatprep.subr.bf16.mxu0 %v2758
    %3328 = vmatpush1.bf16.msra.mxu0 %v2757
    %3329 = vmatprep.subr.bf16.mxu0 %v2765
    %3330 = vmatpush1.bf16.msra.mxu0 %v2764
    %3331 = vmatprep.subr.bf16.mxu0 %v2772
    %3332 = vmatpush1.bf16.msra.mxu0 %v2771
    %3333 = vmatprep.subr.bf16.mxu0 %v2779
    %3334 = vmatpush1.bf16.msra.mxu0 %v2778
    %3335 = vmatprep.subr.bf16.mxu0 %v2786
    %3336 = vmatpush1.bf16.msra.mxu0 %v2785
    %3337 = vmatprep.mubr.bf16.mxu0 %v2795
    %3338 = vmatmul.mubr.bf16.gmra.mrb[0].mxu0 %v2794
    %v3339 = vpop.f32.mrb[0].mxu0
    %v3340 = vadd.f32 %v3297, %v3339
    %v3341 = vpop.f32.mrb[0].mxu0
    %v3342 = vadd.f32 %v3299, %v3341
    %v3343 = vpop.f32.mrb[0].mxu0
    %v3344 = vadd.f32 %v3301, %v3343
    %v3345 = vpop.f32.mrb[0].mxu0
    %v3346 = vadd.f32 %v3303, %v3345
    %3347 = vdwg.mxu0
    %3348 = vmatprep.subr.bf16.mxu0 0
    %3349 = vmatpush1.bf16.msra.mxu0 %v2346
    %3350 = vmatprep.subr.bf16.mxu0 0
    %3351 = vmatpush1.bf16.msra.mxu0 %v2353
    %3352 = vmatprep.subr.bf16.mxu0 0
    %3353 = vmatpush1.bf16.msra.mxu0 %v2360
    %3354 = vmatprep.subr.bf16.mxu0 0
    %3355 = vmatpush1.bf16.msra.mxu0 %v2367
    %3356 = vmatprep.subr.bf16.mxu0 0
    %3357 = vmatpush1.bf16.msra.mxu0 %v2374
    %3358 = vmatprep.subr.bf16.mxu0 0
    %3359 = vmatpush1.bf16.msra.mxu0 %v2381
    %3360 = vmatprep.subr.bf16.mxu0 0
    %3361 = vmatpush1.bf16.msra.mxu0 %v2388
    %3362 = vmatprep.subr.bf16.mxu0 0
    %3363 = vmatpush1.bf16.msra.mxu0 %v2395
    %3364 = vmatprep.subr.bf16.mxu0 0
    %3365 = vmatpush1.bf16.msra.mxu0 %v2402
    %3366 = vmatprep.subr.bf16.mxu0 0
    %3367 = vmatpush1.bf16.msra.mxu0 %v2409
    %3368 = vmatprep.subr.bf16.mxu0 0
    %3369 = vmatpush1.bf16.msra.mxu0 %v2416
    %3370 = vmatprep.subr.bf16.mxu0 0
    %3371 = vmatpush1.bf16.msra.mxu0 %v2423
    %3372 = vmatprep.subr.bf16.mxu0 0
    %3373 = vmatpush1.bf16.msra.mxu0 %v2430
    %3374 = vmatprep.subr.bf16.mxu0 0
    %3375 = vmatpush1.bf16.msra.mxu0 %v2437
    %3376 = vmatprep.subr.bf16.mxu0 0
    %3377 = vmatpush1.bf16.msra.mxu0 %v2444
    %3378 = vmatprep.subr.bf16.mxu0 0
    %3379 = vmatpush1.bf16.msra.mxu0 %v2451
    %3380 = vmatprep.mubr.bf16.mxu0 %v2789
    %3381 = vmatmul.mubr.bf16.gmra.mrb[0].mxu0 %v2788
    %v3382 = vpop.f32.mrb[0].mxu0
    %v3383 = vadd.f32 %v2824, %v3382
    %v3384 = vpop.f32.mrb[0].mxu0
    %v3385 = vpop.f32.mrb[0].mxu0
    %v3386 = vadd.f32 %v2824, %v3385
    %v3387 = vpop.f32.mrb[0].mxu0
    %3388 = vdwg.mxu0
    %3389 = vmatprep.subr.bf16.mxu0 0
    %3390 = vmatpush1.bf16.msra.mxu0 %v2458
    %3391 = vmatprep.subr.bf16.mxu0 0
    %3392 = vmatpush1.bf16.msra.mxu0 %v2465
    %3393 = vmatprep.subr.bf16.mxu0 0
    %3394 = vmatpush1.bf16.msra.mxu0 %v2472
    %3395 = vmatprep.subr.bf16.mxu0 0
    %3396 = vmatpush1.bf16.msra.mxu0 %v2479
    %3397 = vmatprep.subr.bf16.mxu0 0
    %3398 = vmatpush1.bf16.msra.mxu0 %v2486
    %3399 = vmatprep.subr.bf16.mxu0 0
    %3400 = vmatpush1.bf16.msra.mxu0 %v2493
    %3401 = vmatprep.subr.bf16.mxu0 0
    %3402 = vmatpush1.bf16.msra.mxu0 %v2500
    %3403 = vmatprep.subr.bf16.mxu0 0
    %3404 = vmatpush1.bf16.msra.mxu0 %v2507
    %3405 = vmatprep.subr.bf16.mxu0 0
    %3406 = vmatpush1.bf16.msra.mxu0 %v2514
    %3407 = vmatprep.subr.bf16.mxu0 0
    %3408 = vmatpush1.bf16.msra.mxu0 %v2521
    %3409 = vmatprep.subr.bf16.mxu0 0
    %3410 = vmatpush1.bf16.msra.mxu0 %v2528
    %3411 = vmatprep.subr.bf16.mxu0 0
    %3412 = vmatpush1.bf16.msra.mxu0 %v2535
    %3413 = vmatprep.subr.bf16.mxu0 0
    %3414 = vmatpush1.bf16.msra.mxu0 %v2542
    %3415 = vmatprep.subr.bf16.mxu0 0
    %3416 = vmatpush1.bf16.msra.mxu0 %v2549
    %3417 = vmatprep.subr.bf16.mxu0 0
    %3418 = vmatpush1.bf16.msra.mxu0 %v2556
    %3419 = vmatprep.subr.bf16.mxu0 0
    %3420 = vmatpush1.bf16.msra.mxu0 %v2563
    %3421 = vmatprep.mubr.bf16.mxu0 %v2791
    %3422 = vmatmul.mubr.bf16.gmra.mrb[0].mxu0 %v2790
    %v3423 = vpop.f32.mrb[0].mxu0
    %v3424 = vadd.f32 %v3383, %v3423
    %v3425 = vpop.f32.mrb[0].mxu0
    %v3426 = vpop.f32.mrb[0].mxu0
    %v3427 = vadd.f32 %v3386, %v3426
    %v3428 = vpop.f32.mrb[0].mxu0
    %3429 = vdwg.mxu0
    %3430 = vmatprep.subr.bf16.mxu0 0
    %3431 = vmatpush1.bf16.msra.mxu0 %v2570
    %3432 = vmatprep.subr.bf16.mxu0 0
    %3433 = vmatpush1.bf16.msra.mxu0 %v2577
    %3434 = vmatprep.subr.bf16.mxu0 0
    %3435 = vmatpush1.bf16.msra.mxu0 %v2584
    %3436 = vmatprep.subr.bf16.mxu0 0
    %3437 = vmatpush1.bf16.msra.mxu0 %v2591
    %3438 = vmatprep.subr.bf16.mxu0 0
    %3439 = vmatpush1.bf16.msra.mxu0 %v2598
    %3440 = vmatprep.subr.bf16.mxu0 0
    %3441 = vmatpush1.bf16.msra.mxu0 %v2605
    %3442 = vmatprep.subr.bf16.mxu0 0
    %3443 = vmatpush1.bf16.msra.mxu0 %v2612
    %3444 = vmatprep.subr.bf16.mxu0 0
    %3445 = vmatpush1.bf16.msra.mxu0 %v2619
    %3446 = vmatprep.subr.bf16.mxu0 0
    %3447 = vmatpush1.bf16.msra.mxu0 %v2626
    %3448 = vmatprep.subr.bf16.mxu0 0
    %3449 = vmatpush1.bf16.msra.mxu0 %v2633
    %3450 = vmatprep.subr.bf16.mxu0 0
    %3451 = vmatpush1.bf16.msra.mxu0 %v2640
    %3452 = vmatprep.subr.bf16.mxu0 0
    %3453 = vmatpush1.bf16.msra.mxu0 %v2647
    %3454 = vmatprep.subr.bf16.mxu0 0
    %3455 = vmatpush1.bf16.msra.mxu0 %v2654
    %3456 = vmatprep.subr.bf16.mxu0 0
    %3457 = vmatpush1.bf16.msra.mxu0 %v2661
    %3458 = vmatprep.subr.bf16.mxu0 0
    %3459 = vmatpush1.bf16.msra.mxu0 %v2668
    %3460 = vmatprep.subr.bf16.mxu0 0
    %3461 = vmatpush1.bf16.msra.mxu0 %v2675
    %3462 = vmatprep.mubr.bf16.mxu0 %v2793
    %3463 = vmatmul.mubr.bf16.gmra.mrb[0].mxu0 %v2792
    %v3464 = vpop.f32.mrb[0].mxu0
    %v3465 = vadd.f32 %v3424, %v3464
    %v3466 = vpop.f32.mrb[0].mxu0
    %v3467 = vpop.f32.mrb[0].mxu0
    %v3468 = vadd.f32 %v3427, %v3467
    %v3469 = vpop.f32.mrb[0].mxu0
    %3470 = vdwg.mxu0
    %3471 = vmatprep.subr.bf16.mxu0 0
    %3472 = vmatpush1.bf16.msra.mxu0 %v2682
    %3473 = vmatprep.subr.bf16.mxu0 0
    %3474 = vmatpush1.bf16.msra.mxu0 %v2689
    %3475 = vmatprep.subr.bf16.mxu0 0
    %3476 = vmatpush1.bf16.msra.mxu0 %v2696
    %3477 = vmatprep.subr.bf16.mxu0 0
    %3478 = vmatpush1.bf16.msra.mxu0 %v2703
    %3479 = vmatprep.subr.bf16.mxu0 0
    %3480 = vmatpush1.bf16.msra.mxu0 %v2710
    %3481 = vmatprep.subr.bf16.mxu0 0
    %3482 = vmatpush1.bf16.msra.mxu0 %v2717
    %3483 = vmatprep.subr.bf16.mxu0 0
    %3484 = vmatpush1.bf16.msra.mxu0 %v2724
    %3485 = vmatprep.subr.bf16.mxu0 0
    %3486 = vmatpush1.bf16.msra.mxu0 %v2731
    %3487 = vmatprep.subr.bf16.mxu0 0
    %3488 = vmatpush1.bf16.msra.mxu0 %v2738
    %3489 = vmatprep.subr.bf16.mxu0 0
    %3490 = vmatpush1.bf16.msra.mxu0 %v2745
    %3491 = vmatprep.subr.bf16.mxu0 0
    %3492 = vmatpush1.bf16.msra.mxu0 %v2752
    %3493 = vmatprep.subr.bf16.mxu0 0
    %3494 = vmatpush1.bf16.msra.mxu0 %v2759
    %3495 = vmatprep.subr.bf16.mxu0 0
    %3496 = vmatpush1.bf16.msra.mxu0 %v2766
    %3497 = vmatprep.subr.bf16.mxu0 0
    %3498 = vmatpush1.bf16.msra.mxu0 %v2773
    %3499 = vmatprep.subr.bf16.mxu0 0
    %3500 = vmatpush1.bf16.msra.mxu0 %v2780
    %3501 = vmatprep.subr.bf16.mxu0 0
    %3502 = vmatpush1.bf16.msra.mxu0 %v2787
    %3503 = vmatprep.mubr.bf16.mxu0 %v2795
    %3504 = vmatmul.mubr.bf16.gmra.mrb[0].mxu0 %v2794
    %v3505 = vpop.f32.mrb[0].mxu0
    %v3506 = vadd.f32 %v3465, %v3505
    %v3507 = vpop.f32.mrb[0].mxu0
    %v3508 = vpop.f32.mrb[0].mxu0
    %v3509 = vadd.f32 %v3468, %v3508
    %v3510 = vpop.f32.mrb[0].mxu0
    %3511 = vdwg.mxu0
    %v3512 = vtanh.pop %v2996
    %v3513 = vtanh.pop %v2998
    %v3514 = vtanh.pop %v3168
    %v3515 = vtanh.pop %v3170
    %v3516 = vtanh.pop %v3340
    %v3517 = vtanh.pop %v3342
    %v3518 = vtanh.pop %v3506
    %v3519 = vtanh.pop %v3000
    %v3520 = vtanh.pop %v3002
    %v3521 = vtanh.pop %v3172
    %v3522 = vtanh.pop %v3174
    %v3523 = vtanh.pop %v3344
    %v3524 = vtanh.pop %v3346
    %v3525 = vtanh.pop %v3509
    %3526 = vst [vmem:[#allocation16] sm:$0xff] %v3512
    %3527 = vst [vmem:[#allocation16 + $0x8] sm:$0xff] %v3513
    %3528 = vst [vmem:[#allocation16 + $0x10] sm:$0xff] %v3514
    %3529 = vst [vmem:[#allocation16 + $0x18] sm:$0xff] %v3515
    %3530 = vst [vmem:[#allocation16 + $0x20] sm:$0xff] %v3516
    %3531 = vst [vmem:[#allocation16 + $0x28] sm:$0xff] %v3517
    %3532 = vst [vmem:[#allocation16 + $0x30] sm:$0xff] %v3518
    %3533 = vst [vmem:[#allocation16 + $0x38] sm:$0xff] %v3519
    %3534 = vst [vmem:[#allocation16 + $0x40] sm:$0xff] %v3520
    %3535 = vst [vmem:[#allocation16 + $0x48] sm:$0xff] %v3521
    %3536 = vst [vmem:[#allocation16 + $0x50] sm:$0xff] %v3522
    %3537 = vst [vmem:[#allocation16 + $0x58] sm:$0xff] %v3523
    %3538 = vst [vmem:[#allocation16 + $0x60] sm:$0xff] %v3524
    %3539 = vst [vmem:[#allocation16 + $0x68] sm:$0xff] %v3525
    // Predicated region
    $region54: #{tpu_custom_call.1} parent=1 // pred_check
      _
    $region55: #{tpu_custom_call.1} parent=1 // pred_check_branch
      %3541 = sbr.rel (0) target = $region57
    $region56: #{tpu_custom_call.1} parent=1 // pred_region
      %s3543 = ssub.s32 1792, 1792
      %3544 = vsyncadd [#allocation7], %s3543
      %s3545 = sshll.u32 [#allocation16], 4
      %s3546 = int_to_ptr.vmem [resolvable:$true] %s3545
      %3551 = dma.vmem_to_hbm [thread:$0]  %s3546, 1792, %s9, [#allocation7], 896, 896, 56
    $region57: #{tpu_custom_call.1} parent=1 // pred_fallthru
      _
    // Predicated region
    $region58: #{tpu_custom_call.1} parent=1 // pred_check
      _
    $region59: #{tpu_custom_call.1} parent=1 // pred_check_branch
      %3553 = sbr.rel (0) target = $region61
    $region60: #{tpu_custom_call.1} parent=1 // pred_region
      %3554 = dma.done [#allocation7], 1792
    $region61: #{tpu_custom_call.1} parent=1 // pred_fallthru
      _
    %3555 = vsyncpa [#allocation6], 1
    %3556 = vsyncpa [#allocation9], 1
    %3557 = vsyncpa [#allocation12], 1
    %3558 = vsyncpa [#allocation15], 1
    %3559 = vsyncpa [#allocation7], 1
  %3560 = vsyncmov [#allocation4]
  %s3561 = vpop.sfrf %3560
  %p3562 = scmp.eq.s32.totalorder %s3561, 0
  %p3563 = pneg %p3562
  %3565 = shalt.err (%p3563)
  %s3566 = scalar_lea.sflag [#allocation4], 1
  %3567 = vsyncmov %s3566
  %s3568 = vpop.sfrf %3567
  %p3569 = scmp.eq.s32.totalorder %s3568, 0
  %p3570 = pneg %p3569
  %3572 = shalt.err (%p3570)

</llo_original>
